<compile_context>
chip_gen: v6e
topology: v6e:2x2x1
jax: 0.10.0
libtpu: 0.0.40
codegen_flags: <defaults>
</compile_context>

<pallas_src>
import jax
import jax.numpy as jnp
from jax.experimental import pallas as pl
from jax.experimental.pallas import tpu as pltpu


def _bilinear_matrix(out_size: int, in_size: int) -> jnp.ndarray:
    """Interpolation matrix (out_size, in_size) matching PyTorch
    F.interpolate(mode='bilinear', align_corners=False)."""
    scale = in_size / out_size
    dst = jnp.arange(out_size, dtype=jnp.float32)
    src = (dst + 0.5) * scale - 0.5
    src = jnp.maximum(src, 0.0)                      # PyTorch clamps negative src to 0
    i0 = jnp.clip(jnp.floor(src).astype(jnp.int32), 0, in_size - 1)
    i1 = jnp.minimum(i0 + 1, in_size - 1)
    frac = src - i0.astype(jnp.float32)
    m0 = jax.nn.one_hot(i0, in_size, dtype=jnp.float32) * (1.0 - frac)[:, None]
    m1 = jax.nn.one_hot(i1, in_size, dtype=jnp.float32) * frac[:, None]
    return m0 + m1
    # TODO(synk): if a stage ever downsamples spatially, PyTorch's antialias=True
    # path would need a different matrix; this matches antialias=False.


def _reformer_kernel(x_ref, m_ref, w_ref, y_ref, o_ref):
    # x_ref: (1, Cin+1, HWin)  raw x (flattened), last row = ones (bias carrier)
    # m_ref: (HWin, HWp)       transposed bilinear matrix kron(ih, iw)^T (zero-padded cols)
    # w_ref: (Cin+1, tco)      [0.5 * W^T ; 0.5 * b]   (bias folded via the ones row)
    # y_ref, o_ref: (1, tco, HWp)  NCHW-flat y / output tiles (lane-dense)
    x_up = jnp.dot(x_ref[0], m_ref[...],
                   preferred_element_type=jnp.float32)          # (Cin+1, HWp)
    conv = jax.lax.dot_general(
        w_ref[...], x_up,
        dimension_numbers=(((0,), (0,)), ((), ())),             # contract Cin+1
        preferred_element_type=jnp.float32)                     # (tco, HWp)
    o_ref[0] = (conv + y_ref[0] * 0.5).astype(o_ref.dtype)


def _pick_tco(cout: int, hw_pad: int) -> int:
    """Pick the Cout tile so double-buffered y-in + out tiles fit a VMEM budget,
    and so v7x's two TensorCores both get work."""
    budget = 32 << 20                       # big-tile budget (leaves headroom everywhere)
    per_co_bytes = 4 * hw_pad * 4           # (y + out) * double-buffer * f32
    tco = cout
    while tco > 128 and tco * per_co_bytes > budget:
        tco //= 2
    try:
        kind = jax.devices()[0].device_kind.lower()
    except Exception:
        kind = ""
    # v7x has 2 TensorCores/chip: ensure the co axis has >= 2 steps so both
    # cores always have work even when B == 1. Keep one big tile on v5e/v6e.
    if "7" in kind and cout // tco < 2:
        tco = max(128, tco // 2)
    while tco > 1 and cout % tco:
        tco //= 2
    return max(tco, 1)


@jax.jit
def reformer_forward(x_nchw, y_nchw, weight, bias):
    """x_nchw: (B, Cin, Hin, Win); y_nchw: (B, Cout, Hout, Wout);
    weight: (Cout, Cin, 1, 1); bias: (Cout,). Returns (B, Cout, Hout, Wout)."""
    B, cin, hin, win = x_nchw.shape
    _, cout, hout, wout = y_nchw.shape
    hw = hout * wout
    hwin = hin * win
    hw_pad = ((hw + 127) // 128) * 128       # keep output lane-dense (unmasked vst)

    # Transposed bilinear resize matrix: x_up_flat = x_flat @ m_t.
    ih = _bilinear_matrix(hout, hin)         # (Hout, Hin)
    iw = _bilinear_matrix(wout, win)         # (Wout, Win)
    m_t = jnp.kron(ih, iw).T                 # (HWin, HW)
    if hw_pad != hw:
        m_t = jnp.pad(m_t, ((0, 0), (0, hw_pad - hw)))

    # Raw x flattened, plus an appended ones row that carries the folded bias.
    x_flat = x_nchw.astype(jnp.float32).reshape(B, cin, hwin)
    x_aug = jnp.concatenate(
        [x_flat, jnp.ones((B, 1, hwin), jnp.float32)], axis=1)  # (B, Cin+1, HWin)

    # Pre-transposed, pre-scaled weight with the bias folded in as an extra row:
    # contiguous (Cin+1) x Cout rows -> single-burst DMA, tiny VMEM footprint.
    w_t = (weight.reshape(cout, cin).T * 0.5).astype(jnp.float32)   # (Cin, Cout)
    b_row = (bias.reshape(1, cout) * 0.5).astype(jnp.float32)       # (1,   Cout)
    w_aug = jnp.concatenate([w_t, b_row], axis=0)                   # (Cin+1, Cout)

    # NCHW-flat y: contiguous reshape (no transpose); pad lanes only if needed.
    y_flat = y_nchw.astype(jnp.float32).reshape(B, cout, hw)
    if hw_pad != hw:
        y_flat = jnp.pad(y_flat, ((0, 0), (0, 0), (0, hw_pad - hw)))

    tco = _pick_tco(cout, hw_pad)
    grid = (B, cout // tco)

    cost = pl.CostEstimate(
        flops=2 * B * (cout // tco) * (cin + 1) * hwin * hw_pad      # in-kernel resize
              + 2 * B * cout * (cin + 1) * hw_pad,                   # 1x1 conv
        transcendentals=0,
        bytes_accessed=2 * B * cout * hw_pad * 4                     # y read + out write
                       + B * (cin + 1) * hwin * 4
                       + (cin + 1) * cout * 4
                       + hwin * hw_pad * 4,
    )

    out_flat = pl.pallas_call(
        _reformer_kernel,
        out_shape=jax.ShapeDtypeStruct((B, cout, hw_pad), jnp.float32),
        grid_spec=pltpu.PrefetchScalarGridSpec(
            num_scalar_prefetch=0,
            grid=grid,
            in_specs=[
                pl.BlockSpec((1, cin + 1, hwin), lambda b, co: (b, 0, 0)),
                pl.BlockSpec((hwin, hw_pad), lambda b, co: (0, 0)),
                pl.BlockSpec((cin + 1, tco), lambda b, co: (0, co)),
                pl.BlockSpec((1, tco, hw_pad), lambda b, co: (b, co, 0)),
            ],
            out_specs=pl.BlockSpec((1, tco, hw_pad), lambda b, co: (b, co, 0)),
        ),
        compiler_params=pltpu.CompilerParams(
            dimension_semantics=("parallel", "parallel"),
            vmem_limit_bytes=48 << 20),
        cost_estimate=cost,
    )(x_aug, m_t, w_aug, y_flat)

    out = out_flat[:, :, :hw] if hw_pad != hw else out_flat
    return out.reshape(B, cout, hout, wout)


def _reference_forward(x_nchw, y_nchw, weight, bias):
    """Pure-JAX reference using the same interpolation matrices."""
    B, cin, hin, win = x_nchw.shape
    _, cout, hout, wout = y_nchw.shape
    ih = _bilinear_matrix(hout, hin)
    iw = _bilinear_matrix(wout, win)
    x_up = jnp.einsum('oh,bchw,pw->bcop', ih, x_nchw, iw)
    conv = jnp.einsum('bchw,kc->bkhw', x_up, weight.reshape(cout, cin)) \
        + bias[None, :, None, None]
    return conv / 2 + y_nchw / 2


if __name__ == "__main__":
    # Reformer(in_channels=4, stage=3) -> reform_conv: Conv2d(4, 2048, k=1)
    B, CIN = 2, 4
    HIN, WIN = 8, 8
    COUT, HOUT, WOUT = 2048, 16, 16   # y defines the target spatial size

    key = jax.random.PRNGKey(0)
    kx, ky, kw, kb = jax.random.split(key, 4)
    x = jax.random.normal(kx, (B, CIN, HIN, WIN), dtype=jnp.float32)
    y = jax.random.normal(ky, (B, COUT, HOUT, WOUT), dtype=jnp.float32)
    weight = jax.random.normal(kw, (COUT, CIN, 1, 1), dtype=jnp.float32) * 0.05
    bias = jax.random.normal(kb, (COUT,), dtype=jnp.float32) * 0.05

    out = jax.block_until_ready(reformer_forward(x, y, weight, bias))
    ref = _reference_forward(x, y, weight, bias)

    assert out.shape == (B, COUT, HOUT, WOUT)
    max_err = float(jnp.max(jnp.abs(out - ref)))
    assert jnp.allclose(out, ref, atol=1e-4, rtol=1e-4), max_err

    print("KERNEL_OK")
</pallas_src>

<mosaic_0001>
module attributes {stable_mosaic.version = 11 : i64} {
  func.func @_reformer_kernel(%arg0: i32, %arg1: i32, %arg2: memref<1x5x64xf32, #tpu.memory_space<vmem>>, %arg3: memref<64x256xf32, #tpu.memory_space<vmem>>, %arg4: memref<5x2048xf32, #tpu.memory_space<vmem>>, %arg5: memref<1x2048x256xf32, #tpu.memory_space<vmem>>, %arg6: memref<1x2048x256xf32, #tpu.memory_space<vmem>>) attributes {dimension_semantics = [#tpu.dimension_semantics<parallel>, #tpu.dimension_semantics<parallel>], iteration_bounds = array<i64: 2, 1>, scalar_prefetch = 0 : i64, scratch_operands = 0 : i64, tpu.core_type = #tpu.core_type<tc>, window_params = [{transform_indices = @transform_0, window_bounds = array<i64: 1, 5, 64>}, {pipeline_mode = #tpu.pipeline_mode<synchronous>, transform_indices = @transform_1, window_bounds = array<i64: 64, 256>}, {transform_indices = @transform_2, window_bounds = array<i64: 5, 2048>}, {transform_indices = @transform_3, window_bounds = array<i64: 1, 2048, 256>}, {transform_indices = @transform_4, window_bounds = array<i64: 1, 2048, 256>}]} {
    %c0 = arith.constant 0 : index
    %c0_0 = arith.constant 0 : index
    %c0_1 = arith.constant 0 : index
    %0 = vector.load %arg2[%c0, %c0_0, %c0_1] : memref<1x5x64xf32, #tpu.memory_space<vmem>>, vector<1x5x64xf32>
    %1 = vector.shape_cast %0 : vector<1x5x64xf32> to vector<5x64xf32>
    %c0_2 = arith.constant 0 : index
    %c0_3 = arith.constant 0 : index
    %2 = vector.load %arg3[%c0_2, %c0_3] : memref<64x256xf32, #tpu.memory_space<vmem>>, vector<64x256xf32>
    %cst = arith.constant dense<0.000000e+00> : vector<5x256xf32>
    %3 = tpu.matmul %1, %2, %cst {dimension_numbers = #tpu.dot_dimension_numbers<[1], [0], [0], [1], [0, 0, 1, 1], [], []>} : vector<5x64xf32>, vector<64x256xf32>, vector<5x256xf32> -> vector<5x256xf32>
    %c0_4 = arith.constant 0 : index
    %c0_5 = arith.constant 0 : index
    %4 = vector.load %arg4[%c0_4, %c0_5] : memref<5x2048xf32, #tpu.memory_space<vmem>>, vector<5x2048xf32>
    %cst_6 = arith.constant dense<0.000000e+00> : vector<2048x256xf32>
    %5 = tpu.matmul %4, %3, %cst_6 {dimension_numbers = #tpu.dot_dimension_numbers<[0], [0], [1], [1], [0, 1, 1, 1], [], []>} : vector<5x2048xf32>, vector<5x256xf32>, vector<2048x256xf32> -> vector<2048x256xf32>
    %c0_7 = arith.constant 0 : index
    %c0_8 = arith.constant 0 : index
    %c0_9 = arith.constant 0 : index
    %6 = vector.load %arg5[%c0_7, %c0_8, %c0_9] : memref<1x2048x256xf32, #tpu.memory_space<vmem>>, vector<1x2048x256xf32>
    %7 = vector.shape_cast %6 : vector<1x2048x256xf32> to vector<2048x256xf32>
    %cst_10 = arith.constant 5.000000e-01 : f32
    %8 = vector.broadcast %cst_10 : f32 to vector<2048x256xf32>
    %9 = arith.mulf %7, %8 : vector<2048x256xf32>
    %10 = arith.addf %5, %9 : vector<2048x256xf32>
    %c0_11 = arith.constant 0 : index
    %c0_12 = arith.constant 0 : index
    %c0_13 = arith.constant 0 : index
    %11 = vector.load %arg6[%c0_11, %c0_12, %c0_13] : memref<1x2048x256xf32, #tpu.memory_space<vmem>>, vector<1x2048x256xf32>
    %12 = vector.shape_cast %11 : vector<1x2048x256xf32> to vector<2048x256xf32>
    %13 = vector.shape_cast %10 : vector<2048x256xf32> to vector<1x2048x256xf32>
    tpu.vector_store %arg6[%c0_11, %c0_12, %c0_13], %13 {strides = array<i32>} : memref<1x2048x256xf32, #tpu.memory_space<vmem>>, vector<1x2048x256xf32>,
    return
  }
  func.func @transform_0(%arg0: i32, %arg1: i32) -> (i32, i32, i32) {
    %c0_i32 = arith.constant 0 : i32
    %c0_i32_0 = arith.constant 0 : i32
    %c0_i32_1 = arith.constant 0 : i32
    return %arg0, %c0_i32, %c0_i32_0 : i32, i32, i32
  }
  func.func @transform_1(%arg0: i32, %arg1: i32) -> (i32, i32) {
    %c0_i32 = arith.constant 0 : i32
    %c0_i32_0 = arith.constant 0 : i32
    %c0_i32_1 = arith.constant 0 : i32
    return %c0_i32, %c0_i32_0 : i32, i32
  }
  func.func @transform_2(%arg0: i32, %arg1: i32) -> (i32, i32) {
    %c0_i32 = arith.constant 0 : i32
    %c0_i32_0 = arith.constant 0 : i32
    return %c0_i32, %arg1 : i32, i32
  }
  func.func @transform_3(%arg0: i32, %arg1: i32) -> (i32, i32, i32) {
    %c0_i32 = arith.constant 0 : i32
    %c0_i32_0 = arith.constant 0 : i32
    return %arg0, %arg1, %c0_i32 : i32, i32, i32
  }
  func.func @transform_4(%arg0: i32, %arg1: i32) -> (i32, i32, i32) {
    %c0_i32 = arith.constant 0 : i32
    %c0_i32_0 = arith.constant 0 : i32
    return %arg0, %arg1, %c0_i32 : i32, i32, i32
  }
}

</mosaic_0001>

<llo_original>
// kernel: reformer_forward.1
$region0: #{reformer_forward.1}
  #allocation0 [shape = 'u32[]', space=smem, size = 0x4, offset = 0x4, fixed_abs, tag = 'smem constant byte address 0x4 - core index']
  #allocation1 [shape = 'u32[144,128]{1,0:T(1,128)}', space=vmem, size = 0x12000, scoped, tag = 'internal scratch']
  %s0 = inlined_call_operand.vmem [shape: f32[2,5,64], index: 0, kind: input, shape index: {}]
  %s1 = inlined_call_operand.vmem [shape: f32[64,256], index: 1, kind: input, shape index: {}]
  %s2 = inlined_call_operand.vmem [shape: f32[5,2048], index: 2, kind: input, shape index: {}]
  %s3 = inlined_call_operand.vmem [shape: f32[2,2048,256], index: 3, kind: input, shape index: {}]
  %s4 = inlined_call_operand.vmem [shape: f32[2,2048,256], index: 4, kind: output, shape index: {}]
  %s5 = sld [smem:[#allocation0]]
  $region49: #{reformer_forward.1} parent=0
    _
  %s7 = ssub.s32 1, %s5
  %s8 = scalar_select 0, %s7, %s5
  loop: start=0, step=1, limit=4
  $region2: #{reformer_forward.1} parent=0 // loop_pre_header
    _
  $region3: #{reformer_forward.1} parent=0 // loop_header
    %s10 = sphi 0, %s14
    %p11 = scmp.ge.s32.totalorder %s10, 4
    %s17 = sphi 0, %s29
    %s18 = sphi 0, %s25
    %s19 = sphi 0, %s17
    %s20 = sphi 0, %s18
    %s21 = sphi 0, %s19
    %s22 = sphi 0, %s20
    %s32 = sphi 0, %s34
    %s35 = sphi 0, %s32
    %s36 = sphi 0, %s35
    %s52 = sphi 0, %s36
    %s56 = sphi 0, %s56
    %s58 = sphi 0, %s56
    %s59 = sphi 0, %s58
    %s73 = sphi 0, %s59
    %s79 = sphi 0, %s81
    %s82 = sphi 0, %s79
    %s83 = sphi 0, %s82
    %s99 = sphi 0, %s83
    %s107 = sphi 0, %s109
    %s110 = sphi 0, %s107
    %s111 = sphi 0, %s110
    %s127 = sphi 0, %s111
    %s135 = sphi 0, %s137
    %s138 = sphi 0, %s135
    %s139 = sphi 0, %s138
    %s155 = sphi 0, %s139
  $region4: #{reformer_forward.1} parent=0 // loop_header_branch
    %13 = sbr.rel (%p11) target = $region8
  $region5: #{reformer_forward.1} parent=0 // loop_body
    %s15 = ssub.s32 %s10, 1
    %s16 = ssub.s32 %s10, 2
    %s23 = sadd.s32 1, %s18
    %p24 = scmp.ge.s32.totalorder %s23, 1
    %s25 = scalar_select %p24, 0, %s23
    %s26 = sadd.s32 1, %s17
    %s27 = scalar_select %p24, %s26, %s17
    %p28 = scmp.ge.s32.totalorder %s27, 2
    %s29 = scalar_select %p28, 0, %s27
    %s30 = ssub.s32 %s17, %s29
    %p31 = scmp.eq.s32.totalorder %s30, 0
    %s33 = sadd.s32 %s32, 1
    %s34 = scalar_select %p31, %s32, %s33
    %p37 = pneg %p31
    %p38 = scmp.eq.s32.totalorder %s10, 1
    %p39 = por %p37, %p38
    %p40 = scmp.ne.s32.totalorder %s32, %s35
    %p41 = scmp.eq.s32.totalorder %s10, 0
    %p42 = por %p40, %p41
    %p43 = scmp.ne.s32.totalorder %s32, %s35
    %p44 = scmp.eq.s32.totalorder %s15, 1
    %p45 = por %p43, %p44
    %p46 = scmp.ne.s32.totalorder %s35, %s36
    %p47 = scmp.eq.s32.totalorder %s15, 0
    %p48 = por %p46, %p47
    %p49 = scmp.ne.s32.totalorder %s35, %s36
    %p50 = scmp.eq.s32.totalorder %s16, 1
    %p51 = por %p49, %p50
    %p53 = scmp.ne.s32.totalorder %s36, %s52
    %p54 = scmp.eq.s32.totalorder %s16, 0
    %p55 = por %p53, %p54
    %s57 = sadd.s32 %s56, 1
    %p60 = scmp.eq.s32.totalorder %s10, 1
    %p61 = scmp.ne.s32.totalorder %s56, %s58
    %p62 = scmp.eq.s32.totalorder %s10, 0
    %p63 = por %p61, %p62
    %p64 = scmp.ne.s32.totalorder %s56, %s58
    %p65 = scmp.eq.s32.totalorder %s15, 1
    %p66 = por %p64, %p65
    %p67 = scmp.ne.s32.totalorder %s58, %s59
    %p68 = scmp.eq.s32.totalorder %s15, 0
    %p69 = por %p67, %p68
    %p70 = scmp.ne.s32.totalorder %s58, %s59
    %p71 = scmp.eq.s32.totalorder %s16, 1
    %p72 = por %p70, %p71
    %p74 = scmp.ne.s32.totalorder %s59, %s73
    %p75 = scmp.eq.s32.totalorder %s16, 0
    %p76 = por %p74, %p75
    %s77 = ssub.s32 %s18, %s25
    %p78 = scmp.eq.s32.totalorder %s77, 0
    %s80 = sadd.s32 %s79, 1
    %s81 = scalar_select %p78, %s79, %s80
    %p84 = pneg %p78
    %p85 = scmp.eq.s32.totalorder %s10, 1
    %p86 = por %p84, %p85
    %p87 = scmp.ne.s32.totalorder %s79, %s82
    %p88 = scmp.eq.s32.totalorder %s10, 0
    %p89 = por %p87, %p88
    %p90 = scmp.ne.s32.totalorder %s79, %s82
    %p91 = scmp.eq.s32.totalorder %s15, 1
    %p92 = por %p90, %p91
    %p93 = scmp.ne.s32.totalorder %s82, %s83
    %p94 = scmp.eq.s32.totalorder %s15, 0
    %p95 = por %p93, %p94
    %p96 = scmp.ne.s32.totalorder %s82, %s83
    %p97 = scmp.eq.s32.totalorder %s16, 1
    %p98 = por %p96, %p97
    %p100 = scmp.ne.s32.totalorder %s83, %s99
    %p101 = scmp.eq.s32.totalorder %s16, 0
    %p102 = por %p100, %p101
    %s103 = ssub.s32 %s17, %s29
    %s104 = ssub.s32 %s18, %s25
    %s105 = sor.u32 %s103, %s104
    %p106 = scmp.eq.s32.totalorder %s105, 0
    %s108 = sadd.s32 %s107, 1
    %s109 = scalar_select %p106, %s107, %s108
    %p112 = pneg %p106
    %p113 = scmp.eq.s32.totalorder %s10, 1
    %p114 = por %p112, %p113
    %p115 = scmp.ne.s32.totalorder %s107, %s110
    %p116 = scmp.eq.s32.totalorder %s10, 0
    %p117 = por %p115, %p116
    %p118 = scmp.ne.s32.totalorder %s107, %s110
    %p119 = scmp.eq.s32.totalorder %s15, 1
    %p120 = por %p118, %p119
    %p121 = scmp.ne.s32.totalorder %s110, %s111
    %p122 = scmp.eq.s32.totalorder %s15, 0
    %p123 = por %p121, %p122
    %p124 = scmp.ne.s32.totalorder %s110, %s111
    %p125 = scmp.eq.s32.totalorder %s16, 1
    %p126 = por %p124, %p125
    %p128 = scmp.ne.s32.totalorder %s111, %s127
    %p129 = scmp.eq.s32.totalorder %s16, 0
    %p130 = por %p128, %p129
    %s131 = ssub.s32 %s17, %s29
    %s132 = ssub.s32 %s18, %s25
    %s133 = sor.u32 %s131, %s132
    %p134 = scmp.eq.s32.totalorder %s133, 0
    %s136 = sadd.s32 %s135, 1
    %s137 = scalar_select %p134, %s135, %s136
    %p140 = pneg %p134
    %p141 = scmp.eq.s32.totalorder %s10, 1
    %p142 = por %p140, %p141
    %p143 = scmp.ne.s32.totalorder %s135, %s138
    %p144 = scmp.eq.s32.totalorder %s10, 0
    %p145 = por %p143, %p144
    %p146 = scmp.ne.s32.totalorder %s135, %s138
    %p147 = scmp.eq.s32.totalorder %s15, 1
    %p148 = por %p146, %p147
    %p149 = scmp.ne.s32.totalorder %s138, %s139
    %p150 = scmp.eq.s32.totalorder %s15, 0
    %p151 = por %p149, %p150
    %p152 = scmp.ne.s32.totalorder %s138, %s139
    %p153 = scmp.eq.s32.totalorder %s16, 1
    %p154 = por %p152, %p153
    %p156 = scmp.ne.s32.totalorder %s139, %s155
    %p157 = scmp.eq.s32.totalorder %s16, 0
    %p158 = por %p156, %p157
    %p159 = scmp.le.s32.totalorder 1, %s10
    %p160 = scmp.lt.s32.totalorder %s10, 3
    %p161 = pnand %p159, %p160
    %p162 = pneg %p161
    // Predicated region
    $region9: #{reformer_forward.1} parent=5 // pred_check
      _
    $region10: #{reformer_forward.1} parent=5 // pred_check_branch
      %164 = sbr.rel (%p161) target = $region12
    $region11: #{reformer_forward.1} parent=5 // pred_region
      %s165 = ssub.s32 %s10, 1
      // Predicated region
      $region13: #{reformer_forward.1} parent=11 // pred_check
        %p166 = pneg %p69
      $region14: #{reformer_forward.1} parent=11 // pred_check_branch
        %168 = sbr.rel (%p166) target = $region16
      $region15: #{reformer_forward.1} parent=11 // pred_region
        _
      $region16: #{reformer_forward.1} parent=11 // pred_fallthru
        _
      // Predicated region
      $region17: #{reformer_forward.1} parent=11 // pred_check
        %p169 = pneg %p95
      $region18: #{reformer_forward.1} parent=11 // pred_check_branch
        %171 = sbr.rel (%p169) target = $region20
      $region19: #{reformer_forward.1} parent=11 // pred_region
        %s172 = smul.u32 16, %s20
        %p173 = scmp.lt.s32.totalorder %s172, 15
        %s174 = scalar_select %p173, %s172, 15
        %s175 = smul.addr %s174, 8
        %s176 = scalar_lea.vmem %s2, %s175
        %s177 = smul.u32 16, %s20
      $region20: #{reformer_forward.1} parent=11 // pred_fallthru
        _
    $region12: #{reformer_forward.1} parent=5 // pred_fallthru
      _
    %p178 = scmp.lt.s32.totalorder %s10, 2
    // Predicated region
    $region21: #{reformer_forward.1} parent=5 // pred_check
      %p179 = pneg %p178
    $region22: #{reformer_forward.1} parent=5 // pred_check_branch
      %181 = sbr.rel (%p179) target = $region24
    $region23: #{reformer_forward.1} parent=5 // pred_region
      // Predicated region
      $region25: #{reformer_forward.1} parent=23 // pred_check
        %p182 = pneg %p42
      $region26: #{reformer_forward.1} parent=23 // pred_check_branch
        %184 = sbr.rel (%p182) target = $region28
      $region27: #{reformer_forward.1} parent=23 // pred_region
        %p185 = scmp.lt.s32.totalorder %s17, 1
        %s186 = scalar_select %p185, %s17, 1
        %s187 = smul.addr %s186, 8
        %s188 = scalar_lea.vmem %s0, %s187
      $region28: #{reformer_forward.1} parent=23 // pred_fallthru
        _
      // Predicated region
      $region29: #{reformer_forward.1} parent=23 // pred_check
        %p189 = pneg %p117
      $region30: #{reformer_forward.1} parent=23 // pred_check_branch
        %191 = sbr.rel (%p189) target = $region32
      $region31: #{reformer_forward.1} parent=23 // pred_region
        %s192 = smul.u32 256, %s18
        %p193 = scmp.lt.s32.totalorder %s17, 1
        %s194 = scalar_select %p193, %s17, 1
        %p195 = scmp.lt.s32.totalorder %s192, 255
        %s196 = scalar_select %p195, %s192, 255
        %s197 = smul.addr %s196, 2
        %s198 = smul.addr %s194, 512
        %s199 = sadd.s32 %s197, %s198
        %s200 = smul.addr %s199, 8
        %s201 = scalar_lea.vmem %s3, %s200
        %s202 = smul.u32 256, %s18
      $region32: #{reformer_forward.1} parent=23 // pred_fallthru
        _
    $region24: #{reformer_forward.1} parent=5 // pred_fallthru
      _
    %p203 = scmp.le.s32.totalorder 1, %s10
    %p204 = scmp.lt.s32.totalorder %s10, 3
    %p205 = pnand %p203, %p204
    %p206 = pneg %p205
    // Predicated region
    $region33: #{reformer_forward.1} parent=5 // pred_check
      _
    $region34: #{reformer_forward.1} parent=5 // pred_check_branch
      %208 = sbr.rel (%p205) target = $region36
    $region35: #{reformer_forward.1} parent=5 // pred_region
      %s209 = ssub.s32 %s10, 1
      %p210 = scmp.lt.s32.totalorder %s19, 1
      %s211 = scalar_select %p210, %s19, 1
      %s212 = smul.addr %s211, 8
      %s213 = scalar_lea.vmem %s0, %s212
      %p214 = pneg %p48
      %p215 = pneg %p45
      %p216 = pneg %p69
      %p217 = pneg %p66
      %s218 = smul.u32 16, %s20
      %p219 = scmp.lt.s32.totalorder %s218, 15
      %s220 = scalar_select %p219, %s218, 15
      %s221 = smul.addr %s220, 8
      %s222 = scalar_lea.vmem %s2, %s221
      %p223 = pneg %p95
      %p224 = pneg %p92
      %s225 = smul.u32 256, %s20
      %p226 = scmp.lt.s32.totalorder %s19, 1
      %s227 = scalar_select %p226, %s19, 1
      %p228 = scmp.lt.s32.totalorder %s225, 255
      %s229 = scalar_select %p228, %s225, 255
      %s230 = smul.addr %s229, 2
      %s231 = smul.addr %s227, 512
      %s232 = sadd.s32 %s230, %s231
      %s233 = smul.addr %s232, 8
      %s234 = scalar_lea.vmem %s3, %s233
      %p235 = pneg %p123
      %p236 = pneg %p120
      %p237 = pneg %p151
      %p238 = pneg %p148
      %s239 = smul.u32 256, %s20
      %p240 = scmp.lt.s32.totalorder %s19, 1
      %s241 = scalar_select %p240, %s19, 1
      %p242 = scmp.lt.s32.totalorder %s239, 255
      %s243 = scalar_select %p242, %s239, 255
      %s244 = smul.addr %s243, 2
      %s245 = smul.addr %s241, 512
      %s246 = sadd.s32 %s244, %s245
      %s247 = smul.addr %s246, 8
      %s248 = scalar_lea.vmem %s4, %s247
      %p249 = scmp.lt.s32.totalorder %s19, 1
      %s250 = scalar_select %p249, %s19, 1
      %s251 = smul.addr %s250, 8
      %s252 = scalar_lea.vmem %s0, %s251
      %s253 = smul.u32 16, %s20
      %p254 = scmp.lt.s32.totalorder %s253, 15
      %s255 = scalar_select %p254, %s253, 15
      %s256 = smul.addr %s255, 8
      %s257 = scalar_lea.vmem %s2, %s256
      %s258 = smul.u32 16, %s20
      %s259 = smul.u32 256, %s20
      %p260 = scmp.lt.s32.totalorder %s19, 1
      %s261 = scalar_select %p260, %s19, 1
      %p262 = scmp.lt.s32.totalorder %s259, 255
      %s263 = scalar_select %p262, %s259, 255
      %s264 = smul.addr %s263, 2
      %s265 = smul.addr %s261, 512
      %s266 = sadd.s32 %s264, %s265
      %s267 = smul.addr %s266, 8
      %s268 = scalar_lea.vmem %s3, %s267
      %s269 = smul.u32 256, %s20
      %s270 = smul.u32 256, %s20
      %p271 = scmp.lt.s32.totalorder %s19, 1
      %s272 = scalar_select %p271, %s19, 1
      %p273 = scmp.lt.s32.totalorder %s270, 255
      %s274 = scalar_select %p273, %s270, 255
      %s275 = smul.addr %s274, 2
      %s276 = smul.addr %s272, 512
      %s277 = sadd.s32 %s275, %s276
      %s278 = smul.addr %s277, 8
      %s279 = scalar_lea.vmem %s4, %s278
      %s280 = smul.u32 256, %s20
      %v281 = vld [vmem:[%s252] sm:$0x1f]
      %v282 = vld [vmem:[%s1] sm:$0xff]
      %v283 = vld [vmem:[%s1 + $0x8] sm:$0xff]
      %v284 = vld [vmem:[%s1 + $0x10] sm:$0xff]
      %v285 = vld [vmem:[%s1 + $0x18] sm:$0xff]
      %v286 = vld [vmem:[%s1 + $0x20] sm:$0xff]
      %v287 = vld [vmem:[%s1 + $0x28] sm:$0xff]
      %v288 = vld [vmem:[%s1 + $0x30] sm:$0xff]
      %v289 = vld [vmem:[%s1 + $0x38] sm:$0xff]
      %v290 = vld [vmem:[%s1 + $0x40] sm:$0xff]
      %v291 = vld [vmem:[%s1 + $0x48] sm:$0xff]
      %v292 = vld [vmem:[%s1 + $0x50] sm:$0xff]
      %v293 = vld [vmem:[%s1 + $0x58] sm:$0xff]
      %v294 = vld [vmem:[%s1 + $0x60] sm:$0xff]
      %v295 = vld [vmem:[%s1 + $0x68] sm:$0xff]
      %v296 = vld [vmem:[%s1 + $0x70] sm:$0xff]
      %v297 = vld [vmem:[%s1 + $0x78] sm:$0xff]
      %vm298 = vcmask 523264
      %v300 = vsel %vm298, %v281, 0
      %302 = vmatprep.subr.mxu0 0.0
      %303 = vmatpush1.msra.mxu0 0.0
      %304 = vmatprep.subr.mxu0 0.0
      %305 = vmatpush1.msra.mxu0 0.0
      %306 = vmatprep.subr.mxu0 0.0
      %307 = vmatpush1.msra.mxu0 0.0
      %308 = vmatprep.subr.mxu0 0.0
      %309 = vmatpush1.msra.mxu0 0.0
      %310 = vmatprep.subr.mxu0 0.0
      %311 = vmatpush1.msra.mxu0 0.0
      %312 = vmatprep.subr.mxu0 0.0
      %313 = vmatpush1.msra.mxu0 0.0
      %314 = vmatprep.subr.mxu0 0.0
      %315 = vmatpush1.msra.mxu0 0.0
      %316 = vmatprep.subr.mxu0 0.0
      %317 = vmatpush1.msra.mxu0 0.0
      %318 = vmatprep.subr.mxu0 %v297
      %319 = vmatpush1.msra.mxu0 %v296
      %320 = vmatprep.subr.mxu0 %v295
      %321 = vmatpush1.msra.mxu0 %v294
      %322 = vmatprep.subr.mxu0 %v293
      %323 = vmatpush1.msra.mxu0 %v292
      %324 = vmatprep.subr.mxu0 %v291
      %325 = vmatpush1.msra.mxu0 %v290
      %326 = vmatprep.subr.mxu0 %v289
      %327 = vmatpush1.msra.mxu0 %v288
      %328 = vmatprep.subr.mxu0 %v287
      %329 = vmatpush1.msra.mxu0 %v286
      %330 = vmatprep.subr.mxu0 %v285
      %331 = vmatpush1.msra.mxu0 %v284
      %332 = vmatprep.subr.mxu0 %v283
      %333 = vmatpush1.msra.mxu0 %v282
      %334 = vmatprep.subr.mxu0 0.0
      %335 = vmatpush2.msra.mxu0 0.0
      %336 = vmatprep.subr.mxu0 0.0
      %337 = vmatpush2.msra.mxu0 0.0
      %338 = vmatprep.subr.mxu0 0.0
      %339 = vmatpush2.msra.mxu0 0.0
      %340 = vmatprep.subr.mxu0 0.0
      %341 = vmatpush2.msra.mxu0 0.0
      %342 = vmatprep.subr.mxu0 0.0
      %343 = vmatpush2.msra.mxu0 0.0
      %344 = vmatprep.subr.mxu0 0.0
      %345 = vmatpush2.msra.mxu0 0.0
      %346 = vmatprep.subr.mxu0 0.0
      %347 = vmatpush2.msra.mxu0 0.0
      %348 = vmatprep.subr.mxu0 0.0
      %349 = vmatpush2.msra.mxu0 0.0
      %350 = vmatprep.subr.mxu0 0.0
      %351 = vmatpush2.msra.mxu0 0.0
      %352 = vmatprep.subr.mxu0 0.0
      %353 = vmatpush2.msra.mxu0 0.0
      %354 = vmatprep.subr.mxu0 0.0
      %355 = vmatpush2.msra.mxu0 0.0
      %356 = vmatprep.subr.mxu0 0.0
      %357 = vmatpush2.msra.mxu0 0.0
      %358 = vmatprep.subr.mxu0 0.0
      %359 = vmatpush2.msra.mxu0 0.0
      %360 = vmatprep.subr.mxu0 0.0
      %361 = vmatpush2.msra.mxu0 0.0
      %362 = vmatprep.subr.mxu0 0.0
      %363 = vmatpush2.msra.mxu0 0.0
      %364 = vmatprep.subr.mxu0 0.0
      %365 = vmatpush2.msra.mxu0 0.0
      %366 = vmatprep.mubr.f32.mxu0 0.0
      %367 = vmatmul.mubr.f32.gmra.mxu0 %v300
      %v368 = vpop.f32.mrf.mxu0
      %v369 = vadd.f32 0.0, %v368
      %v370 = vpop.f32.mrf.mxu0
      %v371 = vadd.f32 0.0, %v370
      %372 = vdwg.mxu0
      %v373 = vld [vmem:[%s257] sm:$0x1f]
      %v374 = vld [vmem:[%s257 + $0x8] sm:$0x1f]
      %v375 = vld [vmem:[%s257 + $0x10] sm:$0x1f]
      %v376 = vld [vmem:[%s257 + $0x18] sm:$0x1f]
      %v377 = vld [vmem:[%s257 + $0x20] sm:$0x1f]
      %v378 = vld [vmem:[%s257 + $0x28] sm:$0x1f]
      %v379 = vld [vmem:[%s257 + $0x30] sm:$0x1f]
      %v380 = vld [vmem:[%s257 + $0x38] sm:$0x1f]
      %v381 = vld [vmem:[%s257 + $0x40] sm:$0x1f]
      %v382 = vld [vmem:[%s257 + $0x48] sm:$0x1f]
      %v383 = vld [vmem:[%s257 + $0x50] sm:$0x1f]
      %v384 = vld [vmem:[%s257 + $0x58] sm:$0x1f]
      %v385 = vld [vmem:[%s257 + $0x60] sm:$0x1f]
      %v386 = vld [vmem:[%s257 + $0x68] sm:$0x1f]
      %v387 = vld [vmem:[%s257 + $0x70] sm:$0x1f]
      %v388 = vld [vmem:[%s257 + $0x78] sm:$0x1f]
      %v389 = vld [vmem:[%s268] sm:$0xff]
      %v390 = vld [vmem:[%s268 + $0x8] sm:$0xff]
      %v391 = vld [vmem:[%s268 + $0x10] sm:$0xff]
      %v392 = vld [vmem:[%s268 + $0x18] sm:$0xff]
      %v393 = vld [vmem:[%s268 + $0x20] sm:$0xff]
      %v394 = vld [vmem:[%s268 + $0x28] sm:$0xff]
      %v395 = vld [vmem:[%s268 + $0x30] sm:$0xff]
      %v396 = vld [vmem:[%s268 + $0x38] sm:$0xff]
      %v397 = vld [vmem:[%s268 + $0x40] sm:$0xff]
      %v398 = vld [vmem:[%s268 + $0x48] sm:$0xff]
      %v399 = vld [vmem:[%s268 + $0x50] sm:$0xff]
      %v400 = vld [vmem:[%s268 + $0x58] sm:$0xff]
      %v401 = vld [vmem:[%s268 + $0x60] sm:$0xff]
      %v402 = vld [vmem:[%s268 + $0x68] sm:$0xff]
      %v403 = vld [vmem:[%s268 + $0x70] sm:$0xff]
      %v404 = vld [vmem:[%s268 + $0x78] sm:$0xff]
      %v405 = vld [vmem:[%s268 + $0x80] sm:$0xff]
      %v406 = vld [vmem:[%s268 + $0x88] sm:$0xff]
      %v407 = vld [vmem:[%s268 + $0x90] sm:$0xff]
      %v408 = vld [vmem:[%s268 + $0x98] sm:$0xff]
      %v409 = vld [vmem:[%s268 + $0xa0] sm:$0xff]
      %v410 = vld [vmem:[%s268 + $0xa8] sm:$0xff]
      %v411 = vld [vmem:[%s268 + $0xb0] sm:$0xff]
      %v412 = vld [vmem:[%s268 + $0xb8] sm:$0xff]
      %v413 = vld [vmem:[%s268 + $0xc0] sm:$0xff]
      %v414 = vld [vmem:[%s268 + $0xc8] sm:$0xff]
      %v415 = vld [vmem:[%s268 + $0xd0] sm:$0xff]
      %v416 = vld [vmem:[%s268 + $0xd8] sm:$0xff]
      %v417 = vld [vmem:[%s268 + $0xe0] sm:$0xff]
      %v418 = vld [vmem:[%s268 + $0xe8] sm:$0xff]
      %v419 = vld [vmem:[%s268 + $0xf0] sm:$0xff]
      %v420 = vld [vmem:[%s268 + $0xf8] sm:$0xff]
      %v421 = vld [vmem:[%s268 + $0x100] sm:$0xff]
      %v422 = vld [vmem:[%s268 + $0x108] sm:$0xff]
      %v423 = vld [vmem:[%s268 + $0x110] sm:$0xff]
      %v424 = vld [vmem:[%s268 + $0x118] sm:$0xff]
      %v425 = vld [vmem:[%s268 + $0x120] sm:$0xff]
      %v426 = vld [vmem:[%s268 + $0x128] sm:$0xff]
      %v427 = vld [vmem:[%s268 + $0x130] sm:$0xff]
      %v428 = vld [vmem:[%s268 + $0x138] sm:$0xff]
      %v429 = vld [vmem:[%s268 + $0x140] sm:$0xff]
      %v430 = vld [vmem:[%s268 + $0x148] sm:$0xff]
      %v431 = vld [vmem:[%s268 + $0x150] sm:$0xff]
      %v432 = vld [vmem:[%s268 + $0x158] sm:$0xff]
      %v433 = vld [vmem:[%s268 + $0x160] sm:$0xff]
      %v434 = vld [vmem:[%s268 + $0x168] sm:$0xff]
      %v435 = vld [vmem:[%s268 + $0x170] sm:$0xff]
      %v436 = vld [vmem:[%s268 + $0x178] sm:$0xff]
      %v437 = vld [vmem:[%s268 + $0x180] sm:$0xff]
      %v438 = vld [vmem:[%s268 + $0x188] sm:$0xff]
      %v439 = vld [vmem:[%s268 + $0x190] sm:$0xff]
      %v440 = vld [vmem:[%s268 + $0x198] sm:$0xff]
      %v441 = vld [vmem:[%s268 + $0x1a0] sm:$0xff]
      %v442 = vld [vmem:[%s268 + $0x1a8] sm:$0xff]
      %v443 = vld [vmem:[%s268 + $0x1b0] sm:$0xff]
      %v444 = vld [vmem:[%s268 + $0x1b8] sm:$0xff]
      %v445 = vld [vmem:[%s268 + $0x1c0] sm:$0xff]
      %v446 = vld [vmem:[%s268 + $0x1c8] sm:$0xff]
      %v447 = vld [vmem:[%s268 + $0x1d0] sm:$0xff]
      %v448 = vld [vmem:[%s268 + $0x1d8] sm:$0xff]
      %v449 = vld [vmem:[%s268 + $0x1e0] sm:$0xff]
      %v450 = vld [vmem:[%s268 + $0x1e8] sm:$0xff]
      %v451 = vld [vmem:[%s268 + $0x1f0] sm:$0xff]
      %v452 = vld [vmem:[%s268 + $0x1f8] sm:$0xff]
      %v453 = vld [vmem:[%s268 + $0x200] sm:$0xff]
      %v454 = vld [vmem:[%s268 + $0x208] sm:$0xff]
      %v455 = vld [vmem:[%s268 + $0x210] sm:$0xff]
      %v456 = vld [vmem:[%s268 + $0x218] sm:$0xff]
      %v457 = vld [vmem:[%s268 + $0x220] sm:$0xff]
      %v458 = vld [vmem:[%s268 + $0x228] sm:$0xff]
      %v459 = vld [vmem:[%s268 + $0x230] sm:$0xff]
      %v460 = vld [vmem:[%s268 + $0x238] sm:$0xff]
      %v461 = vld [vmem:[%s268 + $0x240] sm:$0xff]
      %v462 = vld [vmem:[%s268 + $0x248] sm:$0xff]
      %v463 = vld [vmem:[%s268 + $0x250] sm:$0xff]
      %v464 = vld [vmem:[%s268 + $0x258] sm:$0xff]
      %v465 = vld [vmem:[%s268 + $0x260] sm:$0xff]
      %v466 = vld [vmem:[%s268 + $0x268] sm:$0xff]
      %v467 = vld [vmem:[%s268 + $0x270] sm:$0xff]
      %v468 = vld [vmem:[%s268 + $0x278] sm:$0xff]
      %v469 = vld [vmem:[%s268 + $0x280] sm:$0xff]
      %v470 = vld [vmem:[%s268 + $0x288] sm:$0xff]
      %v471 = vld [vmem:[%s268 + $0x290] sm:$0xff]
      %v472 = vld [vmem:[%s268 + $0x298] sm:$0xff]
      %v473 = vld [vmem:[%s268 + $0x2a0] sm:$0xff]
      %v474 = vld [vmem:[%s268 + $0x2a8] sm:$0xff]
      %v475 = vld [vmem:[%s268 + $0x2b0] sm:$0xff]
      %v476 = vld [vmem:[%s268 + $0x2b8] sm:$0xff]
      %v477 = vld [vmem:[%s268 + $0x2c0] sm:$0xff]
      %v478 = vld [vmem:[%s268 + $0x2c8] sm:$0xff]
      %v479 = vld [vmem:[%s268 + $0x2d0] sm:$0xff]
      %v480 = vld [vmem:[%s268 + $0x2d8] sm:$0xff]
      %v481 = vld [vmem:[%s268 + $0x2e0] sm:$0xff]
      %v482 = vld [vmem:[%s268 + $0x2e8] sm:$0xff]
      %v483 = vld [vmem:[%s268 + $0x2f0] sm:$0xff]
      %v484 = vld [vmem:[%s268 + $0x2f8] sm:$0xff]
      %v485 = vld [vmem:[%s268 + $0x300] sm:$0xff]
      %v486 = vld [vmem:[%s268 + $0x308] sm:$0xff]
      %v487 = vld [vmem:[%s268 + $0x310] sm:$0xff]
      %v488 = vld [vmem:[%s268 + $0x318] sm:$0xff]
      %v489 = vld [vmem:[%s268 + $0x320] sm:$0xff]
      %v490 = vld [vmem:[%s268 + $0x328] sm:$0xff]
      %v491 = vld [vmem:[%s268 + $0x330] sm:$0xff]
      %v492 = vld [vmem:[%s268 + $0x338] sm:$0xff]
      %v493 = vld [vmem:[%s268 + $0x340] sm:$0xff]
      %v494 = vld [vmem:[%s268 + $0x348] sm:$0xff]
      %v495 = vld [vmem:[%s268 + $0x350] sm:$0xff]
      %v496 = vld [vmem:[%s268 + $0x358] sm:$0xff]
      %v497 = vld [vmem:[%s268 + $0x360] sm:$0xff]
      %v498 = vld [vmem:[%s268 + $0x368] sm:$0xff]
      %v499 = vld [vmem:[%s268 + $0x370] sm:$0xff]
      %v500 = vld [vmem:[%s268 + $0x378] sm:$0xff]
      %v501 = vld [vmem:[%s268 + $0x380] sm:$0xff]
      %v502 = vld [vmem:[%s268 + $0x388] sm:$0xff]
      %v503 = vld [vmem:[%s268 + $0x390] sm:$0xff]
      %v504 = vld [vmem:[%s268 + $0x398] sm:$0xff]
      %v505 = vld [vmem:[%s268 + $0x3a0] sm:$0xff]
      %v506 = vld [vmem:[%s268 + $0x3a8] sm:$0xff]
      %v507 = vld [vmem:[%s268 + $0x3b0] sm:$0xff]
      %v508 = vld [vmem:[%s268 + $0x3b8] sm:$0xff]
      %v509 = vld [vmem:[%s268 + $0x3c0] sm:$0xff]
      %v510 = vld [vmem:[%s268 + $0x3c8] sm:$0xff]
      %v511 = vld [vmem:[%s268 + $0x3d0] sm:$0xff]
      %v512 = vld [vmem:[%s268 + $0x3d8] sm:$0xff]
      %v513 = vld [vmem:[%s268 + $0x3e0] sm:$0xff]
      %v514 = vld [vmem:[%s268 + $0x3e8] sm:$0xff]
      %v515 = vld [vmem:[%s268 + $0x3f0] sm:$0xff]
      %v516 = vld [vmem:[%s268 + $0x3f8] sm:$0xff]
      %v517 = vld [vmem:[%s268 + $0x400] sm:$0xff]
      %v518 = vld [vmem:[%s268 + $0x408] sm:$0xff]
      %v519 = vld [vmem:[%s268 + $0x410] sm:$0xff]
      %v520 = vld [vmem:[%s268 + $0x418] sm:$0xff]
      %v521 = vld [vmem:[%s268 + $0x420] sm:$0xff]
      %v522 = vld [vmem:[%s268 + $0x428] sm:$0xff]
      %v523 = vld [vmem:[%s268 + $0x430] sm:$0xff]
      %v524 = vld [vmem:[%s268 + $0x438] sm:$0xff]
      %v525 = vld [vmem:[%s268 + $0x440] sm:$0xff]
      %v526 = vld [vmem:[%s268 + $0x448] sm:$0xff]
      %v527 = vld [vmem:[%s268 + $0x450] sm:$0xff]
      %v528 = vld [vmem:[%s268 + $0x458] sm:$0xff]
      %v529 = vld [vmem:[%s268 + $0x460] sm:$0xff]
      %v530 = vld [vmem:[%s268 + $0x468] sm:$0xff]
      %v531 = vld [vmem:[%s268 + $0x470] sm:$0xff]
      %v532 = vld [vmem:[%s268 + $0x478] sm:$0xff]
      %v533 = vld [vmem:[%s268 + $0x480] sm:$0xff]
      %v534 = vld [vmem:[%s268 + $0x488] sm:$0xff]
      %v535 = vld [vmem:[%s268 + $0x490] sm:$0xff]
      %v536 = vld [vmem:[%s268 + $0x498] sm:$0xff]
      %v537 = vld [vmem:[%s268 + $0x4a0] sm:$0xff]
      %v538 = vld [vmem:[%s268 + $0x4a8] sm:$0xff]
      %v539 = vld [vmem:[%s268 + $0x4b0] sm:$0xff]
      %v540 = vld [vmem:[%s268 + $0x4b8] sm:$0xff]
      %v541 = vld [vmem:[%s268 + $0x4c0] sm:$0xff]
      %v542 = vld [vmem:[%s268 + $0x4c8] sm:$0xff]
      %v543 = vld [vmem:[%s268 + $0x4d0] sm:$0xff]
      %v544 = vld [vmem:[%s268 + $0x4d8] sm:$0xff]
      %v545 = vld [vmem:[%s268 + $0x4e0] sm:$0xff]
      %v546 = vld [vmem:[%s268 + $0x4e8] sm:$0xff]
      %v547 = vld [vmem:[%s268 + $0x4f0] sm:$0xff]
      %v548 = vld [vmem:[%s268 + $0x4f8] sm:$0xff]
      %v549 = vld [vmem:[%s268 + $0x500] sm:$0xff]
      %v550 = vld [vmem:[%s268 + $0x508] sm:$0xff]
      %v551 = vld [vmem:[%s268 + $0x510] sm:$0xff]
      %v552 = vld [vmem:[%s268 + $0x518] sm:$0xff]
      %v553 = vld [vmem:[%s268 + $0x520] sm:$0xff]
      %v554 = vld [vmem:[%s268 + $0x528] sm:$0xff]
      %v555 = vld [vmem:[%s268 + $0x530] sm:$0xff]
      %v556 = vld [vmem:[%s268 + $0x538] sm:$0xff]
      %v557 = vld [vmem:[%s268 + $0x540] sm:$0xff]
      %v558 = vld [vmem:[%s268 + $0x548] sm:$0xff]
      %v559 = vld [vmem:[%s268 + $0x550] sm:$0xff]
      %v560 = vld [vmem:[%s268 + $0x558] sm:$0xff]
      %v561 = vld [vmem:[%s268 + $0x560] sm:$0xff]
      %v562 = vld [vmem:[%s268 + $0x568] sm:$0xff]
      %v563 = vld [vmem:[%s268 + $0x570] sm:$0xff]
      %v564 = vld [vmem:[%s268 + $0x578] sm:$0xff]
      %v565 = vld [vmem:[%s268 + $0x580] sm:$0xff]
      %v566 = vld [vmem:[%s268 + $0x588] sm:$0xff]
      %v567 = vld [vmem:[%s268 + $0x590] sm:$0xff]
      %v568 = vld [vmem:[%s268 + $0x598] sm:$0xff]
      %v569 = vld [vmem:[%s268 + $0x5a0] sm:$0xff]
      %v570 = vld [vmem:[%s268 + $0x5a8] sm:$0xff]
      %v571 = vld [vmem:[%s268 + $0x5b0] sm:$0xff]
      %v572 = vld [vmem:[%s268 + $0x5b8] sm:$0xff]
      %v573 = vld [vmem:[%s268 + $0x5c0] sm:$0xff]
      %v574 = vld [vmem:[%s268 + $0x5c8] sm:$0xff]
      %v575 = vld [vmem:[%s268 + $0x5d0] sm:$0xff]
      %v576 = vld [vmem:[%s268 + $0x5d8] sm:$0xff]
      %v577 = vld [vmem:[%s268 + $0x5e0] sm:$0xff]
      %v578 = vld [vmem:[%s268 + $0x5e8] sm:$0xff]
      %v579 = vld [vmem:[%s268 + $0x5f0] sm:$0xff]
      %v580 = vld [vmem:[%s268 + $0x5f8] sm:$0xff]
      %v581 = vld [vmem:[%s268 + $0x600] sm:$0xff]
      %v582 = vld [vmem:[%s268 + $0x608] sm:$0xff]
      %v583 = vld [vmem:[%s268 + $0x610] sm:$0xff]
      %v584 = vld [vmem:[%s268 + $0x618] sm:$0xff]
      %v585 = vld [vmem:[%s268 + $0x620] sm:$0xff]
      %v586 = vld [vmem:[%s268 + $0x628] sm:$0xff]
      %v587 = vld [vmem:[%s268 + $0x630] sm:$0xff]
      %v588 = vld [vmem:[%s268 + $0x638] sm:$0xff]
      %v589 = vld [vmem:[%s268 + $0x640] sm:$0xff]
      %v590 = vld [vmem:[%s268 + $0x648] sm:$0xff]
      %v591 = vld [vmem:[%s268 + $0x650] sm:$0xff]
      %v592 = vld [vmem:[%s268 + $0x658] sm:$0xff]
      %v593 = vld [vmem:[%s268 + $0x660] sm:$0xff]
      %v594 = vld [vmem:[%s268 + $0x668] sm:$0xff]
      %v595 = vld [vmem:[%s268 + $0x670] sm:$0xff]
      %v596 = vld [vmem:[%s268 + $0x678] sm:$0xff]
      %v597 = vld [vmem:[%s268 + $0x680] sm:$0xff]
      %v598 = vld [vmem:[%s268 + $0x688] sm:$0xff]
      %v599 = vld [vmem:[%s268 + $0x690] sm:$0xff]
      %v600 = vld [vmem:[%s268 + $0x698] sm:$0xff]
      %v601 = vld [vmem:[%s268 + $0x6a0] sm:$0xff]
      %v602 = vld [vmem:[%s268 + $0x6a8] sm:$0xff]
      %v603 = vld [vmem:[%s268 + $0x6b0] sm:$0xff]
      %v604 = vld [vmem:[%s268 + $0x6b8] sm:$0xff]
      %v605 = vld [vmem:[%s268 + $0x6c0] sm:$0xff]
      %v606 = vld [vmem:[%s268 + $0x6c8] sm:$0xff]
      %v607 = vld [vmem:[%s268 + $0x6d0] sm:$0xff]
      %v608 = vld [vmem:[%s268 + $0x6d8] sm:$0xff]
      %v609 = vld [vmem:[%s268 + $0x6e0] sm:$0xff]
      %v610 = vld [vmem:[%s268 + $0x6e8] sm:$0xff]
      %v611 = vld [vmem:[%s268 + $0x6f0] sm:$0xff]
      %v612 = vld [vmem:[%s268 + $0x6f8] sm:$0xff]
      %v613 = vld [vmem:[%s268 + $0x700] sm:$0xff]
      %v614 = vld [vmem:[%s268 + $0x708] sm:$0xff]
      %v615 = vld [vmem:[%s268 + $0x710] sm:$0xff]
      %v616 = vld [vmem:[%s268 + $0x718] sm:$0xff]
      %v617 = vld [vmem:[%s268 + $0x720] sm:$0xff]
      %v618 = vld [vmem:[%s268 + $0x728] sm:$0xff]
      %v619 = vld [vmem:[%s268 + $0x730] sm:$0xff]
      %v620 = vld [vmem:[%s268 + $0x738] sm:$0xff]
      %v621 = vld [vmem:[%s268 + $0x740] sm:$0xff]
      %v622 = vld [vmem:[%s268 + $0x748] sm:$0xff]
      %v623 = vld [vmem:[%s268 + $0x750] sm:$0xff]
      %v624 = vld [vmem:[%s268 + $0x758] sm:$0xff]
      %v625 = vld [vmem:[%s268 + $0x760] sm:$0xff]
      %v626 = vld [vmem:[%s268 + $0x768] sm:$0xff]
      %v627 = vld [vmem:[%s268 + $0x770] sm:$0xff]
      %v628 = vld [vmem:[%s268 + $0x778] sm:$0xff]
      %v629 = vld [vmem:[%s268 + $0x780] sm:$0xff]
      %v630 = vld [vmem:[%s268 + $0x788] sm:$0xff]
      %v631 = vld [vmem:[%s268 + $0x790] sm:$0xff]
      %v632 = vld [vmem:[%s268 + $0x798] sm:$0xff]
      %v633 = vld [vmem:[%s268 + $0x7a0] sm:$0xff]
      %v634 = vld [vmem:[%s268 + $0x7a8] sm:$0xff]
      %v635 = vld [vmem:[%s268 + $0x7b0] sm:$0xff]
      %v636 = vld [vmem:[%s268 + $0x7b8] sm:$0xff]
      %v637 = vld [vmem:[%s268 + $0x7c0] sm:$0xff]
      %v638 = vld [vmem:[%s268 + $0x7c8] sm:$0xff]
      %v639 = vld [vmem:[%s268 + $0x7d0] sm:$0xff]
      %v640 = vld [vmem:[%s268 + $0x7d8] sm:$0xff]
      %v641 = vld [vmem:[%s268 + $0x7e0] sm:$0xff]
      %v642 = vld [vmem:[%s268 + $0x7e8] sm:$0xff]
      %v643 = vld [vmem:[%s268 + $0x7f0] sm:$0xff]
      %v644 = vld [vmem:[%s268 + $0x7f8] sm:$0xff]
      %v645 = vld [vmem:[%s268 + $0x800] sm:$0xff]
      %v646 = vld [vmem:[%s268 + $0x808] sm:$0xff]
      %v647 = vld [vmem:[%s268 + $0x810] sm:$0xff]
      %v648 = vld [vmem:[%s268 + $0x818] sm:$0xff]
      %v649 = vld [vmem:[%s268 + $0x820] sm:$0xff]
      %v650 = vld [vmem:[%s268 + $0x828] sm:$0xff]
      %v651 = vld [vmem:[%s268 + $0x830] sm:$0xff]
      %v652 = vld [vmem:[%s268 + $0x838] sm:$0xff]
      %v653 = vld [vmem:[%s268 + $0x840] sm:$0xff]
      %v654 = vld [vmem:[%s268 + $0x848] sm:$0xff]
      %v655 = vld [vmem:[%s268 + $0x850] sm:$0xff]
      %v656 = vld [vmem:[%s268 + $0x858] sm:$0xff]
      %v657 = vld [vmem:[%s268 + $0x860] sm:$0xff]
      %v658 = vld [vmem:[%s268 + $0x868] sm:$0xff]
      %v659 = vld [vmem:[%s268 + $0x870] sm:$0xff]
      %v660 = vld [vmem:[%s268 + $0x878] sm:$0xff]
      %v661 = vld [vmem:[%s268 + $0x880] sm:$0xff]
      %v662 = vld [vmem:[%s268 + $0x888] sm:$0xff]
      %v663 = vld [vmem:[%s268 + $0x890] sm:$0xff]
      %v664 = vld [vmem:[%s268 + $0x898] sm:$0xff]
      %v665 = vld [vmem:[%s268 + $0x8a0] sm:$0xff]
      %v666 = vld [vmem:[%s268 + $0x8a8] sm:$0xff]
      %v667 = vld [vmem:[%s268 + $0x8b0] sm:$0xff]
      %v668 = vld [vmem:[%s268 + $0x8b8] sm:$0xff]
      %v669 = vld [vmem:[%s268 + $0x8c0] sm:$0xff]
      %v670 = vld [vmem:[%s268 + $0x8c8] sm:$0xff]
      %v671 = vld [vmem:[%s268 + $0x8d0] sm:$0xff]
      %v672 = vld [vmem:[%s268 + $0x8d8] sm:$0xff]
      %v673 = vld [vmem:[%s268 + $0x8e0] sm:$0xff]
      %v674 = vld [vmem:[%s268 + $0x8e8] sm:$0xff]
      %v675 = vld [vmem:[%s268 + $0x8f0] sm:$0xff]
      %v676 = vld [vmem:[%s268 + $0x8f8] sm:$0xff]
      %v677 = vld [vmem:[%s268 + $0x900] sm:$0xff]
      %v678 = vld [vmem:[%s268 + $0x908] sm:$0xff]
      %v679 = vld [vmem:[%s268 + $0x910] sm:$0xff]
      %v680 = vld [vmem:[%s268 + $0x918] sm:$0xff]
      %v681 = vld [vmem:[%s268 + $0x920] sm:$0xff]
      %v682 = vld [vmem:[%s268 + $0x928] sm:$0xff]
      %v683 = vld [vmem:[%s268 + $0x930] sm:$0xff]
      %v684 = vld [vmem:[%s268 + $0x938] sm:$0xff]
      %v685 = vld [vmem:[%s268 + $0x940] sm:$0xff]
      %v686 = vld [vmem:[%s268 + $0x948] sm:$0xff]
      %v687 = vld [vmem:[%s268 + $0x950] sm:$0xff]
      %v688 = vld [vmem:[%s268 + $0x958] sm:$0xff]
      %v689 = vld [vmem:[%s268 + $0x960] sm:$0xff]
      %v690 = vld [vmem:[%s268 + $0x968] sm:$0xff]
      %v691 = vld [vmem:[%s268 + $0x970] sm:$0xff]
      %v692 = vld [vmem:[%s268 + $0x978] sm:$0xff]
      %v693 = vld [vmem:[%s268 + $0x980] sm:$0xff]
      %v694 = vld [vmem:[%s268 + $0x988] sm:$0xff]
      %v695 = vld [vmem:[%s268 + $0x990] sm:$0xff]
      %v696 = vld [vmem:[%s268 + $0x998] sm:$0xff]
      %v697 = vld [vmem:[%s268 + $0x9a0] sm:$0xff]
      %v698 = vld [vmem:[%s268 + $0x9a8] sm:$0xff]
      %v699 = vld [vmem:[%s268 + $0x9b0] sm:$0xff]
      %v700 = vld [vmem:[%s268 + $0x9b8] sm:$0xff]
      %v701 = vld [vmem:[%s268 + $0x9c0] sm:$0xff]
      %v702 = vld [vmem:[%s268 + $0x9c8] sm:$0xff]
      %v703 = vld [vmem:[%s268 + $0x9d0] sm:$0xff]
      %v704 = vld [vmem:[%s268 + $0x9d8] sm:$0xff]
      %v705 = vld [vmem:[%s268 + $0x9e0] sm:$0xff]
      %v706 = vld [vmem:[%s268 + $0x9e8] sm:$0xff]
      %v707 = vld [vmem:[%s268 + $0x9f0] sm:$0xff]
      %v708 = vld [vmem:[%s268 + $0x9f8] sm:$0xff]
      %v709 = vld [vmem:[%s268 + $0xa00] sm:$0xff]
      %v710 = vld [vmem:[%s268 + $0xa08] sm:$0xff]
      %v711 = vld [vmem:[%s268 + $0xa10] sm:$0xff]
      %v712 = vld [vmem:[%s268 + $0xa18] sm:$0xff]
      %v713 = vld [vmem:[%s268 + $0xa20] sm:$0xff]
      %v714 = vld [vmem:[%s268 + $0xa28] sm:$0xff]
      %v715 = vld [vmem:[%s268 + $0xa30] sm:$0xff]
      %v716 = vld [vmem:[%s268 + $0xa38] sm:$0xff]
      %v717 = vld [vmem:[%s268 + $0xa40] sm:$0xff]
      %v718 = vld [vmem:[%s268 + $0xa48] sm:$0xff]
      %v719 = vld [vmem:[%s268 + $0xa50] sm:$0xff]
      %v720 = vld [vmem:[%s268 + $0xa58] sm:$0xff]
      %v721 = vld [vmem:[%s268 + $0xa60] sm:$0xff]
      %v722 = vld [vmem:[%s268 + $0xa68] sm:$0xff]
      %v723 = vld [vmem:[%s268 + $0xa70] sm:$0xff]
      %v724 = vld [vmem:[%s268 + $0xa78] sm:$0xff]
      %v725 = vld [vmem:[%s268 + $0xa80] sm:$0xff]
      %v726 = vld [vmem:[%s268 + $0xa88] sm:$0xff]
      %v727 = vld [vmem:[%s268 + $0xa90] sm:$0xff]
      %v728 = vld [vmem:[%s268 + $0xa98] sm:$0xff]
      %v729 = vld [vmem:[%s268 + $0xaa0] sm:$0xff]
      %v730 = vld [vmem:[%s268 + $0xaa8] sm:$0xff]
      %v731 = vld [vmem:[%s268 + $0xab0] sm:$0xff]
      %v732 = vld [vmem:[%s268 + $0xab8] sm:$0xff]
      %v733 = vld [vmem:[%s268 + $0xac0] sm:$0xff]
      %v734 = vld [vmem:[%s268 + $0xac8] sm:$0xff]
      %v735 = vld [vmem:[%s268 + $0xad0] sm:$0xff]
      %v736 = vld [vmem:[%s268 + $0xad8] sm:$0xff]
      %v737 = vld [vmem:[%s268 + $0xae0] sm:$0xff]
      %v738 = vld [vmem:[%s268 + $0xae8] sm:$0xff]
      %v739 = vld [vmem:[%s268 + $0xaf0] sm:$0xff]
      %v740 = vld [vmem:[%s268 + $0xaf8] sm:$0xff]
      %v741 = vld [vmem:[%s268 + $0xb00] sm:$0xff]
      %v742 = vld [vmem:[%s268 + $0xb08] sm:$0xff]
      %v743 = vld [vmem:[%s268 + $0xb10] sm:$0xff]
      %v744 = vld [vmem:[%s268 + $0xb18] sm:$0xff]
      %v745 = vld [vmem:[%s268 + $0xb20] sm:$0xff]
      %v746 = vld [vmem:[%s268 + $0xb28] sm:$0xff]
      %v747 = vld [vmem:[%s268 + $0xb30] sm:$0xff]
      %v748 = vld [vmem:[%s268 + $0xb38] sm:$0xff]
      %v749 = vld [vmem:[%s268 + $0xb40] sm:$0xff]
      %v750 = vld [vmem:[%s268 + $0xb48] sm:$0xff]
      %v751 = vld [vmem:[%s268 + $0xb50] sm:$0xff]
      %v752 = vld [vmem:[%s268 + $0xb58] sm:$0xff]
      %v753 = vld [vmem:[%s268 + $0xb60] sm:$0xff]
      %v754 = vld [vmem:[%s268 + $0xb68] sm:$0xff]
      %v755 = vld [vmem:[%s268 + $0xb70] sm:$0xff]
      %v756 = vld [vmem:[%s268 + $0xb78] sm:$0xff]
      %v757 = vld [vmem:[%s268 + $0xb80] sm:$0xff]
      %v758 = vld [vmem:[%s268 + $0xb88] sm:$0xff]
      %v759 = vld [vmem:[%s268 + $0xb90] sm:$0xff]
      %v760 = vld [vmem:[%s268 + $0xb98] sm:$0xff]
      %v761 = vld [vmem:[%s268 + $0xba0] sm:$0xff]
      %v762 = vld [vmem:[%s268 + $0xba8] sm:$0xff]
      %v763 = vld [vmem:[%s268 + $0xbb0] sm:$0xff]
      %v764 = vld [vmem:[%s268 + $0xbb8] sm:$0xff]
      %v765 = vld [vmem:[%s268 + $0xbc0] sm:$0xff]
      %v766 = vld [vmem:[%s268 + $0xbc8] sm:$0xff]
      %v767 = vld [vmem:[%s268 + $0xbd0] sm:$0xff]
      %v768 = vld [vmem:[%s268 + $0xbd8] sm:$0xff]
      %v769 = vld [vmem:[%s268 + $0xbe0] sm:$0xff]
      %v770 = vld [vmem:[%s268 + $0xbe8] sm:$0xff]
      %v771 = vld [vmem:[%s268 + $0xbf0] sm:$0xff]
      %v772 = vld [vmem:[%s268 + $0xbf8] sm:$0xff]
      %v773 = vld [vmem:[%s268 + $0xc00] sm:$0xff]
      %v774 = vld [vmem:[%s268 + $0xc08] sm:$0xff]
      %v775 = vld [vmem:[%s268 + $0xc10] sm:$0xff]
      %v776 = vld [vmem:[%s268 + $0xc18] sm:$0xff]
      %v777 = vld [vmem:[%s268 + $0xc20] sm:$0xff]
      %v778 = vld [vmem:[%s268 + $0xc28] sm:$0xff]
      %v779 = vld [vmem:[%s268 + $0xc30] sm:$0xff]
      %v780 = vld [vmem:[%s268 + $0xc38] sm:$0xff]
      %v781 = vld [vmem:[%s268 + $0xc40] sm:$0xff]
      %v782 = vld [vmem:[%s268 + $0xc48] sm:$0xff]
      %v783 = vld [vmem:[%s268 + $0xc50] sm:$0xff]
      %v784 = vld [vmem:[%s268 + $0xc58] sm:$0xff]
      %v785 = vld [vmem:[%s268 + $0xc60] sm:$0xff]
      %v786 = vld [vmem:[%s268 + $0xc68] sm:$0xff]
      %v787 = vld [vmem:[%s268 + $0xc70] sm:$0xff]
      %v788 = vld [vmem:[%s268 + $0xc78] sm:$0xff]
      %v789 = vld [vmem:[%s268 + $0xc80] sm:$0xff]
      %v790 = vld [vmem:[%s268 + $0xc88] sm:$0xff]
      %v791 = vld [vmem:[%s268 + $0xc90] sm:$0xff]
      %v792 = vld [vmem:[%s268 + $0xc98] sm:$0xff]
      %v793 = vld [vmem:[%s268 + $0xca0] sm:$0xff]
      %v794 = vld [vmem:[%s268 + $0xca8] sm:$0xff]
      %v795 = vld [vmem:[%s268 + $0xcb0] sm:$0xff]
      %v796 = vld [vmem:[%s268 + $0xcb8] sm:$0xff]
      %v797 = vld [vmem:[%s268 + $0xcc0] sm:$0xff]
      %v798 = vld [vmem:[%s268 + $0xcc8] sm:$0xff]
      %v799 = vld [vmem:[%s268 + $0xcd0] sm:$0xff]
      %v800 = vld [vmem:[%s268 + $0xcd8] sm:$0xff]
      %v801 = vld [vmem:[%s268 + $0xce0] sm:$0xff]
      %v802 = vld [vmem:[%s268 + $0xce8] sm:$0xff]
      %v803 = vld [vmem:[%s268 + $0xcf0] sm:$0xff]
      %v804 = vld [vmem:[%s268 + $0xcf8] sm:$0xff]
      %v805 = vld [vmem:[%s268 + $0xd00] sm:$0xff]
      %v806 = vld [vmem:[%s268 + $0xd08] sm:$0xff]
      %v807 = vld [vmem:[%s268 + $0xd10] sm:$0xff]
      %v808 = vld [vmem:[%s268 + $0xd18] sm:$0xff]
      %v809 = vld [vmem:[%s268 + $0xd20] sm:$0xff]
      %v810 = vld [vmem:[%s268 + $0xd28] sm:$0xff]
      %v811 = vld [vmem:[%s268 + $0xd30] sm:$0xff]
      %v812 = vld [vmem:[%s268 + $0xd38] sm:$0xff]
      %v813 = vld [vmem:[%s268 + $0xd40] sm:$0xff]
      %v814 = vld [vmem:[%s268 + $0xd48] sm:$0xff]
      %v815 = vld [vmem:[%s268 + $0xd50] sm:$0xff]
      %v816 = vld [vmem:[%s268 + $0xd58] sm:$0xff]
      %v817 = vld [vmem:[%s268 + $0xd60] sm:$0xff]
      %v818 = vld [vmem:[%s268 + $0xd68] sm:$0xff]
      %v819 = vld [vmem:[%s268 + $0xd70] sm:$0xff]
      %v820 = vld [vmem:[%s268 + $0xd78] sm:$0xff]
      %v821 = vld [vmem:[%s268 + $0xd80] sm:$0xff]
      %v822 = vld [vmem:[%s268 + $0xd88] sm:$0xff]
      %v823 = vld [vmem:[%s268 + $0xd90] sm:$0xff]
      %v824 = vld [vmem:[%s268 + $0xd98] sm:$0xff]
      %v825 = vld [vmem:[%s268 + $0xda0] sm:$0xff]
      %v826 = vld [vmem:[%s268 + $0xda8] sm:$0xff]
      %v827 = vld [vmem:[%s268 + $0xdb0] sm:$0xff]
      %v828 = vld [vmem:[%s268 + $0xdb8] sm:$0xff]
      %v829 = vld [vmem:[%s268 + $0xdc0] sm:$0xff]
      %v830 = vld [vmem:[%s268 + $0xdc8] sm:$0xff]
      %v831 = vld [vmem:[%s268 + $0xdd0] sm:$0xff]
      %v832 = vld [vmem:[%s268 + $0xdd8] sm:$0xff]
      %v833 = vld [vmem:[%s268 + $0xde0] sm:$0xff]
      %v834 = vld [vmem:[%s268 + $0xde8] sm:$0xff]
      %v835 = vld [vmem:[%s268 + $0xdf0] sm:$0xff]
      %v836 = vld [vmem:[%s268 + $0xdf8] sm:$0xff]
      %v837 = vld [vmem:[%s268 + $0xe00] sm:$0xff]
      %v838 = vld [vmem:[%s268 + $0xe08] sm:$0xff]
      %v839 = vld [vmem:[%s268 + $0xe10] sm:$0xff]
      %v840 = vld [vmem:[%s268 + $0xe18] sm:$0xff]
      %v841 = vld [vmem:[%s268 + $0xe20] sm:$0xff]
      %v842 = vld [vmem:[%s268 + $0xe28] sm:$0xff]
      %v843 = vld [vmem:[%s268 + $0xe30] sm:$0xff]
      %v844 = vld [vmem:[%s268 + $0xe38] sm:$0xff]
      %v845 = vld [vmem:[%s268 + $0xe40] sm:$0xff]
      %v846 = vld [vmem:[%s268 + $0xe48] sm:$0xff]
      %v847 = vld [vmem:[%s268 + $0xe50] sm:$0xff]
      %v848 = vld [vmem:[%s268 + $0xe58] sm:$0xff]
      %v849 = vld [vmem:[%s268 + $0xe60] sm:$0xff]
      %v850 = vld [vmem:[%s268 + $0xe68] sm:$0xff]
      %v851 = vld [vmem:[%s268 + $0xe70] sm:$0xff]
      %v852 = vld [vmem:[%s268 + $0xe78] sm:$0xff]
      %v853 = vld [vmem:[%s268 + $0xe80] sm:$0xff]
      %v854 = vld [vmem:[%s268 + $0xe88] sm:$0xff]
      %v855 = vld [vmem:[%s268 + $0xe90] sm:$0xff]
      %v856 = vld [vmem:[%s268 + $0xe98] sm:$0xff]
      %v857 = vld [vmem:[%s268 + $0xea0] sm:$0xff]
      %v858 = vld [vmem:[%s268 + $0xea8] sm:$0xff]
      %v859 = vld [vmem:[%s268 + $0xeb0] sm:$0xff]
      %v860 = vld [vmem:[%s268 + $0xeb8] sm:$0xff]
      %v861 = vld [vmem:[%s268 + $0xec0] sm:$0xff]
      %v862 = vld [vmem:[%s268 + $0xec8] sm:$0xff]
      %v863 = vld [vmem:[%s268 + $0xed0] sm:$0xff]
      %v864 = vld [vmem:[%s268 + $0xed8] sm:$0xff]
      %v865 = vld [vmem:[%s268 + $0xee0] sm:$0xff]
      %v866 = vld [vmem:[%s268 + $0xee8] sm:$0xff]
      %v867 = vld [vmem:[%s268 + $0xef0] sm:$0xff]
      %v868 = vld [vmem:[%s268 + $0xef8] sm:$0xff]
      %v869 = vld [vmem:[%s268 + $0xf00] sm:$0xff]
      %v870 = vld [vmem:[%s268 + $0xf08] sm:$0xff]
      %v871 = vld [vmem:[%s268 + $0xf10] sm:$0xff]
      %v872 = vld [vmem:[%s268 + $0xf18] sm:$0xff]
      %v873 = vld [vmem:[%s268 + $0xf20] sm:$0xff]
      %v874 = vld [vmem:[%s268 + $0xf28] sm:$0xff]
      %v875 = vld [vmem:[%s268 + $0xf30] sm:$0xff]
      %v876 = vld [vmem:[%s268 + $0xf38] sm:$0xff]
      %v877 = vld [vmem:[%s268 + $0xf40] sm:$0xff]
      %v878 = vld [vmem:[%s268 + $0xf48] sm:$0xff]
      %v879 = vld [vmem:[%s268 + $0xf50] sm:$0xff]
      %v880 = vld [vmem:[%s268 + $0xf58] sm:$0xff]
      %v881 = vld [vmem:[%s268 + $0xf60] sm:$0xff]
      %v882 = vld [vmem:[%s268 + $0xf68] sm:$0xff]
      %v883 = vld [vmem:[%s268 + $0xf70] sm:$0xff]
      %v884 = vld [vmem:[%s268 + $0xf78] sm:$0xff]
      %v885 = vld [vmem:[%s268 + $0xf80] sm:$0xff]
      %v886 = vld [vmem:[%s268 + $0xf88] sm:$0xff]
      %v887 = vld [vmem:[%s268 + $0xf90] sm:$0xff]
      %v888 = vld [vmem:[%s268 + $0xf98] sm:$0xff]
      %v889 = vld [vmem:[%s268 + $0xfa0] sm:$0xff]
      %v890 = vld [vmem:[%s268 + $0xfa8] sm:$0xff]
      %v891 = vld [vmem:[%s268 + $0xfb0] sm:$0xff]
      %v892 = vld [vmem:[%s268 + $0xfb8] sm:$0xff]
      %v893 = vld [vmem:[%s268 + $0xfc0] sm:$0xff]
      %v894 = vld [vmem:[%s268 + $0xfc8] sm:$0xff]
      %v895 = vld [vmem:[%s268 + $0xfd0] sm:$0xff]
      %v896 = vld [vmem:[%s268 + $0xfd8] sm:$0xff]
      %v897 = vld [vmem:[%s268 + $0xfe0] sm:$0xff]
      %v898 = vld [vmem:[%s268 + $0xfe8] sm:$0xff]
      %v899 = vld [vmem:[%s268 + $0xff0] sm:$0xff]
      %v900 = vld [vmem:[%s268 + $0xff8] sm:$0xff]
      %v901 = vmul.f32 %v389, 0.5
      %v902 = vmul.f32 %v390, 0.5
      %v903 = vmul.f32 %v391, 0.5
      %v904 = vmul.f32 %v392, 0.5
      %v905 = vmul.f32 %v393, 0.5
      %v906 = vmul.f32 %v394, 0.5
      %v907 = vmul.f32 %v395, 0.5
      %v908 = vmul.f32 %v396, 0.5
      %v909 = vmul.f32 %v397, 0.5
      %v910 = vmul.f32 %v398, 0.5
      %v911 = vmul.f32 %v399, 0.5
      %v912 = vmul.f32 %v400, 0.5
      %v913 = vmul.f32 %v401, 0.5
      %v914 = vmul.f32 %v402, 0.5
      %v915 = vmul.f32 %v403, 0.5
      %v916 = vmul.f32 %v404, 0.5
      %v917 = vmul.f32 %v405, 0.5
      %v918 = vmul.f32 %v406, 0.5
      %v919 = vmul.f32 %v407, 0.5
      %v920 = vmul.f32 %v408, 0.5
      %v921 = vmul.f32 %v409, 0.5
      %v922 = vmul.f32 %v410, 0.5
      %v923 = vmul.f32 %v411, 0.5
      %v924 = vmul.f32 %v412, 0.5
      %v925 = vmul.f32 %v413, 0.5
      %v926 = vmul.f32 %v414, 0.5
      %v927 = vmul.f32 %v415, 0.5
      %v928 = vmul.f32 %v416, 0.5
      %v929 = vmul.f32 %v417, 0.5
      %v930 = vmul.f32 %v418, 0.5
      %v931 = vmul.f32 %v419, 0.5
      %v932 = vmul.f32 %v420, 0.5
      %v933 = vmul.f32 %v421, 0.5
      %v934 = vmul.f32 %v422, 0.5
      %v935 = vmul.f32 %v423, 0.5
      %v936 = vmul.f32 %v424, 0.5
      %v937 = vmul.f32 %v425, 0.5
      %v938 = vmul.f32 %v426, 0.5
      %v939 = vmul.f32 %v427, 0.5
      %v940 = vmul.f32 %v428, 0.5
      %v941 = vmul.f32 %v429, 0.5
      %v942 = vmul.f32 %v430, 0.5
      %v943 = vmul.f32 %v431, 0.5
      %v944 = vmul.f32 %v432, 0.5
      %v945 = vmul.f32 %v433, 0.5
      %v946 = vmul.f32 %v434, 0.5
      %v947 = vmul.f32 %v435, 0.5
      %v948 = vmul.f32 %v436, 0.5
      %v949 = vmul.f32 %v437, 0.5
      %v950 = vmul.f32 %v438, 0.5
      %v951 = vmul.f32 %v439, 0.5
      %v952 = vmul.f32 %v440, 0.5
      %v953 = vmul.f32 %v441, 0.5
      %v954 = vmul.f32 %v442, 0.5
      %v955 = vmul.f32 %v443, 0.5
      %v956 = vmul.f32 %v444, 0.5
      %v957 = vmul.f32 %v445, 0.5
      %v958 = vmul.f32 %v446, 0.5
      %v959 = vmul.f32 %v447, 0.5
      %v960 = vmul.f32 %v448, 0.5
      %v961 = vmul.f32 %v449, 0.5
      %v962 = vmul.f32 %v450, 0.5
      %v963 = vmul.f32 %v451, 0.5
      %v964 = vmul.f32 %v452, 0.5
      %v965 = vmul.f32 %v453, 0.5
      %v966 = vmul.f32 %v454, 0.5
      %v967 = vmul.f32 %v455, 0.5
      %v968 = vmul.f32 %v456, 0.5
      %v969 = vmul.f32 %v457, 0.5
      %v970 = vmul.f32 %v458, 0.5
      %v971 = vmul.f32 %v459, 0.5
      %v972 = vmul.f32 %v460, 0.5
      %v973 = vmul.f32 %v461, 0.5
      %v974 = vmul.f32 %v462, 0.5
      %v975 = vmul.f32 %v463, 0.5
      %v976 = vmul.f32 %v464, 0.5
      %v977 = vmul.f32 %v465, 0.5
      %v978 = vmul.f32 %v466, 0.5
      %v979 = vmul.f32 %v467, 0.5
      %v980 = vmul.f32 %v468, 0.5
      %v981 = vmul.f32 %v469, 0.5
      %v982 = vmul.f32 %v470, 0.5
      %v983 = vmul.f32 %v471, 0.5
      %v984 = vmul.f32 %v472, 0.5
      %v985 = vmul.f32 %v473, 0.5
      %v986 = vmul.f32 %v474, 0.5
      %v987 = vmul.f32 %v475, 0.5
      %v988 = vmul.f32 %v476, 0.5
      %v989 = vmul.f32 %v477, 0.5
      %v990 = vmul.f32 %v478, 0.5
      %v991 = vmul.f32 %v479, 0.5
      %v992 = vmul.f32 %v480, 0.5
      %v993 = vmul.f32 %v481, 0.5
      %v994 = vmul.f32 %v482, 0.5
      %v995 = vmul.f32 %v483, 0.5
      %v996 = vmul.f32 %v484, 0.5
      %v997 = vmul.f32 %v485, 0.5
      %v998 = vmul.f32 %v486, 0.5
      %v999 = vmul.f32 %v487, 0.5
      %v1000 = vmul.f32 %v488, 0.5
      %v1001 = vmul.f32 %v489, 0.5
      %v1002 = vmul.f32 %v490, 0.5
      %v1003 = vmul.f32 %v491, 0.5
      %v1004 = vmul.f32 %v492, 0.5
      %v1005 = vmul.f32 %v493, 0.5
      %v1006 = vmul.f32 %v494, 0.5
      %v1007 = vmul.f32 %v495, 0.5
      %v1008 = vmul.f32 %v496, 0.5
      %v1009 = vmul.f32 %v497, 0.5
      %v1010 = vmul.f32 %v498, 0.5
      %v1011 = vmul.f32 %v499, 0.5
      %v1012 = vmul.f32 %v500, 0.5
      %v1013 = vmul.f32 %v501, 0.5
      %v1014 = vmul.f32 %v502, 0.5
      %v1015 = vmul.f32 %v503, 0.5
      %v1016 = vmul.f32 %v504, 0.5
      %v1017 = vmul.f32 %v505, 0.5
      %v1018 = vmul.f32 %v506, 0.5
      %v1019 = vmul.f32 %v507, 0.5
      %v1020 = vmul.f32 %v508, 0.5
      %v1021 = vmul.f32 %v509, 0.5
      %v1022 = vmul.f32 %v510, 0.5
      %v1023 = vmul.f32 %v511, 0.5
      %v1024 = vmul.f32 %v512, 0.5
      %v1025 = vmul.f32 %v513, 0.5
      %v1026 = vmul.f32 %v514, 0.5
      %v1027 = vmul.f32 %v515, 0.5
      %v1028 = vmul.f32 %v516, 0.5
      %v1029 = vmul.f32 %v517, 0.5
      %v1030 = vmul.f32 %v518, 0.5
      %v1031 = vmul.f32 %v519, 0.5
      %v1032 = vmul.f32 %v520, 0.5
      %v1033 = vmul.f32 %v521, 0.5
      %v1034 = vmul.f32 %v522, 0.5
      %v1035 = vmul.f32 %v523, 0.5
      %v1036 = vmul.f32 %v524, 0.5
      %v1037 = vmul.f32 %v525, 0.5
      %v1038 = vmul.f32 %v526, 0.5
      %v1039 = vmul.f32 %v527, 0.5
      %v1040 = vmul.f32 %v528, 0.5
      %v1041 = vmul.f32 %v529, 0.5
      %v1042 = vmul.f32 %v530, 0.5
      %v1043 = vmul.f32 %v531, 0.5
      %v1044 = vmul.f32 %v532, 0.5
      %v1045 = vmul.f32 %v533, 0.5
      %v1046 = vmul.f32 %v534, 0.5
      %v1047 = vmul.f32 %v535, 0.5
      %v1048 = vmul.f32 %v536, 0.5
      %v1049 = vmul.f32 %v537, 0.5
      %v1050 = vmul.f32 %v538, 0.5
      %v1051 = vmul.f32 %v539, 0.5
      %v1052 = vmul.f32 %v540, 0.5
      %v1053 = vmul.f32 %v541, 0.5
      %v1054 = vmul.f32 %v542, 0.5
      %v1055 = vmul.f32 %v543, 0.5
      %v1056 = vmul.f32 %v544, 0.5
      %v1057 = vmul.f32 %v545, 0.5
      %v1058 = vmul.f32 %v546, 0.5
      %v1059 = vmul.f32 %v547, 0.5
      %v1060 = vmul.f32 %v548, 0.5
      %v1061 = vmul.f32 %v549, 0.5
      %v1062 = vmul.f32 %v550, 0.5
      %v1063 = vmul.f32 %v551, 0.5
      %v1064 = vmul.f32 %v552, 0.5
      %v1065 = vmul.f32 %v553, 0.5
      %v1066 = vmul.f32 %v554, 0.5
      %v1067 = vmul.f32 %v555, 0.5
      %v1068 = vmul.f32 %v556, 0.5
      %v1069 = vmul.f32 %v557, 0.5
      %v1070 = vmul.f32 %v558, 0.5
      %v1071 = vmul.f32 %v559, 0.5
      %v1072 = vmul.f32 %v560, 0.5
      %v1073 = vmul.f32 %v561, 0.5
      %v1074 = vmul.f32 %v562, 0.5
      %v1075 = vmul.f32 %v563, 0.5
      %v1076 = vmul.f32 %v564, 0.5
      %v1077 = vmul.f32 %v565, 0.5
      %v1078 = vmul.f32 %v566, 0.5
      %v1079 = vmul.f32 %v567, 0.5
      %v1080 = vmul.f32 %v568, 0.5
      %v1081 = vmul.f32 %v569, 0.5
      %v1082 = vmul.f32 %v570, 0.5
      %v1083 = vmul.f32 %v571, 0.5
      %v1084 = vmul.f32 %v572, 0.5
      %v1085 = vmul.f32 %v573, 0.5
      %v1086 = vmul.f32 %v574, 0.5
      %v1087 = vmul.f32 %v575, 0.5
      %v1088 = vmul.f32 %v576, 0.5
      %v1089 = vmul.f32 %v577, 0.5
      %v1090 = vmul.f32 %v578, 0.5
      %v1091 = vmul.f32 %v579, 0.5
      %v1092 = vmul.f32 %v580, 0.5
      %v1093 = vmul.f32 %v581, 0.5
      %v1094 = vmul.f32 %v582, 0.5
      %v1095 = vmul.f32 %v583, 0.5
      %v1096 = vmul.f32 %v584, 0.5
      %v1097 = vmul.f32 %v585, 0.5
      %v1098 = vmul.f32 %v586, 0.5
      %v1099 = vmul.f32 %v587, 0.5
      %v1100 = vmul.f32 %v588, 0.5
      %v1101 = vmul.f32 %v589, 0.5
      %v1102 = vmul.f32 %v590, 0.5
      %v1103 = vmul.f32 %v591, 0.5
      %v1104 = vmul.f32 %v592, 0.5
      %v1105 = vmul.f32 %v593, 0.5
      %v1106 = vmul.f32 %v594, 0.5
      %v1107 = vmul.f32 %v595, 0.5
      %v1108 = vmul.f32 %v596, 0.5
      %v1109 = vmul.f32 %v597, 0.5
      %v1110 = vmul.f32 %v598, 0.5
      %v1111 = vmul.f32 %v599, 0.5
      %v1112 = vmul.f32 %v600, 0.5
      %v1113 = vmul.f32 %v601, 0.5
      %v1114 = vmul.f32 %v602, 0.5
      %v1115 = vmul.f32 %v603, 0.5
      %v1116 = vmul.f32 %v604, 0.5
      %v1117 = vmul.f32 %v605, 0.5
      %v1118 = vmul.f32 %v606, 0.5
      %v1119 = vmul.f32 %v607, 0.5
      %v1120 = vmul.f32 %v608, 0.5
      %v1121 = vmul.f32 %v609, 0.5
      %v1122 = vmul.f32 %v610, 0.5
      %v1123 = vmul.f32 %v611, 0.5
      %v1124 = vmul.f32 %v612, 0.5
      %v1125 = vmul.f32 %v613, 0.5
      %v1126 = vmul.f32 %v614, 0.5
      %v1127 = vmul.f32 %v615, 0.5
      %v1128 = vmul.f32 %v616, 0.5
      %v1129 = vmul.f32 %v617, 0.5
      %v1130 = vmul.f32 %v618, 0.5
      %v1131 = vmul.f32 %v619, 0.5
      %v1132 = vmul.f32 %v620, 0.5
      %v1133 = vmul.f32 %v621, 0.5
      %v1134 = vmul.f32 %v622, 0.5
      %v1135 = vmul.f32 %v623, 0.5
      %v1136 = vmul.f32 %v624, 0.5
      %v1137 = vmul.f32 %v625, 0.5
      %v1138 = vmul.f32 %v626, 0.5
      %v1139 = vmul.f32 %v627, 0.5
      %v1140 = vmul.f32 %v628, 0.5
      %v1141 = vmul.f32 %v629, 0.5
      %v1142 = vmul.f32 %v630, 0.5
      %v1143 = vmul.f32 %v631, 0.5
      %v1144 = vmul.f32 %v632, 0.5
      %v1145 = vmul.f32 %v633, 0.5
      %v1146 = vmul.f32 %v634, 0.5
      %v1147 = vmul.f32 %v635, 0.5
      %v1148 = vmul.f32 %v636, 0.5
      %v1149 = vmul.f32 %v637, 0.5
      %v1150 = vmul.f32 %v638, 0.5
      %v1151 = vmul.f32 %v639, 0.5
      %v1152 = vmul.f32 %v640, 0.5
      %v1153 = vmul.f32 %v641, 0.5
      %v1154 = vmul.f32 %v642, 0.5
      %v1155 = vmul.f32 %v643, 0.5
      %v1156 = vmul.f32 %v644, 0.5
      %v1157 = vmul.f32 %v645, 0.5
      %v1158 = vmul.f32 %v646, 0.5
      %v1159 = vmul.f32 %v647, 0.5
      %v1160 = vmul.f32 %v648, 0.5
      %v1161 = vmul.f32 %v649, 0.5
      %v1162 = vmul.f32 %v650, 0.5
      %v1163 = vmul.f32 %v651, 0.5
      %v1164 = vmul.f32 %v652, 0.5
      %v1165 = vmul.f32 %v653, 0.5
      %v1166 = vmul.f32 %v654, 0.5
      %v1167 = vmul.f32 %v655, 0.5
      %v1168 = vmul.f32 %v656, 0.5
      %v1169 = vmul.f32 %v657, 0.5
      %v1170 = vmul.f32 %v658, 0.5
      %v1171 = vmul.f32 %v659, 0.5
      %v1172 = vmul.f32 %v660, 0.5
      %v1173 = vmul.f32 %v661, 0.5
      %v1174 = vmul.f32 %v662, 0.5
      %v1175 = vmul.f32 %v663, 0.5
      %v1176 = vmul.f32 %v664, 0.5
      %v1177 = vmul.f32 %v665, 0.5
      %v1178 = vmul.f32 %v666, 0.5
      %v1179 = vmul.f32 %v667, 0.5
      %v1180 = vmul.f32 %v668, 0.5
      %v1181 = vmul.f32 %v669, 0.5
      %v1182 = vmul.f32 %v670, 0.5
      %v1183 = vmul.f32 %v671, 0.5
      %v1184 = vmul.f32 %v672, 0.5
      %v1185 = vmul.f32 %v673, 0.5
      %v1186 = vmul.f32 %v674, 0.5
      %v1187 = vmul.f32 %v675, 0.5
      %v1188 = vmul.f32 %v676, 0.5
      %v1189 = vmul.f32 %v677, 0.5
      %v1190 = vmul.f32 %v678, 0.5
      %v1191 = vmul.f32 %v679, 0.5
      %v1192 = vmul.f32 %v680, 0.5
      %v1193 = vmul.f32 %v681, 0.5
      %v1194 = vmul.f32 %v682, 0.5
      %v1195 = vmul.f32 %v683, 0.5
      %v1196 = vmul.f32 %v684, 0.5
      %v1197 = vmul.f32 %v685, 0.5
      %v1198 = vmul.f32 %v686, 0.5
      %v1199 = vmul.f32 %v687, 0.5
      %v1200 = vmul.f32 %v688, 0.5
      %v1201 = vmul.f32 %v689, 0.5
      %v1202 = vmul.f32 %v690, 0.5
      %v1203 = vmul.f32 %v691, 0.5
      %v1204 = vmul.f32 %v692, 0.5
      %v1205 = vmul.f32 %v693, 0.5
      %v1206 = vmul.f32 %v694, 0.5
      %v1207 = vmul.f32 %v695, 0.5
      %v1208 = vmul.f32 %v696, 0.5
      %v1209 = vmul.f32 %v697, 0.5
      %v1210 = vmul.f32 %v698, 0.5
      %v1211 = vmul.f32 %v699, 0.5
      %v1212 = vmul.f32 %v700, 0.5
      %v1213 = vmul.f32 %v701, 0.5
      %v1214 = vmul.f32 %v702, 0.5
      %v1215 = vmul.f32 %v703, 0.5
      %v1216 = vmul.f32 %v704, 0.5
      %v1217 = vmul.f32 %v705, 0.5
      %v1218 = vmul.f32 %v706, 0.5
      %v1219 = vmul.f32 %v707, 0.5
      %v1220 = vmul.f32 %v708, 0.5
      %v1221 = vmul.f32 %v709, 0.5
      %v1222 = vmul.f32 %v710, 0.5
      %v1223 = vmul.f32 %v711, 0.5
      %v1224 = vmul.f32 %v712, 0.5
      %v1225 = vmul.f32 %v713, 0.5
      %v1226 = vmul.f32 %v714, 0.5
      %v1227 = vmul.f32 %v715, 0.5
      %v1228 = vmul.f32 %v716, 0.5
      %v1229 = vmul.f32 %v717, 0.5
      %v1230 = vmul.f32 %v718, 0.5
      %v1231 = vmul.f32 %v719, 0.5
      %v1232 = vmul.f32 %v720, 0.5
      %v1233 = vmul.f32 %v721, 0.5
      %v1234 = vmul.f32 %v722, 0.5
      %v1235 = vmul.f32 %v723, 0.5
      %v1236 = vmul.f32 %v724, 0.5
      %v1237 = vmul.f32 %v725, 0.5
      %v1238 = vmul.f32 %v726, 0.5
      %v1239 = vmul.f32 %v727, 0.5
      %v1240 = vmul.f32 %v728, 0.5
      %v1241 = vmul.f32 %v729, 0.5
      %v1242 = vmul.f32 %v730, 0.5
      %v1243 = vmul.f32 %v731, 0.5
      %v1244 = vmul.f32 %v732, 0.5
      %v1245 = vmul.f32 %v733, 0.5
      %v1246 = vmul.f32 %v734, 0.5
      %v1247 = vmul.f32 %v735, 0.5
      %v1248 = vmul.f32 %v736, 0.5
      %v1249 = vmul.f32 %v737, 0.5
      %v1250 = vmul.f32 %v738, 0.5
      %v1251 = vmul.f32 %v739, 0.5
      %v1252 = vmul.f32 %v740, 0.5
      %v1253 = vmul.f32 %v741, 0.5
      %v1254 = vmul.f32 %v742, 0.5
      %v1255 = vmul.f32 %v743, 0.5
      %v1256 = vmul.f32 %v744, 0.5
      %v1257 = vmul.f32 %v745, 0.5
      %v1258 = vmul.f32 %v746, 0.5
      %v1259 = vmul.f32 %v747, 0.5
      %v1260 = vmul.f32 %v748, 0.5
      %v1261 = vmul.f32 %v749, 0.5
      %v1262 = vmul.f32 %v750, 0.5
      %v1263 = vmul.f32 %v751, 0.5
      %v1264 = vmul.f32 %v752, 0.5
      %v1265 = vmul.f32 %v753, 0.5
      %v1266 = vmul.f32 %v754, 0.5
      %v1267 = vmul.f32 %v755, 0.5
      %v1268 = vmul.f32 %v756, 0.5
      %v1269 = vmul.f32 %v757, 0.5
      %v1270 = vmul.f32 %v758, 0.5
      %v1271 = vmul.f32 %v759, 0.5
      %v1272 = vmul.f32 %v760, 0.5
      %v1273 = vmul.f32 %v761, 0.5
      %v1274 = vmul.f32 %v762, 0.5
      %v1275 = vmul.f32 %v763, 0.5
      %v1276 = vmul.f32 %v764, 0.5
      %v1277 = vmul.f32 %v765, 0.5
      %v1278 = vmul.f32 %v766, 0.5
      %v1279 = vmul.f32 %v767, 0.5
      %v1280 = vmul.f32 %v768, 0.5
      %v1281 = vmul.f32 %v769, 0.5
      %v1282 = vmul.f32 %v770, 0.5
      %v1283 = vmul.f32 %v771, 0.5
      %v1284 = vmul.f32 %v772, 0.5
      %v1285 = vmul.f32 %v773, 0.5
      %v1286 = vmul.f32 %v774, 0.5
      %v1287 = vmul.f32 %v775, 0.5
      %v1288 = vmul.f32 %v776, 0.5
      %v1289 = vmul.f32 %v777, 0.5
      %v1290 = vmul.f32 %v778, 0.5
      %v1291 = vmul.f32 %v779, 0.5
      %v1292 = vmul.f32 %v780, 0.5
      %v1293 = vmul.f32 %v781, 0.5
      %v1294 = vmul.f32 %v782, 0.5
      %v1295 = vmul.f32 %v783, 0.5
      %v1296 = vmul.f32 %v784, 0.5
      %v1297 = vmul.f32 %v785, 0.5
      %v1298 = vmul.f32 %v786, 0.5
      %v1299 = vmul.f32 %v787, 0.5
      %v1300 = vmul.f32 %v788, 0.5
      %v1301 = vmul.f32 %v789, 0.5
      %v1302 = vmul.f32 %v790, 0.5
      %v1303 = vmul.f32 %v791, 0.5
      %v1304 = vmul.f32 %v792, 0.5
      %v1305 = vmul.f32 %v793, 0.5
      %v1306 = vmul.f32 %v794, 0.5
      %v1307 = vmul.f32 %v795, 0.5
      %v1308 = vmul.f32 %v796, 0.5
      %v1309 = vmul.f32 %v797, 0.5
      %v1310 = vmul.f32 %v798, 0.5
      %v1311 = vmul.f32 %v799, 0.5
      %v1312 = vmul.f32 %v800, 0.5
      %v1313 = vmul.f32 %v801, 0.5
      %v1314 = vmul.f32 %v802, 0.5
      %v1315 = vmul.f32 %v803, 0.5
      %v1316 = vmul.f32 %v804, 0.5
      %v1317 = vmul.f32 %v805, 0.5
      %v1318 = vmul.f32 %v806, 0.5
      %v1319 = vmul.f32 %v807, 0.5
      %v1320 = vmul.f32 %v808, 0.5
      %v1321 = vmul.f32 %v809, 0.5
      %v1322 = vmul.f32 %v810, 0.5
      %v1323 = vmul.f32 %v811, 0.5
      %v1324 = vmul.f32 %v812, 0.5
      %v1325 = vmul.f32 %v813, 0.5
      %v1326 = vmul.f32 %v814, 0.5
      %v1327 = vmul.f32 %v815, 0.5
      %v1328 = vmul.f32 %v816, 0.5
      %v1329 = vmul.f32 %v817, 0.5
      %v1330 = vmul.f32 %v818, 0.5
      %v1331 = vmul.f32 %v819, 0.5
      %v1332 = vmul.f32 %v820, 0.5
      %v1333 = vmul.f32 %v821, 0.5
      %v1334 = vmul.f32 %v822, 0.5
      %v1335 = vmul.f32 %v823, 0.5
      %v1336 = vmul.f32 %v824, 0.5
      %v1337 = vmul.f32 %v825, 0.5
      %v1338 = vmul.f32 %v826, 0.5
      %v1339 = vmul.f32 %v827, 0.5
      %v1340 = vmul.f32 %v828, 0.5
      %v1341 = vmul.f32 %v829, 0.5
      %v1342 = vmul.f32 %v830, 0.5
      %v1343 = vmul.f32 %v831, 0.5
      %v1344 = vmul.f32 %v832, 0.5
      %v1345 = vmul.f32 %v833, 0.5
      %v1346 = vmul.f32 %v834, 0.5
      %v1347 = vmul.f32 %v835, 0.5
      %v1348 = vmul.f32 %v836, 0.5
      %v1349 = vmul.f32 %v837, 0.5
      %v1350 = vmul.f32 %v838, 0.5
      %v1351 = vmul.f32 %v839, 0.5
      %v1352 = vmul.f32 %v840, 0.5
      %v1353 = vmul.f32 %v841, 0.5
      %v1354 = vmul.f32 %v842, 0.5
      %v1355 = vmul.f32 %v843, 0.5
      %v1356 = vmul.f32 %v844, 0.5
      %v1357 = vmul.f32 %v845, 0.5
      %v1358 = vmul.f32 %v846, 0.5
      %v1359 = vmul.f32 %v847, 0.5
      %v1360 = vmul.f32 %v848, 0.5
      %v1361 = vmul.f32 %v849, 0.5
      %v1362 = vmul.f32 %v850, 0.5
      %v1363 = vmul.f32 %v851, 0.5
      %v1364 = vmul.f32 %v852, 0.5
      %v1365 = vmul.f32 %v853, 0.5
      %v1366 = vmul.f32 %v854, 0.5
      %v1367 = vmul.f32 %v855, 0.5
      %v1368 = vmul.f32 %v856, 0.5
      %v1369 = vmul.f32 %v857, 0.5
      %v1370 = vmul.f32 %v858, 0.5
      %v1371 = vmul.f32 %v859, 0.5
      %v1372 = vmul.f32 %v860, 0.5
      %v1373 = vmul.f32 %v861, 0.5
      %v1374 = vmul.f32 %v862, 0.5
      %v1375 = vmul.f32 %v863, 0.5
      %v1376 = vmul.f32 %v864, 0.5
      %v1377 = vmul.f32 %v865, 0.5
      %v1378 = vmul.f32 %v866, 0.5
      %v1379 = vmul.f32 %v867, 0.5
      %v1380 = vmul.f32 %v868, 0.5
      %v1381 = vmul.f32 %v869, 0.5
      %v1382 = vmul.f32 %v870, 0.5
      %v1383 = vmul.f32 %v871, 0.5
      %v1384 = vmul.f32 %v872, 0.5
      %v1385 = vmul.f32 %v873, 0.5
      %v1386 = vmul.f32 %v874, 0.5
      %v1387 = vmul.f32 %v875, 0.5
      %v1388 = vmul.f32 %v876, 0.5
      %v1389 = vmul.f32 %v877, 0.5
      %v1390 = vmul.f32 %v878, 0.5
      %v1391 = vmul.f32 %v879, 0.5
      %v1392 = vmul.f32 %v880, 0.5
      %v1393 = vmul.f32 %v881, 0.5
      %v1394 = vmul.f32 %v882, 0.5
      %v1395 = vmul.f32 %v883, 0.5
      %v1396 = vmul.f32 %v884, 0.5
      %v1397 = vmul.f32 %v885, 0.5
      %v1398 = vmul.f32 %v886, 0.5
      %v1399 = vmul.f32 %v887, 0.5
      %v1400 = vmul.f32 %v888, 0.5
      %v1401 = vmul.f32 %v889, 0.5
      %v1402 = vmul.f32 %v890, 0.5
      %v1403 = vmul.f32 %v891, 0.5
      %v1404 = vmul.f32 %v892, 0.5
      %v1405 = vmul.f32 %v893, 0.5
      %v1406 = vmul.f32 %v894, 0.5
      %v1407 = vmul.f32 %v895, 0.5
      %v1408 = vmul.f32 %v896, 0.5
      %v1409 = vmul.f32 %v897, 0.5
      %v1410 = vmul.f32 %v898, 0.5
      %v1411 = vmul.f32 %v899, 0.5
      %v1412 = vmul.f32 %v900, 0.5
      %1413 = vxpose.xlu0.b32.start [1/16] %v373, 128
      %1414 = vxpose.xlu0.b32.cont [2/16] 0.0, 128
      %1415 = vxpose.xlu0.b32.cont [3/16] 0.0, 128
      %1416 = vxpose.xlu0.b32.cont [4/16] 0.0, 128
      %1417 = vxpose.xlu0.b32.cont [5/16] 0.0, 128
      %1418 = vxpose.xlu0.b32.cont [6/16] 0.0, 128
      %1419 = vxpose.xlu0.b32.cont [7/16] 0.0, 128
      %1420 = vxpose.xlu0.b32.cont [8/16] 0.0, 128
      %1421 = vxpose.xlu0.b32.cont [9/16] 0.0, 128
      %1422 = vxpose.xlu0.b32.cont [10/16] 0.0, 128
      %1423 = vxpose.xlu0.b32.cont [11/16] 0.0, 128
      %1424 = vxpose.xlu0.b32.cont [12/16] 0.0, 128
      %1425 = vxpose.xlu0.b32.cont [13/16] 0.0, 128
      %1426 = vxpose.xlu0.b32.cont [14/16] 0.0, 128
      %1427 = vxpose.xlu0.b32.cont [15/16] 0.0, 128
      %1428 = vxpose.xlu0.b32.end [16/16] 0.0, 128
      %v1429 = vpop.trf.xlu0
      %v1430 = vpop.trf.xlu0
      %v1431 = vpop.trf.xlu0
      %v1432 = vpop.trf.xlu0
      %v1433 = vpop.trf.xlu0
      %v1434 = vpop.trf.xlu0
      %v1435 = vpop.trf.xlu0
      %v1436 = vpop.trf.xlu0
      %v1437 = vpop.trf.xlu0
      %v1438 = vpop.trf.xlu0
      %v1439 = vpop.trf.xlu0
      %v1440 = vpop.trf.xlu0
      %v1441 = vpop.trf.xlu0
      %v1442 = vpop.trf.xlu0
      %v1443 = vpop.trf.xlu0
      %v1444 = vpop.trf.xlu0
      %1445 = vxpose.xlu0.b32.start [1/16] %v374, 128
      %1446 = vxpose.xlu0.b32.cont [2/16] 0.0, 128
      %1447 = vxpose.xlu0.b32.cont [3/16] 0.0, 128
      %1448 = vxpose.xlu0.b32.cont [4/16] 0.0, 128
      %1449 = vxpose.xlu0.b32.cont [5/16] 0.0, 128
      %1450 = vxpose.xlu0.b32.cont [6/16] 0.0, 128
      %1451 = vxpose.xlu0.b32.cont [7/16] 0.0, 128
      %1452 = vxpose.xlu0.b32.cont [8/16] 0.0, 128
      %1453 = vxpose.xlu0.b32.cont [9/16] 0.0, 128
      %1454 = vxpose.xlu0.b32.cont [10/16] 0.0, 128
      %1455 = vxpose.xlu0.b32.cont [11/16] 0.0, 128
      %1456 = vxpose.xlu0.b32.cont [12/16] 0.0, 128
      %1457 = vxpose.xlu0.b32.cont [13/16] 0.0, 128
      %1458 = vxpose.xlu0.b32.cont [14/16] 0.0, 128
      %1459 = vxpose.xlu0.b32.cont [15/16] 0.0, 128
      %1460 = vxpose.xlu0.b32.end [16/16] 0.0, 128
      %v1461 = vpop.trf.xlu0
      %v1462 = vpop.trf.xlu0
      %v1463 = vpop.trf.xlu0
      %v1464 = vpop.trf.xlu0
      %v1465 = vpop.trf.xlu0
      %v1466 = vpop.trf.xlu0
      %v1467 = vpop.trf.xlu0
      %v1468 = vpop.trf.xlu0
      %v1469 = vpop.trf.xlu0
      %v1470 = vpop.trf.xlu0
      %v1471 = vpop.trf.xlu0
      %v1472 = vpop.trf.xlu0
      %v1473 = vpop.trf.xlu0
      %v1474 = vpop.trf.xlu0
      %v1475 = vpop.trf.xlu0
      %v1476 = vpop.trf.xlu0
      %1477 = vxpose.xlu0.b32.start [1/16] %v375, 128
      %1478 = vxpose.xlu0.b32.cont [2/16] 0.0, 128
      %1479 = vxpose.xlu0.b32.cont [3/16] 0.0, 128
      %1480 = vxpose.xlu0.b32.cont [4/16] 0.0, 128
      %1481 = vxpose.xlu0.b32.cont [5/16] 0.0, 128
      %1482 = vxpose.xlu0.b32.cont [6/16] 0.0, 128
      %1483 = vxpose.xlu0.b32.cont [7/16] 0.0, 128
      %1484 = vxpose.xlu0.b32.cont [8/16] 0.0, 128
      %1485 = vxpose.xlu0.b32.cont [9/16] 0.0, 128
      %1486 = vxpose.xlu0.b32.cont [10/16] 0.0, 128
      %1487 = vxpose.xlu0.b32.cont [11/16] 0.0, 128
      %1488 = vxpose.xlu0.b32.cont [12/16] 0.0, 128
      %1489 = vxpose.xlu0.b32.cont [13/16] 0.0, 128
      %1490 = vxpose.xlu0.b32.cont [14/16] 0.0, 128
      %1491 = vxpose.xlu0.b32.cont [15/16] 0.0, 128
      %1492 = vxpose.xlu0.b32.end [16/16] 0.0, 128
      %v1493 = vpop.trf.xlu0
      %v1494 = vpop.trf.xlu0
      %v1495 = vpop.trf.xlu0
      %v1496 = vpop.trf.xlu0
      %v1497 = vpop.trf.xlu0
      %v1498 = vpop.trf.xlu0
      %v1499 = vpop.trf.xlu0
      %v1500 = vpop.trf.xlu0
      %v1501 = vpop.trf.xlu0
      %v1502 = vpop.trf.xlu0
      %v1503 = vpop.trf.xlu0
      %v1504 = vpop.trf.xlu0
      %v1505 = vpop.trf.xlu0
      %v1506 = vpop.trf.xlu0
      %v1507 = vpop.trf.xlu0
      %v1508 = vpop.trf.xlu0
      %1509 = vxpose.xlu0.b32.start [1/16] %v376, 128
      %1510 = vxpose.xlu0.b32.cont [2/16] 0.0, 128
      %1511 = vxpose.xlu0.b32.cont [3/16] 0.0, 128
      %1512 = vxpose.xlu0.b32.cont [4/16] 0.0, 128
      %1513 = vxpose.xlu0.b32.cont [5/16] 0.0, 128
      %1514 = vxpose.xlu0.b32.cont [6/16] 0.0, 128
      %1515 = vxpose.xlu0.b32.cont [7/16] 0.0, 128
      %1516 = vxpose.xlu0.b32.cont [8/16] 0.0, 128
      %1517 = vxpose.xlu0.b32.cont [9/16] 0.0, 128
      %1518 = vxpose.xlu0.b32.cont [10/16] 0.0, 128
      %1519 = vxpose.xlu0.b32.cont [11/16] 0.0, 128
      %1520 = vxpose.xlu0.b32.cont [12/16] 0.0, 128
      %1521 = vxpose.xlu0.b32.cont [13/16] 0.0, 128
      %1522 = vxpose.xlu0.b32.cont [14/16] 0.0, 128
      %1523 = vxpose.xlu0.b32.cont [15/16] 0.0, 128
      %1524 = vxpose.xlu0.b32.end [16/16] 0.0, 128
      %v1525 = vpop.trf.xlu0
      %v1526 = vpop.trf.xlu0
      %v1527 = vpop.trf.xlu0
      %v1528 = vpop.trf.xlu0
      %v1529 = vpop.trf.xlu0
      %v1530 = vpop.trf.xlu0
      %v1531 = vpop.trf.xlu0
      %v1532 = vpop.trf.xlu0
      %v1533 = vpop.trf.xlu0
      %v1534 = vpop.trf.xlu0
      %v1535 = vpop.trf.xlu0
      %v1536 = vpop.trf.xlu0
      %v1537 = vpop.trf.xlu0
      %v1538 = vpop.trf.xlu0
      %v1539 = vpop.trf.xlu0
      %v1540 = vpop.trf.xlu0
      %1541 = vxpose.xlu0.b32.start [1/16] %v377, 128
      %1542 = vxpose.xlu0.b32.cont [2/16] 0.0, 128
      %1543 = vxpose.xlu0.b32.cont [3/16] 0.0, 128
      %1544 = vxpose.xlu0.b32.cont [4/16] 0.0, 128
      %1545 = vxpose.xlu0.b32.cont [5/16] 0.0, 128
      %1546 = vxpose.xlu0.b32.cont [6/16] 0.0, 128
      %1547 = vxpose.xlu0.b32.cont [7/16] 0.0, 128
      %1548 = vxpose.xlu0.b32.cont [8/16] 0.0, 128
      %1549 = vxpose.xlu0.b32.cont [9/16] 0.0, 128
      %1550 = vxpose.xlu0.b32.cont [10/16] 0.0, 128
      %1551 = vxpose.xlu0.b32.cont [11/16] 0.0, 128
      %1552 = vxpose.xlu0.b32.cont [12/16] 0.0, 128
      %1553 = vxpose.xlu0.b32.cont [13/16] 0.0, 128
      %1554 = vxpose.xlu0.b32.cont [14/16] 0.0, 128
      %1555 = vxpose.xlu0.b32.cont [15/16] 0.0, 128
      %1556 = vxpose.xlu0.b32.end [16/16] 0.0, 128
      %v1557 = vpop.trf.xlu0
      %v1558 = vpop.trf.xlu0
      %v1559 = vpop.trf.xlu0
      %v1560 = vpop.trf.xlu0
      %v1561 = vpop.trf.xlu0
      %v1562 = vpop.trf.xlu0
      %v1563 = vpop.trf.xlu0
      %v1564 = vpop.trf.xlu0
      %v1565 = vpop.trf.xlu0
      %v1566 = vpop.trf.xlu0
      %v1567 = vpop.trf.xlu0
      %v1568 = vpop.trf.xlu0
      %v1569 = vpop.trf.xlu0
      %v1570 = vpop.trf.xlu0
      %v1571 = vpop.trf.xlu0
      %v1572 = vpop.trf.xlu0
      %1573 = vxpose.xlu0.b32.start [1/16] %v378, 128
      %1574 = vxpose.xlu0.b32.cont [2/16] 0.0, 128
      %1575 = vxpose.xlu0.b32.cont [3/16] 0.0, 128
      %1576 = vxpose.xlu0.b32.cont [4/16] 0.0, 128
      %1577 = vxpose.xlu0.b32.cont [5/16] 0.0, 128
      %1578 = vxpose.xlu0.b32.cont [6/16] 0.0, 128
      %1579 = vxpose.xlu0.b32.cont [7/16] 0.0, 128
      %1580 = vxpose.xlu0.b32.cont [8/16] 0.0, 128
      %1581 = vxpose.xlu0.b32.cont [9/16] 0.0, 128
      %1582 = vxpose.xlu0.b32.cont [10/16] 0.0, 128
      %1583 = vxpose.xlu0.b32.cont [11/16] 0.0, 128
      %1584 = vxpose.xlu0.b32.cont [12/16] 0.0, 128
      %1585 = vxpose.xlu0.b32.cont [13/16] 0.0, 128
      %1586 = vxpose.xlu0.b32.cont [14/16] 0.0, 128
      %1587 = vxpose.xlu0.b32.cont [15/16] 0.0, 128
      %1588 = vxpose.xlu0.b32.end [16/16] 0.0, 128
      %v1589 = vpop.trf.xlu0
      %v1590 = vpop.trf.xlu0
      %v1591 = vpop.trf.xlu0
      %v1592 = vpop.trf.xlu0
      %v1593 = vpop.trf.xlu0
      %v1594 = vpop.trf.xlu0
      %v1595 = vpop.trf.xlu0
      %v1596 = vpop.trf.xlu0
      %v1597 = vpop.trf.xlu0
      %v1598 = vpop.trf.xlu0
      %v1599 = vpop.trf.xlu0
      %v1600 = vpop.trf.xlu0
      %v1601 = vpop.trf.xlu0
      %v1602 = vpop.trf.xlu0
      %v1603 = vpop.trf.xlu0
      %v1604 = vpop.trf.xlu0
      %1605 = vxpose.xlu0.b32.start [1/16] %v379, 128
      %1606 = vxpose.xlu0.b32.cont [2/16] 0.0, 128
      %1607 = vxpose.xlu0.b32.cont [3/16] 0.0, 128
      %1608 = vxpose.xlu0.b32.cont [4/16] 0.0, 128
      %1609 = vxpose.xlu0.b32.cont [5/16] 0.0, 128
      %1610 = vxpose.xlu0.b32.cont [6/16] 0.0, 128
      %1611 = vxpose.xlu0.b32.cont [7/16] 0.0, 128
      %1612 = vxpose.xlu0.b32.cont [8/16] 0.0, 128
      %1613 = vxpose.xlu0.b32.cont [9/16] 0.0, 128
      %1614 = vxpose.xlu0.b32.cont [10/16] 0.0, 128
      %1615 = vxpose.xlu0.b32.cont [11/16] 0.0, 128
      %1616 = vxpose.xlu0.b32.cont [12/16] 0.0, 128
      %1617 = vxpose.xlu0.b32.cont [13/16] 0.0, 128
      %1618 = vxpose.xlu0.b32.cont [14/16] 0.0, 128
      %1619 = vxpose.xlu0.b32.cont [15/16] 0.0, 128
      %1620 = vxpose.xlu0.b32.end [16/16] 0.0, 128
      %v1621 = vpop.trf.xlu0
      %v1622 = vpop.trf.xlu0
      %v1623 = vpop.trf.xlu0
      %v1624 = vpop.trf.xlu0
      %v1625 = vpop.trf.xlu0
      %v1626 = vpop.trf.xlu0
      %v1627 = vpop.trf.xlu0
      %v1628 = vpop.trf.xlu0
      %v1629 = vpop.trf.xlu0
      %v1630 = vpop.trf.xlu0
      %v1631 = vpop.trf.xlu0
      %v1632 = vpop.trf.xlu0
      %v1633 = vpop.trf.xlu0
      %v1634 = vpop.trf.xlu0
      %v1635 = vpop.trf.xlu0
      %v1636 = vpop.trf.xlu0
      %1637 = vxpose.xlu0.b32.start [1/16] %v380, 128
      %1638 = vxpose.xlu0.b32.cont [2/16] 0.0, 128
      %1639 = vxpose.xlu0.b32.cont [3/16] 0.0, 128
      %1640 = vxpose.xlu0.b32.cont [4/16] 0.0, 128
      %1641 = vxpose.xlu0.b32.cont [5/16] 0.0, 128
      %1642 = vxpose.xlu0.b32.cont [6/16] 0.0, 128
      %1643 = vxpose.xlu0.b32.cont [7/16] 0.0, 128
      %1644 = vxpose.xlu0.b32.cont [8/16] 0.0, 128
      %1645 = vxpose.xlu0.b32.cont [9/16] 0.0, 128
      %1646 = vxpose.xlu0.b32.cont [10/16] 0.0, 128
      %1647 = vxpose.xlu0.b32.cont [11/16] 0.0, 128
      %1648 = vxpose.xlu0.b32.cont [12/16] 0.0, 128
      %1649 = vxpose.xlu0.b32.cont [13/16] 0.0, 128
      %1650 = vxpose.xlu0.b32.cont [14/16] 0.0, 128
      %1651 = vxpose.xlu0.b32.cont [15/16] 0.0, 128
      %1652 = vxpose.xlu0.b32.end [16/16] 0.0, 128
      %v1653 = vpop.trf.xlu0
      %v1654 = vpop.trf.xlu0
      %v1655 = vpop.trf.xlu0
      %v1656 = vpop.trf.xlu0
      %v1657 = vpop.trf.xlu0
      %v1658 = vpop.trf.xlu0
      %v1659 = vpop.trf.xlu0
      %v1660 = vpop.trf.xlu0
      %v1661 = vpop.trf.xlu0
      %v1662 = vpop.trf.xlu0
      %v1663 = vpop.trf.xlu0
      %v1664 = vpop.trf.xlu0
      %v1665 = vpop.trf.xlu0
      %v1666 = vpop.trf.xlu0
      %v1667 = vpop.trf.xlu0
      %v1668 = vpop.trf.xlu0
      %1669 = vxpose.xlu0.b32.start [1/16] %v381, 128
      %1670 = vxpose.xlu0.b32.cont [2/16] 0.0, 128
      %1671 = vxpose.xlu0.b32.cont [3/16] 0.0, 128
      %1672 = vxpose.xlu0.b32.cont [4/16] 0.0, 128
      %1673 = vxpose.xlu0.b32.cont [5/16] 0.0, 128
      %1674 = vxpose.xlu0.b32.cont [6/16] 0.0, 128
      %1675 = vxpose.xlu0.b32.cont [7/16] 0.0, 128
      %1676 = vxpose.xlu0.b32.cont [8/16] 0.0, 128
      %1677 = vxpose.xlu0.b32.cont [9/16] 0.0, 128
      %1678 = vxpose.xlu0.b32.cont [10/16] 0.0, 128
      %1679 = vxpose.xlu0.b32.cont [11/16] 0.0, 128
      %1680 = vxpose.xlu0.b32.cont [12/16] 0.0, 128
      %1681 = vxpose.xlu0.b32.cont [13/16] 0.0, 128
      %1682 = vxpose.xlu0.b32.cont [14/16] 0.0, 128
      %1683 = vxpose.xlu0.b32.cont [15/16] 0.0, 128
      %1684 = vxpose.xlu0.b32.end [16/16] 0.0, 128
      %v1685 = vpop.trf.xlu0
      %v1686 = vpop.trf.xlu0
      %v1687 = vpop.trf.xlu0
      %v1688 = vpop.trf.xlu0
      %v1689 = vpop.trf.xlu0
      %v1690 = vpop.trf.xlu0
      %v1691 = vpop.trf.xlu0
      %v1692 = vpop.trf.xlu0
      %v1693 = vpop.trf.xlu0
      %v1694 = vpop.trf.xlu0
      %v1695 = vpop.trf.xlu0
      %v1696 = vpop.trf.xlu0
      %v1697 = vpop.trf.xlu0
      %v1698 = vpop.trf.xlu0
      %v1699 = vpop.trf.xlu0
      %v1700 = vpop.trf.xlu0
      %1701 = vxpose.xlu0.b32.start [1/16] %v382, 128
      %1702 = vxpose.xlu0.b32.cont [2/16] 0.0, 128
      %1703 = vxpose.xlu0.b32.cont [3/16] 0.0, 128
      %1704 = vxpose.xlu0.b32.cont [4/16] 0.0, 128
      %1705 = vxpose.xlu0.b32.cont [5/16] 0.0, 128
      %1706 = vxpose.xlu0.b32.cont [6/16] 0.0, 128
      %1707 = vxpose.xlu0.b32.cont [7/16] 0.0, 128
      %1708 = vxpose.xlu0.b32.cont [8/16] 0.0, 128
      %1709 = vxpose.xlu0.b32.cont [9/16] 0.0, 128
      %1710 = vxpose.xlu0.b32.cont [10/16] 0.0, 128
      %1711 = vxpose.xlu0.b32.cont [11/16] 0.0, 128
      %1712 = vxpose.xlu0.b32.cont [12/16] 0.0, 128
      %1713 = vxpose.xlu0.b32.cont [13/16] 0.0, 128
      %1714 = vxpose.xlu0.b32.cont [14/16] 0.0, 128
      %1715 = vxpose.xlu0.b32.cont [15/16] 0.0, 128
      %1716 = vxpose.xlu0.b32.end [16/16] 0.0, 128
      %v1717 = vpop.trf.xlu0
      %v1718 = vpop.trf.xlu0
      %v1719 = vpop.trf.xlu0
      %v1720 = vpop.trf.xlu0
      %v1721 = vpop.trf.xlu0
      %v1722 = vpop.trf.xlu0
      %v1723 = vpop.trf.xlu0
      %v1724 = vpop.trf.xlu0
      %v1725 = vpop.trf.xlu0
      %v1726 = vpop.trf.xlu0
      %v1727 = vpop.trf.xlu0
      %v1728 = vpop.trf.xlu0
      %v1729 = vpop.trf.xlu0
      %v1730 = vpop.trf.xlu0
      %v1731 = vpop.trf.xlu0
      %v1732 = vpop.trf.xlu0
      %1733 = vxpose.xlu0.b32.start [1/16] %v383, 128
      %1734 = vxpose.xlu0.b32.cont [2/16] 0.0, 128
      %1735 = vxpose.xlu0.b32.cont [3/16] 0.0, 128
      %1736 = vxpose.xlu0.b32.cont [4/16] 0.0, 128
      %1737 = vxpose.xlu0.b32.cont [5/16] 0.0, 128
      %1738 = vxpose.xlu0.b32.cont [6/16] 0.0, 128
      %1739 = vxpose.xlu0.b32.cont [7/16] 0.0, 128
      %1740 = vxpose.xlu0.b32.cont [8/16] 0.0, 128
      %1741 = vxpose.xlu0.b32.cont [9/16] 0.0, 128
      %1742 = vxpose.xlu0.b32.cont [10/16] 0.0, 128
      %1743 = vxpose.xlu0.b32.cont [11/16] 0.0, 128
      %1744 = vxpose.xlu0.b32.cont [12/16] 0.0, 128
      %1745 = vxpose.xlu0.b32.cont [13/16] 0.0, 128
      %1746 = vxpose.xlu0.b32.cont [14/16] 0.0, 128
      %1747 = vxpose.xlu0.b32.cont [15/16] 0.0, 128
      %1748 = vxpose.xlu0.b32.end [16/16] 0.0, 128
      %v1749 = vpop.trf.xlu0
      %v1750 = vpop.trf.xlu0
      %v1751 = vpop.trf.xlu0
      %v1752 = vpop.trf.xlu0
      %v1753 = vpop.trf.xlu0
      %v1754 = vpop.trf.xlu0
      %v1755 = vpop.trf.xlu0
      %v1756 = vpop.trf.xlu0
      %v1757 = vpop.trf.xlu0
      %v1758 = vpop.trf.xlu0
      %v1759 = vpop.trf.xlu0
      %v1760 = vpop.trf.xlu0
      %v1761 = vpop.trf.xlu0
      %v1762 = vpop.trf.xlu0
      %v1763 = vpop.trf.xlu0
      %v1764 = vpop.trf.xlu0
      %1765 = vxpose.xlu0.b32.start [1/16] %v384, 128
      %1766 = vxpose.xlu0.b32.cont [2/16] 0.0, 128
      %1767 = vxpose.xlu0.b32.cont [3/16] 0.0, 128
      %1768 = vxpose.xlu0.b32.cont [4/16] 0.0, 128
      %1769 = vxpose.xlu0.b32.cont [5/16] 0.0, 128
      %1770 = vxpose.xlu0.b32.cont [6/16] 0.0, 128
      %1771 = vxpose.xlu0.b32.cont [7/16] 0.0, 128
      %1772 = vxpose.xlu0.b32.cont [8/16] 0.0, 128
      %1773 = vxpose.xlu0.b32.cont [9/16] 0.0, 128
      %1774 = vxpose.xlu0.b32.cont [10/16] 0.0, 128
      %1775 = vxpose.xlu0.b32.cont [11/16] 0.0, 128
      %1776 = vxpose.xlu0.b32.cont [12/16] 0.0, 128
      %1777 = vxpose.xlu0.b32.cont [13/16] 0.0, 128
      %1778 = vxpose.xlu0.b32.cont [14/16] 0.0, 128
      %1779 = vxpose.xlu0.b32.cont [15/16] 0.0, 128
      %1780 = vxpose.xlu0.b32.end [16/16] 0.0, 128
      %v1781 = vpop.trf.xlu0
      %v1782 = vpop.trf.xlu0
      %v1783 = vpop.trf.xlu0
      %v1784 = vpop.trf.xlu0
      %v1785 = vpop.trf.xlu0
      %v1786 = vpop.trf.xlu0
      %v1787 = vpop.trf.xlu0
      %v1788 = vpop.trf.xlu0
      %v1789 = vpop.trf.xlu0
      %v1790 = vpop.trf.xlu0
      %v1791 = vpop.trf.xlu0
      %v1792 = vpop.trf.xlu0
      %v1793 = vpop.trf.xlu0
      %v1794 = vpop.trf.xlu0
      %v1795 = vpop.trf.xlu0
      %v1796 = vpop.trf.xlu0
      %1797 = vxpose.xlu0.b32.start [1/16] %v385, 128
      %1798 = vxpose.xlu0.b32.cont [2/16] 0.0, 128
      %1799 = vxpose.xlu0.b32.cont [3/16] 0.0, 128
      %1800 = vxpose.xlu0.b32.cont [4/16] 0.0, 128
      %1801 = vxpose.xlu0.b32.cont [5/16] 0.0, 128
      %1802 = vxpose.xlu0.b32.cont [6/16] 0.0, 128
      %1803 = vxpose.xlu0.b32.cont [7/16] 0.0, 128
      %1804 = vxpose.xlu0.b32.cont [8/16] 0.0, 128
      %1805 = vxpose.xlu0.b32.cont [9/16] 0.0, 128
      %1806 = vxpose.xlu0.b32.cont [10/16] 0.0, 128
      %1807 = vxpose.xlu0.b32.cont [11/16] 0.0, 128
      %1808 = vxpose.xlu0.b32.cont [12/16] 0.0, 128
      %1809 = vxpose.xlu0.b32.cont [13/16] 0.0, 128
      %1810 = vxpose.xlu0.b32.cont [14/16] 0.0, 128
      %1811 = vxpose.xlu0.b32.cont [15/16] 0.0, 128
      %1812 = vxpose.xlu0.b32.end [16/16] 0.0, 128
      %v1813 = vpop.trf.xlu0
      %v1814 = vpop.trf.xlu0
      %v1815 = vpop.trf.xlu0
      %v1816 = vpop.trf.xlu0
      %v1817 = vpop.trf.xlu0
      %v1818 = vpop.trf.xlu0
      %v1819 = vpop.trf.xlu0
      %v1820 = vpop.trf.xlu0
      %v1821 = vpop.trf.xlu0
      %v1822 = vpop.trf.xlu0
      %v1823 = vpop.trf.xlu0
      %v1824 = vpop.trf.xlu0
      %v1825 = vpop.trf.xlu0
      %v1826 = vpop.trf.xlu0
      %v1827 = vpop.trf.xlu0
      %v1828 = vpop.trf.xlu0
      %1829 = vxpose.xlu0.b32.start [1/16] %v386, 128
      %1830 = vxpose.xlu0.b32.cont [2/16] 0.0, 128
      %1831 = vxpose.xlu0.b32.cont [3/16] 0.0, 128
      %1832 = vxpose.xlu0.b32.cont [4/16] 0.0, 128
      %1833 = vxpose.xlu0.b32.cont [5/16] 0.0, 128
      %1834 = vxpose.xlu0.b32.cont [6/16] 0.0, 128
      %1835 = vxpose.xlu0.b32.cont [7/16] 0.0, 128
      %1836 = vxpose.xlu0.b32.cont [8/16] 0.0, 128
      %1837 = vxpose.xlu0.b32.cont [9/16] 0.0, 128
      %1838 = vxpose.xlu0.b32.cont [10/16] 0.0, 128
      %1839 = vxpose.xlu0.b32.cont [11/16] 0.0, 128
      %1840 = vxpose.xlu0.b32.cont [12/16] 0.0, 128
      %1841 = vxpose.xlu0.b32.cont [13/16] 0.0, 128
      %1842 = vxpose.xlu0.b32.cont [14/16] 0.0, 128
      %1843 = vxpose.xlu0.b32.cont [15/16] 0.0, 128
      %1844 = vxpose.xlu0.b32.end [16/16] 0.0, 128
      %v1845 = vpop.trf.xlu0
      %v1846 = vpop.trf.xlu0
      %v1847 = vpop.trf.xlu0
      %v1848 = vpop.trf.xlu0
      %v1849 = vpop.trf.xlu0
      %v1850 = vpop.trf.xlu0
      %v1851 = vpop.trf.xlu0
      %v1852 = vpop.trf.xlu0
      %v1853 = vpop.trf.xlu0
      %v1854 = vpop.trf.xlu0
      %v1855 = vpop.trf.xlu0
      %v1856 = vpop.trf.xlu0
      %v1857 = vpop.trf.xlu0
      %v1858 = vpop.trf.xlu0
      %v1859 = vpop.trf.xlu0
      %v1860 = vpop.trf.xlu0
      %1861 = vxpose.xlu0.b32.start [1/16] %v387, 128
      %1862 = vxpose.xlu0.b32.cont [2/16] 0.0, 128
      %1863 = vxpose.xlu0.b32.cont [3/16] 0.0, 128
      %1864 = vxpose.xlu0.b32.cont [4/16] 0.0, 128
      %1865 = vxpose.xlu0.b32.cont [5/16] 0.0, 128
      %1866 = vxpose.xlu0.b32.cont [6/16] 0.0, 128
      %1867 = vxpose.xlu0.b32.cont [7/16] 0.0, 128
      %1868 = vxpose.xlu0.b32.cont [8/16] 0.0, 128
      %1869 = vxpose.xlu0.b32.cont [9/16] 0.0, 128
      %1870 = vxpose.xlu0.b32.cont [10/16] 0.0, 128
      %1871 = vxpose.xlu0.b32.cont [11/16] 0.0, 128
      %1872 = vxpose.xlu0.b32.cont [12/16] 0.0, 128
      %1873 = vxpose.xlu0.b32.cont [13/16] 0.0, 128
      %1874 = vxpose.xlu0.b32.cont [14/16] 0.0, 128
      %1875 = vxpose.xlu0.b32.cont [15/16] 0.0, 128
      %1876 = vxpose.xlu0.b32.end [16/16] 0.0, 128
      %v1877 = vpop.trf.xlu0
      %v1878 = vpop.trf.xlu0
      %v1879 = vpop.trf.xlu0
      %v1880 = vpop.trf.xlu0
      %v1881 = vpop.trf.xlu0
      %v1882 = vpop.trf.xlu0
      %v1883 = vpop.trf.xlu0
      %v1884 = vpop.trf.xlu0
      %v1885 = vpop.trf.xlu0
      %v1886 = vpop.trf.xlu0
      %v1887 = vpop.trf.xlu0
      %v1888 = vpop.trf.xlu0
      %v1889 = vpop.trf.xlu0
      %v1890 = vpop.trf.xlu0
      %v1891 = vpop.trf.xlu0
      %v1892 = vpop.trf.xlu0
      %1893 = vxpose.xlu0.b32.start [1/16] %v388, 128
      %1894 = vxpose.xlu0.b32.cont [2/16] 0.0, 128
      %1895 = vxpose.xlu0.b32.cont [3/16] 0.0, 128
      %1896 = vxpose.xlu0.b32.cont [4/16] 0.0, 128
      %1897 = vxpose.xlu0.b32.cont [5/16] 0.0, 128
      %1898 = vxpose.xlu0.b32.cont [6/16] 0.0, 128
      %1899 = vxpose.xlu0.b32.cont [7/16] 0.0, 128
      %1900 = vxpose.xlu0.b32.cont [8/16] 0.0, 128
      %1901 = vxpose.xlu0.b32.cont [9/16] 0.0, 128
      %1902 = vxpose.xlu0.b32.cont [10/16] 0.0, 128
      %1903 = vxpose.xlu0.b32.cont [11/16] 0.0, 128
      %1904 = vxpose.xlu0.b32.cont [12/16] 0.0, 128
      %1905 = vxpose.xlu0.b32.cont [13/16] 0.0, 128
      %1906 = vxpose.xlu0.b32.cont [14/16] 0.0, 128
      %1907 = vxpose.xlu0.b32.cont [15/16] 0.0, 128
      %1908 = vxpose.xlu0.b32.end [16/16] 0.0, 128
      %v1909 = vpop.trf.xlu0
      %v1910 = vpop.trf.xlu0
      %v1911 = vpop.trf.xlu0
      %v1912 = vpop.trf.xlu0
      %v1913 = vpop.trf.xlu0
      %v1914 = vpop.trf.xlu0
      %v1915 = vpop.trf.xlu0
      %v1916 = vpop.trf.xlu0
      %v1917 = vpop.trf.xlu0
      %v1918 = vpop.trf.xlu0
      %v1919 = vpop.trf.xlu0
      %v1920 = vpop.trf.xlu0
      %v1921 = vpop.trf.xlu0
      %v1922 = vpop.trf.xlu0
      %v1923 = vpop.trf.xlu0
      %v1924 = vpop.trf.xlu0
      %vm1925 = vcmask 39936
      %v1927 = vsel %vm1925, %v1429, 0
      %v1930 = vsel %vm1925, %v1430, 0
      %v1933 = vsel %vm1925, %v1431, 0
      %v1936 = vsel %vm1925, %v1432, 0
      %v1939 = vsel %vm1925, %v1433, 0
      %v1942 = vsel %vm1925, %v1434, 0
      %v1945 = vsel %vm1925, %v1435, 0
      %v1948 = vsel %vm1925, %v1436, 0
      %v1951 = vsel %vm1925, %v1437, 0
      %v1954 = vsel %vm1925, %v1438, 0
      %v1957 = vsel %vm1925, %v1439, 0
      %v1960 = vsel %vm1925, %v1440, 0
      %v1963 = vsel %vm1925, %v1441, 0
      %v1966 = vsel %vm1925, %v1442, 0
      %v1969 = vsel %vm1925, %v1443, 0
      %v1972 = vsel %vm1925, %v1444, 0
      %v1975 = vsel %vm1925, %v1461, 0
      %v1978 = vsel %vm1925, %v1462, 0
      %v1981 = vsel %vm1925, %v1463, 0
      %v1984 = vsel %vm1925, %v1464, 0
      %v1987 = vsel %vm1925, %v1465, 0
      %v1990 = vsel %vm1925, %v1466, 0
      %v1993 = vsel %vm1925, %v1467, 0
      %v1996 = vsel %vm1925, %v1468, 0
      %v1999 = vsel %vm1925, %v1469, 0
      %v2002 = vsel %vm1925, %v1470, 0
      %v2005 = vsel %vm1925, %v1471, 0
      %v2008 = vsel %vm1925, %v1472, 0
      %v2011 = vsel %vm1925, %v1473, 0
      %v2014 = vsel %vm1925, %v1474, 0
      %v2017 = vsel %vm1925, %v1475, 0
      %v2020 = vsel %vm1925, %v1476, 0
      %v2023 = vsel %vm1925, %v1493, 0
      %v2026 = vsel %vm1925, %v1494, 0
      %v2029 = vsel %vm1925, %v1495, 0
      %v2032 = vsel %vm1925, %v1496, 0
      %v2035 = vsel %vm1925, %v1497, 0
      %v2038 = vsel %vm1925, %v1498, 0
      %v2041 = vsel %vm1925, %v1499, 0
      %v2044 = vsel %vm1925, %v1500, 0
      %v2047 = vsel %vm1925, %v1501, 0
      %v2050 = vsel %vm1925, %v1502, 0
      %v2053 = vsel %vm1925, %v1503, 0
      %v2056 = vsel %vm1925, %v1504, 0
      %v2059 = vsel %vm1925, %v1505, 0
      %v2062 = vsel %vm1925, %v1506, 0
      %v2065 = vsel %vm1925, %v1507, 0
      %v2068 = vsel %vm1925, %v1508, 0
      %v2071 = vsel %vm1925, %v1525, 0
      %v2074 = vsel %vm1925, %v1526, 0
      %v2077 = vsel %vm1925, %v1527, 0
      %v2080 = vsel %vm1925, %v1528, 0
      %v2083 = vsel %vm1925, %v1529, 0
      %v2086 = vsel %vm1925, %v1530, 0
      %v2089 = vsel %vm1925, %v1531, 0
      %v2092 = vsel %vm1925, %v1532, 0
      %v2095 = vsel %vm1925, %v1533, 0
      %v2098 = vsel %vm1925, %v1534, 0
      %v2101 = vsel %vm1925, %v1535, 0
      %v2104 = vsel %vm1925, %v1536, 0
      %v2107 = vsel %vm1925, %v1537, 0
      %v2110 = vsel %vm1925, %v1538, 0
      %v2113 = vsel %vm1925, %v1539, 0
      %v2116 = vsel %vm1925, %v1540, 0
      %v2119 = vsel %vm1925, %v1557, 0
      %v2122 = vsel %vm1925, %v1558, 0
      %v2125 = vsel %vm1925, %v1559, 0
      %v2128 = vsel %vm1925, %v1560, 0
      %v2131 = vsel %vm1925, %v1561, 0
      %v2134 = vsel %vm1925, %v1562, 0
      %v2137 = vsel %vm1925, %v1563, 0
      %v2140 = vsel %vm1925, %v1564, 0
      %v2143 = vsel %vm1925, %v1565, 0
      %v2146 = vsel %vm1925, %v1566, 0
      %v2149 = vsel %vm1925, %v1567, 0
      %v2152 = vsel %vm1925, %v1568, 0
      %v2155 = vsel %vm1925, %v1569, 0
      %v2158 = vsel %vm1925, %v1570, 0
      %v2161 = vsel %vm1925, %v1571, 0
      %v2164 = vsel %vm1925, %v1572, 0
      %v2167 = vsel %vm1925, %v1589, 0
      %v2170 = vsel %vm1925, %v1590, 0
      %v2173 = vsel %vm1925, %v1591, 0
      %v2176 = vsel %vm1925, %v1592, 0
      %v2179 = vsel %vm1925, %v1593, 0
      %v2182 = vsel %vm1925, %v1594, 0
      %v2185 = vsel %vm1925, %v1595, 0
      %v2188 = vsel %vm1925, %v1596, 0
      %v2191 = vsel %vm1925, %v1597, 0
      %v2194 = vsel %vm1925, %v1598, 0
      %v2197 = vsel %vm1925, %v1599, 0
      %v2200 = vsel %vm1925, %v1600, 0
      %v2203 = vsel %vm1925, %v1601, 0
      %v2206 = vsel %vm1925, %v1602, 0
      %v2209 = vsel %vm1925, %v1603, 0
      %v2212 = vsel %vm1925, %v1604, 0
      %v2215 = vsel %vm1925, %v1621, 0
      %v2218 = vsel %vm1925, %v1622, 0
      %v2221 = vsel %vm1925, %v1623, 0
      %v2224 = vsel %vm1925, %v1624, 0
      %v2227 = vsel %vm1925, %v1625, 0
      %v2230 = vsel %vm1925, %v1626, 0
      %v2233 = vsel %vm1925, %v1627, 0
      %v2236 = vsel %vm1925, %v1628, 0
      %v2239 = vsel %vm1925, %v1629, 0
      %v2242 = vsel %vm1925, %v1630, 0
      %v2245 = vsel %vm1925, %v1631, 0
      %v2248 = vsel %vm1925, %v1632, 0
      %v2251 = vsel %vm1925, %v1633, 0
      %v2254 = vsel %vm1925, %v1634, 0
      %v2257 = vsel %vm1925, %v1635, 0
      %v2260 = vsel %vm1925, %v1636, 0
      %v2263 = vsel %vm1925, %v1653, 0
      %v2266 = vsel %vm1925, %v1654, 0
      %v2269 = vsel %vm1925, %v1655, 0
      %v2272 = vsel %vm1925, %v1656, 0
      %v2275 = vsel %vm1925, %v1657, 0
      %v2278 = vsel %vm1925, %v1658, 0
      %v2281 = vsel %vm1925, %v1659, 0
      %v2284 = vsel %vm1925, %v1660, 0
      %v2287 = vsel %vm1925, %v1661, 0
      %v2290 = vsel %vm1925, %v1662, 0
      %v2293 = vsel %vm1925, %v1663, 0
      %v2296 = vsel %vm1925, %v1664, 0
      %v2299 = vsel %vm1925, %v1665, 0
      %v2302 = vsel %vm1925, %v1666, 0
      %v2305 = vsel %vm1925, %v1667, 0
      %v2308 = vsel %vm1925, %v1668, 0
      %v2311 = vsel %vm1925, %v1685, 0
      %v2314 = vsel %vm1925, %v1686, 0
      %v2317 = vsel %vm1925, %v1687, 0
      %v2320 = vsel %vm1925, %v1688, 0
      %v2323 = vsel %vm1925, %v1689, 0
      %v2326 = vsel %vm1925, %v1690, 0
      %v2329 = vsel %vm1925, %v1691, 0
      %v2332 = vsel %vm1925, %v1692, 0
      %v2335 = vsel %vm1925, %v1693, 0
      %v2338 = vsel %vm1925, %v1694, 0
      %v2341 = vsel %vm1925, %v1695, 0
      %v2344 = vsel %vm1925, %v1696, 0
      %v2347 = vsel %vm1925, %v1697, 0
      %v2350 = vsel %vm1925, %v1698, 0
      %v2353 = vsel %vm1925, %v1699, 0
      %v2356 = vsel %vm1925, %v1700, 0
      %v2359 = vsel %vm1925, %v1717, 0
      %v2362 = vsel %vm1925, %v1718, 0
      %v2365 = vsel %vm1925, %v1719, 0
      %v2368 = vsel %vm1925, %v1720, 0
      %v2371 = vsel %vm1925, %v1721, 0
      %v2374 = vsel %vm1925, %v1722, 0
      %v2377 = vsel %vm1925, %v1723, 0
      %v2380 = vsel %vm1925, %v1724, 0
      %v2383 = vsel %vm1925, %v1725, 0
      %v2386 = vsel %vm1925, %v1726, 0
      %v2389 = vsel %vm1925, %v1727, 0
      %v2392 = vsel %vm1925, %v1728, 0
      %v2395 = vsel %vm1925, %v1729, 0
      %v2398 = vsel %vm1925, %v1730, 0
      %v2401 = vsel %vm1925, %v1731, 0
      %v2404 = vsel %vm1925, %v1732, 0
      %v2407 = vsel %vm1925, %v1749, 0
      %v2410 = vsel %vm1925, %v1750, 0
      %v2413 = vsel %vm1925, %v1751, 0
      %v2416 = vsel %vm1925, %v1752, 0
      %v2419 = vsel %vm1925, %v1753, 0
      %v2422 = vsel %vm1925, %v1754, 0
      %v2425 = vsel %vm1925, %v1755, 0
      %v2428 = vsel %vm1925, %v1756, 0
      %v2431 = vsel %vm1925, %v1757, 0
      %v2434 = vsel %vm1925, %v1758, 0
      %v2437 = vsel %vm1925, %v1759, 0
      %v2440 = vsel %vm1925, %v1760, 0
      %v2443 = vsel %vm1925, %v1761, 0
      %v2446 = vsel %vm1925, %v1762, 0
      %v2449 = vsel %vm1925, %v1763, 0
      %v2452 = vsel %vm1925, %v1764, 0
      %v2455 = vsel %vm1925, %v1781, 0
      %v2458 = vsel %vm1925, %v1782, 0
      %v2461 = vsel %vm1925, %v1783, 0
      %v2464 = vsel %vm1925, %v1784, 0
      %v2467 = vsel %vm1925, %v1785, 0
      %v2470 = vsel %vm1925, %v1786, 0
      %v2473 = vsel %vm1925, %v1787, 0
      %v2476 = vsel %vm1925, %v1788, 0
      %v2479 = vsel %vm1925, %v1789, 0
      %v2482 = vsel %vm1925, %v1790, 0
      %v2485 = vsel %vm1925, %v1791, 0
      %v2488 = vsel %vm1925, %v1792, 0
      %v2491 = vsel %vm1925, %v1793, 0
      %v2494 = vsel %vm1925, %v1794, 0
      %v2497 = vsel %vm1925, %v1795, 0
      %v2500 = vsel %vm1925, %v1796, 0
      %v2503 = vsel %vm1925, %v1813, 0
      %v2506 = vsel %vm1925, %v1814, 0
      %v2509 = vsel %vm1925, %v1815, 0
      %v2512 = vsel %vm1925, %v1816, 0
      %v2515 = vsel %vm1925, %v1817, 0
      %v2518 = vsel %vm1925, %v1818, 0
      %v2521 = vsel %vm1925, %v1819, 0
      %v2524 = vsel %vm1925, %v1820, 0
      %v2527 = vsel %vm1925, %v1821, 0
      %v2530 = vsel %vm1925, %v1822, 0
      %v2533 = vsel %vm1925, %v1823, 0
      %v2536 = vsel %vm1925, %v1824, 0
      %v2539 = vsel %vm1925, %v1825, 0
      %v2542 = vsel %vm1925, %v1826, 0
      %v2545 = vsel %vm1925, %v1827, 0
      %v2548 = vsel %vm1925, %v1828, 0
      %v2551 = vsel %vm1925, %v1845, 0
      %v2554 = vsel %vm1925, %v1846, 0
      %v2557 = vsel %vm1925, %v1847, 0
      %v2560 = vsel %vm1925, %v1848, 0
      %v2563 = vsel %vm1925, %v1849, 0
      %v2566 = vsel %vm1925, %v1850, 0
      %v2569 = vsel %vm1925, %v1851, 0
      %v2572 = vsel %vm1925, %v1852, 0
      %v2575 = vsel %vm1925, %v1853, 0
      %v2578 = vsel %vm1925, %v1854, 0
      %v2581 = vsel %vm1925, %v1855, 0
      %v2584 = vsel %vm1925, %v1856, 0
      %v2587 = vsel %vm1925, %v1857, 0
      %v2590 = vsel %vm1925, %v1858, 0
      %v2593 = vsel %vm1925, %v1859, 0
      %v2596 = vsel %vm1925, %v1860, 0
      %v2599 = vsel %vm1925, %v1877, 0
      %v2602 = vsel %vm1925, %v1878, 0
      %v2605 = vsel %vm1925, %v1879, 0
      %v2608 = vsel %vm1925, %v1880, 0
      %v2611 = vsel %vm1925, %v1881, 0
      %v2614 = vsel %vm1925, %v1882, 0
      %v2617 = vsel %vm1925, %v1883, 0
      %v2620 = vsel %vm1925, %v1884, 0
      %v2623 = vsel %vm1925, %v1885, 0
      %v2626 = vsel %vm1925, %v1886, 0
      %v2629 = vsel %vm1925, %v1887, 0
      %v2632 = vsel %vm1925, %v1888, 0
      %v2635 = vsel %vm1925, %v1889, 0
      %v2638 = vsel %vm1925, %v1890, 0
      %v2641 = vsel %vm1925, %v1891, 0
      %v2644 = vsel %vm1925, %v1892, 0
      %v2647 = vsel %vm1925, %v1909, 0
      %v2650 = vsel %vm1925, %v1910, 0
      %v2653 = vsel %vm1925, %v1911, 0
      %v2656 = vsel %vm1925, %v1912, 0
      %v2659 = vsel %vm1925, %v1913, 0
      %v2662 = vsel %vm1925, %v1914, 0
      %v2665 = vsel %vm1925, %v1915, 0
      %v2668 = vsel %vm1925, %v1916, 0
      %v2671 = vsel %vm1925, %v1917, 0
      %v2674 = vsel %vm1925, %v1918, 0
      %v2677 = vsel %vm1925, %v1919, 0
      %v2680 = vsel %vm1925, %v1920, 0
      %v2683 = vsel %vm1925, %v1921, 0
      %v2686 = vsel %vm1925, %v1922, 0
      %v2689 = vsel %vm1925, %v1923, 0
      %v2692 = vsel %vm1925, %v1924, 0
      %vm2694 = vcmask 1044480
      %v2696 = vsel %vm2694, %v369, 0
      %v2699 = vsel %vm2694, %v371, 0
      %2701 = vmatprep.subr.mxu0 0.0
      %2702 = vmatpush1.msra.mxu0 0.0
      %2703 = vmatprep.subr.mxu0 0.0
      %2704 = vmatpush1.msra.mxu0 0.0
      %2705 = vmatprep.subr.mxu0 0.0
      %2706 = vmatpush1.msra.mxu0 0.0
      %2707 = vmatprep.subr.mxu0 0.0
      %2708 = vmatpush1.msra.mxu0 0.0
      %2709 = vmatprep.subr.mxu0 0.0
      %2710 = vmatpush1.msra.mxu0 0.0
      %2711 = vmatprep.subr.mxu0 0.0
      %2712 = vmatpush1.msra.mxu0 0.0
      %2713 = vmatprep.subr.mxu0 0.0
      %2714 = vmatpush1.msra.mxu0 0.0
      %2715 = vmatprep.subr.mxu0 0.0
      %2716 = vmatpush1.msra.mxu0 0.0
      %2717 = vmatprep.subr.mxu0 0.0
      %2718 = vmatpush1.msra.mxu0 0.0
      %2719 = vmatprep.subr.mxu0 0.0
      %2720 = vmatpush1.msra.mxu0 0.0
      %2721 = vmatprep.subr.mxu0 0.0
      %2722 = vmatpush1.msra.mxu0 0.0
      %2723 = vmatprep.subr.mxu0 0.0
      %2724 = vmatpush1.msra.mxu0 0.0
      %2725 = vmatprep.subr.mxu0 0.0
      %2726 = vmatpush1.msra.mxu0 0.0
      %2727 = vmatprep.subr.mxu0 0.0
      %2728 = vmatpush1.msra.mxu0 0.0
      %2729 = vmatprep.subr.mxu0 0.0
      %2730 = vmatpush1.msra.mxu0 0.0
      %2731 = vmatprep.subr.mxu0 %v2699
      %2732 = vmatpush1.msra.mxu0 %v2696
      %2733 = vmatprep.subr.mxu0 0.0
      %2734 = vmatpush2.msra.mxu0 0.0
      %2735 = vmatprep.subr.mxu0 0.0
      %2736 = vmatpush2.msra.mxu0 0.0
      %2737 = vmatprep.subr.mxu0 0.0
      %2738 = vmatpush2.msra.mxu0 0.0
      %2739 = vmatprep.subr.mxu0 0.0
      %2740 = vmatpush2.msra.mxu0 0.0
      %2741 = vmatprep.subr.mxu0 0.0
      %2742 = vmatpush2.msra.mxu0 0.0
      %2743 = vmatprep.subr.mxu0 0.0
      %2744 = vmatpush2.msra.mxu0 0.0
      %2745 = vmatprep.subr.mxu0 0.0
      %2746 = vmatpush2.msra.mxu0 0.0
      %2747 = vmatprep.subr.mxu0 0.0
      %2748 = vmatpush2.msra.mxu0 0.0
      %2749 = vmatprep.subr.mxu0 0.0
      %2750 = vmatpush2.msra.mxu0 0.0
      %2751 = vmatprep.subr.mxu0 0.0
      %2752 = vmatpush2.msra.mxu0 0.0
      %2753 = vmatprep.subr.mxu0 0.0
      %2754 = vmatpush2.msra.mxu0 0.0
      %2755 = vmatprep.subr.mxu0 0.0
      %2756 = vmatpush2.msra.mxu0 0.0
      %2757 = vmatprep.subr.mxu0 0.0
      %2758 = vmatpush2.msra.mxu0 0.0
      %2759 = vmatprep.subr.mxu0 0.0
      %2760 = vmatpush2.msra.mxu0 0.0
      %2761 = vmatprep.subr.mxu0 0.0
      %2762 = vmatpush2.msra.mxu0 0.0
      %2763 = vmatprep.subr.mxu0 0.0
      %2764 = vmatpush2.msra.mxu0 0.0
      %2765 = vmatprep.mubr.f32.mxu0 0.0
      %2766 = vmatmul.mubr.f32.gmra.mxu0 %v1927
      %v2767 = vpop.f32.mrf.mxu0
      %v2768 = vadd.f32 %v901, %v2767
      %v2769 = vpop.f32.mrf.mxu0
      %v2770 = vadd.f32 %v902, %v2769
      %2771 = vmatprep.mubr.f32.mxu0 0.0
      %2772 = vmatmul.mubr.f32.gmra.mxu0 %v1930
      %v2773 = vpop.f32.mrf.mxu0
      %v2774 = vadd.f32 %v903, %v2773
      %v2775 = vpop.f32.mrf.mxu0
      %v2776 = vadd.f32 %v904, %v2775
      %2777 = vmatprep.mubr.f32.mxu0 0.0
      %2778 = vmatmul.mubr.f32.gmra.mxu0 %v1933
      %v2779 = vpop.f32.mrf.mxu0
      %v2780 = vadd.f32 %v905, %v2779
      %v2781 = vpop.f32.mrf.mxu0
      %v2782 = vadd.f32 %v906, %v2781
      %2783 = vmatprep.mubr.f32.mxu0 0.0
      %2784 = vmatmul.mubr.f32.gmra.mxu0 %v1936
      %v2785 = vpop.f32.mrf.mxu0
      %v2786 = vadd.f32 %v907, %v2785
      %v2787 = vpop.f32.mrf.mxu0
      %v2788 = vadd.f32 %v908, %v2787
      %2789 = vmatprep.mubr.f32.mxu0 0.0
      %2790 = vmatmul.mubr.f32.gmra.mxu0 %v1939
      %v2791 = vpop.f32.mrf.mxu0
      %v2792 = vadd.f32 %v909, %v2791
      %v2793 = vpop.f32.mrf.mxu0
      %v2794 = vadd.f32 %v910, %v2793
      %2795 = vmatprep.mubr.f32.mxu0 0.0
      %2796 = vmatmul.mubr.f32.gmra.mxu0 %v1942
      %v2797 = vpop.f32.mrf.mxu0
      %v2798 = vadd.f32 %v911, %v2797
      %v2799 = vpop.f32.mrf.mxu0
      %v2800 = vadd.f32 %v912, %v2799
      %2801 = vmatprep.mubr.f32.mxu0 0.0
      %2802 = vmatmul.mubr.f32.gmra.mxu0 %v1945
      %v2803 = vpop.f32.mrf.mxu0
      %v2804 = vadd.f32 %v913, %v2803
      %v2805 = vpop.f32.mrf.mxu0
      %v2806 = vadd.f32 %v914, %v2805
      %2807 = vmatprep.mubr.f32.mxu0 0.0
      %2808 = vmatmul.mubr.f32.gmra.mxu0 %v1948
      %v2809 = vpop.f32.mrf.mxu0
      %v2810 = vadd.f32 %v915, %v2809
      %v2811 = vpop.f32.mrf.mxu0
      %v2812 = vadd.f32 %v916, %v2811
      %2813 = vmatprep.mubr.f32.mxu0 0.0
      %2814 = vmatmul.mubr.f32.gmra.mxu0 %v1951
      %v2815 = vpop.f32.mrf.mxu0
      %v2816 = vadd.f32 %v917, %v2815
      %v2817 = vpop.f32.mrf.mxu0
      %v2818 = vadd.f32 %v918, %v2817
      %2819 = vmatprep.mubr.f32.mxu0 0.0
      %2820 = vmatmul.mubr.f32.gmra.mxu0 %v1954
      %v2821 = vpop.f32.mrf.mxu0
      %v2822 = vadd.f32 %v919, %v2821
      %v2823 = vpop.f32.mrf.mxu0
      %v2824 = vadd.f32 %v920, %v2823
      %2825 = vmatprep.mubr.f32.mxu0 0.0
      %2826 = vmatmul.mubr.f32.gmra.mxu0 %v1957
      %v2827 = vpop.f32.mrf.mxu0
      %v2828 = vadd.f32 %v921, %v2827
      %v2829 = vpop.f32.mrf.mxu0
      %v2830 = vadd.f32 %v922, %v2829
      %2831 = vmatprep.mubr.f32.mxu0 0.0
      %2832 = vmatmul.mubr.f32.gmra.mxu0 %v1960
      %v2833 = vpop.f32.mrf.mxu0
      %v2834 = vadd.f32 %v923, %v2833
      %v2835 = vpop.f32.mrf.mxu0
      %v2836 = vadd.f32 %v924, %v2835
      %2837 = vmatprep.mubr.f32.mxu0 0.0
      %2838 = vmatmul.mubr.f32.gmra.mxu0 %v1963
      %v2839 = vpop.f32.mrf.mxu0
      %v2840 = vadd.f32 %v925, %v2839
      %v2841 = vpop.f32.mrf.mxu0
      %v2842 = vadd.f32 %v926, %v2841
      %2843 = vmatprep.mubr.f32.mxu0 0.0
      %2844 = vmatmul.mubr.f32.gmra.mxu0 %v1966
      %v2845 = vpop.f32.mrf.mxu0
      %v2846 = vadd.f32 %v927, %v2845
      %v2847 = vpop.f32.mrf.mxu0
      %v2848 = vadd.f32 %v928, %v2847
      %2849 = vmatprep.mubr.f32.mxu0 0.0
      %2850 = vmatmul.mubr.f32.gmra.mxu0 %v1969
      %v2851 = vpop.f32.mrf.mxu0
      %v2852 = vadd.f32 %v929, %v2851
      %v2853 = vpop.f32.mrf.mxu0
      %v2854 = vadd.f32 %v930, %v2853
      %2855 = vmatprep.mubr.f32.mxu0 0.0
      %2856 = vmatmul.mubr.f32.gmra.mxu0 %v1972
      %v2857 = vpop.f32.mrf.mxu0
      %v2858 = vadd.f32 %v931, %v2857
      %v2859 = vpop.f32.mrf.mxu0
      %v2860 = vadd.f32 %v932, %v2859
      %2861 = vmatprep.mubr.f32.mxu0 0.0
      %2862 = vmatmul.mubr.f32.gmra.mxu0 %v1975
      %v2863 = vpop.f32.mrf.mxu0
      %v2864 = vadd.f32 %v933, %v2863
      %v2865 = vpop.f32.mrf.mxu0
      %v2866 = vadd.f32 %v934, %v2865
      %2867 = vmatprep.mubr.f32.mxu0 0.0
      %2868 = vmatmul.mubr.f32.gmra.mxu0 %v1978
      %v2869 = vpop.f32.mrf.mxu0
      %v2870 = vadd.f32 %v935, %v2869
      %v2871 = vpop.f32.mrf.mxu0
      %v2872 = vadd.f32 %v936, %v2871
      %2873 = vmatprep.mubr.f32.mxu0 0.0
      %2874 = vmatmul.mubr.f32.gmra.mxu0 %v1981
      %v2875 = vpop.f32.mrf.mxu0
      %v2876 = vadd.f32 %v937, %v2875
      %v2877 = vpop.f32.mrf.mxu0
      %v2878 = vadd.f32 %v938, %v2877
      %2879 = vmatprep.mubr.f32.mxu0 0.0
      %2880 = vmatmul.mubr.f32.gmra.mxu0 %v1984
      %v2881 = vpop.f32.mrf.mxu0
      %v2882 = vadd.f32 %v939, %v2881
      %v2883 = vpop.f32.mrf.mxu0
      %v2884 = vadd.f32 %v940, %v2883
      %2885 = vmatprep.mubr.f32.mxu0 0.0
      %2886 = vmatmul.mubr.f32.gmra.mxu0 %v1987
      %v2887 = vpop.f32.mrf.mxu0
      %v2888 = vadd.f32 %v941, %v2887
      %v2889 = vpop.f32.mrf.mxu0
      %v2890 = vadd.f32 %v942, %v2889
      %2891 = vmatprep.mubr.f32.mxu0 0.0
      %2892 = vmatmul.mubr.f32.gmra.mxu0 %v1990
      %v2893 = vpop.f32.mrf.mxu0
      %v2894 = vadd.f32 %v943, %v2893
      %v2895 = vpop.f32.mrf.mxu0
      %v2896 = vadd.f32 %v944, %v2895
      %2897 = vmatprep.mubr.f32.mxu0 0.0
      %2898 = vmatmul.mubr.f32.gmra.mxu0 %v1993
      %v2899 = vpop.f32.mrf.mxu0
      %v2900 = vadd.f32 %v945, %v2899
      %v2901 = vpop.f32.mrf.mxu0
      %v2902 = vadd.f32 %v946, %v2901
      %2903 = vmatprep.mubr.f32.mxu0 0.0
      %2904 = vmatmul.mubr.f32.gmra.mxu0 %v1996
      %v2905 = vpop.f32.mrf.mxu0
      %v2906 = vadd.f32 %v947, %v2905
      %v2907 = vpop.f32.mrf.mxu0
      %v2908 = vadd.f32 %v948, %v2907
      %2909 = vmatprep.mubr.f32.mxu0 0.0
      %2910 = vmatmul.mubr.f32.gmra.mxu0 %v1999
      %v2911 = vpop.f32.mrf.mxu0
      %v2912 = vadd.f32 %v949, %v2911
      %v2913 = vpop.f32.mrf.mxu0
      %v2914 = vadd.f32 %v950, %v2913
      %2915 = vmatprep.mubr.f32.mxu0 0.0
      %2916 = vmatmul.mubr.f32.gmra.mxu0 %v2002
      %v2917 = vpop.f32.mrf.mxu0
      %v2918 = vadd.f32 %v951, %v2917
      %v2919 = vpop.f32.mrf.mxu0
      %v2920 = vadd.f32 %v952, %v2919
      %2921 = vmatprep.mubr.f32.mxu0 0.0
      %2922 = vmatmul.mubr.f32.gmra.mxu0 %v2005
      %v2923 = vpop.f32.mrf.mxu0
      %v2924 = vadd.f32 %v953, %v2923
      %v2925 = vpop.f32.mrf.mxu0
      %v2926 = vadd.f32 %v954, %v2925
      %2927 = vmatprep.mubr.f32.mxu0 0.0
      %2928 = vmatmul.mubr.f32.gmra.mxu0 %v2008
      %v2929 = vpop.f32.mrf.mxu0
      %v2930 = vadd.f32 %v955, %v2929
      %v2931 = vpop.f32.mrf.mxu0
      %v2932 = vadd.f32 %v956, %v2931
      %2933 = vmatprep.mubr.f32.mxu0 0.0
      %2934 = vmatmul.mubr.f32.gmra.mxu0 %v2011
      %v2935 = vpop.f32.mrf.mxu0
      %v2936 = vadd.f32 %v957, %v2935
      %v2937 = vpop.f32.mrf.mxu0
      %v2938 = vadd.f32 %v958, %v2937
      %2939 = vmatprep.mubr.f32.mxu0 0.0
      %2940 = vmatmul.mubr.f32.gmra.mxu0 %v2014
      %v2941 = vpop.f32.mrf.mxu0
      %v2942 = vadd.f32 %v959, %v2941
      %v2943 = vpop.f32.mrf.mxu0
      %v2944 = vadd.f32 %v960, %v2943
      %2945 = vmatprep.mubr.f32.mxu0 0.0
      %2946 = vmatmul.mubr.f32.gmra.mxu0 %v2017
      %v2947 = vpop.f32.mrf.mxu0
      %v2948 = vadd.f32 %v961, %v2947
      %v2949 = vpop.f32.mrf.mxu0
      %v2950 = vadd.f32 %v962, %v2949
      %2951 = vmatprep.mubr.f32.mxu0 0.0
      %2952 = vmatmul.mubr.f32.gmra.mxu0 %v2020
      %v2953 = vpop.f32.mrf.mxu0
      %v2954 = vadd.f32 %v963, %v2953
      %v2955 = vpop.f32.mrf.mxu0
      %v2956 = vadd.f32 %v964, %v2955
      %2957 = vmatprep.mubr.f32.mxu0 0.0
      %2958 = vmatmul.mubr.f32.gmra.mxu0 %v2023
      %v2959 = vpop.f32.mrf.mxu0
      %v2960 = vadd.f32 %v965, %v2959
      %v2961 = vpop.f32.mrf.mxu0
      %v2962 = vadd.f32 %v966, %v2961
      %2963 = vmatprep.mubr.f32.mxu0 0.0
      %2964 = vmatmul.mubr.f32.gmra.mxu0 %v2026
      %v2965 = vpop.f32.mrf.mxu0
      %v2966 = vadd.f32 %v967, %v2965
      %v2967 = vpop.f32.mrf.mxu0
      %v2968 = vadd.f32 %v968, %v2967
      %2969 = vmatprep.mubr.f32.mxu0 0.0
      %2970 = vmatmul.mubr.f32.gmra.mxu0 %v2029
      %v2971 = vpop.f32.mrf.mxu0
      %v2972 = vadd.f32 %v969, %v2971
      %v2973 = vpop.f32.mrf.mxu0
      %v2974 = vadd.f32 %v970, %v2973
      %2975 = vmatprep.mubr.f32.mxu0 0.0
      %2976 = vmatmul.mubr.f32.gmra.mxu0 %v2032
      %v2977 = vpop.f32.mrf.mxu0
      %v2978 = vadd.f32 %v971, %v2977
      %v2979 = vpop.f32.mrf.mxu0
      %v2980 = vadd.f32 %v972, %v2979
      %2981 = vmatprep.mubr.f32.mxu0 0.0
      %2982 = vmatmul.mubr.f32.gmra.mxu0 %v2035
      %v2983 = vpop.f32.mrf.mxu0
      %v2984 = vadd.f32 %v973, %v2983
      %v2985 = vpop.f32.mrf.mxu0
      %v2986 = vadd.f32 %v974, %v2985
      %2987 = vmatprep.mubr.f32.mxu0 0.0
      %2988 = vmatmul.mubr.f32.gmra.mxu0 %v2038
      %v2989 = vpop.f32.mrf.mxu0
      %v2990 = vadd.f32 %v975, %v2989
      %v2991 = vpop.f32.mrf.mxu0
      %v2992 = vadd.f32 %v976, %v2991
      %2993 = vmatprep.mubr.f32.mxu0 0.0
      %2994 = vmatmul.mubr.f32.gmra.mxu0 %v2041
      %v2995 = vpop.f32.mrf.mxu0
      %v2996 = vadd.f32 %v977, %v2995
      %v2997 = vpop.f32.mrf.mxu0
      %v2998 = vadd.f32 %v978, %v2997
      %2999 = vmatprep.mubr.f32.mxu0 0.0
      %3000 = vmatmul.mubr.f32.gmra.mxu0 %v2044
      %v3001 = vpop.f32.mrf.mxu0
      %v3002 = vadd.f32 %v979, %v3001
      %v3003 = vpop.f32.mrf.mxu0
      %v3004 = vadd.f32 %v980, %v3003
      %3005 = vmatprep.mubr.f32.mxu0 0.0
      %3006 = vmatmul.mubr.f32.gmra.mxu0 %v2047
      %v3007 = vpop.f32.mrf.mxu0
      %v3008 = vadd.f32 %v981, %v3007
      %v3009 = vpop.f32.mrf.mxu0
      %v3010 = vadd.f32 %v982, %v3009
      %3011 = vmatprep.mubr.f32.mxu0 0.0
      %3012 = vmatmul.mubr.f32.gmra.mxu0 %v2050
      %v3013 = vpop.f32.mrf.mxu0
      %v3014 = vadd.f32 %v983, %v3013
      %v3015 = vpop.f32.mrf.mxu0
      %v3016 = vadd.f32 %v984, %v3015
      %3017 = vmatprep.mubr.f32.mxu0 0.0
      %3018 = vmatmul.mubr.f32.gmra.mxu0 %v2053
      %v3019 = vpop.f32.mrf.mxu0
      %v3020 = vadd.f32 %v985, %v3019
      %v3021 = vpop.f32.mrf.mxu0
      %v3022 = vadd.f32 %v986, %v3021
      %3023 = vmatprep.mubr.f32.mxu0 0.0
      %3024 = vmatmul.mubr.f32.gmra.mxu0 %v2056
      %v3025 = vpop.f32.mrf.mxu0
      %v3026 = vadd.f32 %v987, %v3025
      %v3027 = vpop.f32.mrf.mxu0
      %v3028 = vadd.f32 %v988, %v3027
      %3029 = vmatprep.mubr.f32.mxu0 0.0
      %3030 = vmatmul.mubr.f32.gmra.mxu0 %v2059
      %v3031 = vpop.f32.mrf.mxu0
      %v3032 = vadd.f32 %v989, %v3031
      %v3033 = vpop.f32.mrf.mxu0
      %v3034 = vadd.f32 %v990, %v3033
      %3035 = vmatprep.mubr.f32.mxu0 0.0
      %3036 = vmatmul.mubr.f32.gmra.mxu0 %v2062
      %v3037 = vpop.f32.mrf.mxu0
      %v3038 = vadd.f32 %v991, %v3037
      %v3039 = vpop.f32.mrf.mxu0
      %v3040 = vadd.f32 %v992, %v3039
      %3041 = vmatprep.mubr.f32.mxu0 0.0
      %3042 = vmatmul.mubr.f32.gmra.mxu0 %v2065
      %v3043 = vpop.f32.mrf.mxu0
      %v3044 = vadd.f32 %v993, %v3043
      %v3045 = vpop.f32.mrf.mxu0
      %v3046 = vadd.f32 %v994, %v3045
      %3047 = vmatprep.mubr.f32.mxu0 0.0
      %3048 = vmatmul.mubr.f32.gmra.mxu0 %v2068
      %v3049 = vpop.f32.mrf.mxu0
      %v3050 = vadd.f32 %v995, %v3049
      %v3051 = vpop.f32.mrf.mxu0
      %v3052 = vadd.f32 %v996, %v3051
      %3053 = vmatprep.mubr.f32.mxu0 0.0
      %3054 = vmatmul.mubr.f32.gmra.mxu0 %v2071
      %v3055 = vpop.f32.mrf.mxu0
      %v3056 = vadd.f32 %v997, %v3055
      %v3057 = vpop.f32.mrf.mxu0
      %v3058 = vadd.f32 %v998, %v3057
      %3059 = vmatprep.mubr.f32.mxu0 0.0
      %3060 = vmatmul.mubr.f32.gmra.mxu0 %v2074
      %v3061 = vpop.f32.mrf.mxu0
      %v3062 = vadd.f32 %v999, %v3061
      %v3063 = vpop.f32.mrf.mxu0
      %v3064 = vadd.f32 %v1000, %v3063
      %3065 = vmatprep.mubr.f32.mxu0 0.0
      %3066 = vmatmul.mubr.f32.gmra.mxu0 %v2077
      %v3067 = vpop.f32.mrf.mxu0
      %v3068 = vadd.f32 %v1001, %v3067
      %v3069 = vpop.f32.mrf.mxu0
      %v3070 = vadd.f32 %v1002, %v3069
      %3071 = vmatprep.mubr.f32.mxu0 0.0
      %3072 = vmatmul.mubr.f32.gmra.mxu0 %v2080
      %v3073 = vpop.f32.mrf.mxu0
      %v3074 = vadd.f32 %v1003, %v3073
      %v3075 = vpop.f32.mrf.mxu0
      %v3076 = vadd.f32 %v1004, %v3075
      %3077 = vmatprep.mubr.f32.mxu0 0.0
      %3078 = vmatmul.mubr.f32.gmra.mxu0 %v2083
      %v3079 = vpop.f32.mrf.mxu0
      %v3080 = vadd.f32 %v1005, %v3079
      %v3081 = vpop.f32.mrf.mxu0
      %v3082 = vadd.f32 %v1006, %v3081
      %3083 = vmatprep.mubr.f32.mxu0 0.0
      %3084 = vmatmul.mubr.f32.gmra.mxu0 %v2086
      %v3085 = vpop.f32.mrf.mxu0
      %v3086 = vadd.f32 %v1007, %v3085
      %v3087 = vpop.f32.mrf.mxu0
      %v3088 = vadd.f32 %v1008, %v3087
      %3089 = vmatprep.mubr.f32.mxu0 0.0
      %3090 = vmatmul.mubr.f32.gmra.mxu0 %v2089
      %v3091 = vpop.f32.mrf.mxu0
      %v3092 = vadd.f32 %v1009, %v3091
      %v3093 = vpop.f32.mrf.mxu0
      %v3094 = vadd.f32 %v1010, %v3093
      %3095 = vmatprep.mubr.f32.mxu0 0.0
      %3096 = vmatmul.mubr.f32.gmra.mxu0 %v2092
      %v3097 = vpop.f32.mrf.mxu0
      %v3098 = vadd.f32 %v1011, %v3097
      %v3099 = vpop.f32.mrf.mxu0
      %v3100 = vadd.f32 %v1012, %v3099
      %3101 = vmatprep.mubr.f32.mxu0 0.0
      %3102 = vmatmul.mubr.f32.gmra.mxu0 %v2095
      %v3103 = vpop.f32.mrf.mxu0
      %v3104 = vadd.f32 %v1013, %v3103
      %v3105 = vpop.f32.mrf.mxu0
      %v3106 = vadd.f32 %v1014, %v3105
      %3107 = vmatprep.mubr.f32.mxu0 0.0
      %3108 = vmatmul.mubr.f32.gmra.mxu0 %v2098
      %v3109 = vpop.f32.mrf.mxu0
      %v3110 = vadd.f32 %v1015, %v3109
      %v3111 = vpop.f32.mrf.mxu0
      %v3112 = vadd.f32 %v1016, %v3111
      %3113 = vmatprep.mubr.f32.mxu0 0.0
      %3114 = vmatmul.mubr.f32.gmra.mxu0 %v2101
      %v3115 = vpop.f32.mrf.mxu0
      %v3116 = vadd.f32 %v1017, %v3115
      %v3117 = vpop.f32.mrf.mxu0
      %v3118 = vadd.f32 %v1018, %v3117
      %3119 = vmatprep.mubr.f32.mxu0 0.0
      %3120 = vmatmul.mubr.f32.gmra.mxu0 %v2104
      %v3121 = vpop.f32.mrf.mxu0
      %v3122 = vadd.f32 %v1019, %v3121
      %v3123 = vpop.f32.mrf.mxu0
      %v3124 = vadd.f32 %v1020, %v3123
      %3125 = vmatprep.mubr.f32.mxu0 0.0
      %3126 = vmatmul.mubr.f32.gmra.mxu0 %v2107
      %v3127 = vpop.f32.mrf.mxu0
      %v3128 = vadd.f32 %v1021, %v3127
      %v3129 = vpop.f32.mrf.mxu0
      %v3130 = vadd.f32 %v1022, %v3129
      %3131 = vmatprep.mubr.f32.mxu0 0.0
      %3132 = vmatmul.mubr.f32.gmra.mxu0 %v2110
      %v3133 = vpop.f32.mrf.mxu0
      %v3134 = vadd.f32 %v1023, %v3133
      %v3135 = vpop.f32.mrf.mxu0
      %v3136 = vadd.f32 %v1024, %v3135
      %3137 = vmatprep.mubr.f32.mxu0 0.0
      %3138 = vmatmul.mubr.f32.gmra.mxu0 %v2113
      %v3139 = vpop.f32.mrf.mxu0
      %v3140 = vadd.f32 %v1025, %v3139
      %v3141 = vpop.f32.mrf.mxu0
      %v3142 = vadd.f32 %v1026, %v3141
      %3143 = vmatprep.mubr.f32.mxu0 0.0
      %3144 = vmatmul.mubr.f32.gmra.mxu0 %v2116
      %v3145 = vpop.f32.mrf.mxu0
      %v3146 = vadd.f32 %v1027, %v3145
      %v3147 = vpop.f32.mrf.mxu0
      %v3148 = vadd.f32 %v1028, %v3147
      %3149 = vmatprep.mubr.f32.mxu0 0.0
      %3150 = vmatmul.mubr.f32.gmra.mxu0 %v2119
      %v3151 = vpop.f32.mrf.mxu0
      %v3152 = vadd.f32 %v1029, %v3151
      %v3153 = vpop.f32.mrf.mxu0
      %v3154 = vadd.f32 %v1030, %v3153
      %3155 = vmatprep.mubr.f32.mxu0 0.0
      %3156 = vmatmul.mubr.f32.gmra.mxu0 %v2122
      %v3157 = vpop.f32.mrf.mxu0
      %v3158 = vadd.f32 %v1031, %v3157
      %v3159 = vpop.f32.mrf.mxu0
      %v3160 = vadd.f32 %v1032, %v3159
      %3161 = vmatprep.mubr.f32.mxu0 0.0
      %3162 = vmatmul.mubr.f32.gmra.mxu0 %v2125
      %v3163 = vpop.f32.mrf.mxu0
      %v3164 = vadd.f32 %v1033, %v3163
      %v3165 = vpop.f32.mrf.mxu0
      %v3166 = vadd.f32 %v1034, %v3165
      %3167 = vmatprep.mubr.f32.mxu0 0.0
      %3168 = vmatmul.mubr.f32.gmra.mxu0 %v2128
      %v3169 = vpop.f32.mrf.mxu0
      %v3170 = vadd.f32 %v1035, %v3169
      %v3171 = vpop.f32.mrf.mxu0
      %v3172 = vadd.f32 %v1036, %v3171
      %3173 = vmatprep.mubr.f32.mxu0 0.0
      %3174 = vmatmul.mubr.f32.gmra.mxu0 %v2131
      %v3175 = vpop.f32.mrf.mxu0
      %v3176 = vadd.f32 %v1037, %v3175
      %v3177 = vpop.f32.mrf.mxu0
      %v3178 = vadd.f32 %v1038, %v3177
      %3179 = vmatprep.mubr.f32.mxu0 0.0
      %3180 = vmatmul.mubr.f32.gmra.mxu0 %v2134
      %v3181 = vpop.f32.mrf.mxu0
      %v3182 = vadd.f32 %v1039, %v3181
      %v3183 = vpop.f32.mrf.mxu0
      %v3184 = vadd.f32 %v1040, %v3183
      %3185 = vmatprep.mubr.f32.mxu0 0.0
      %3186 = vmatmul.mubr.f32.gmra.mxu0 %v2137
      %v3187 = vpop.f32.mrf.mxu0
      %v3188 = vadd.f32 %v1041, %v3187
      %v3189 = vpop.f32.mrf.mxu0
      %v3190 = vadd.f32 %v1042, %v3189
      %3191 = vmatprep.mubr.f32.mxu0 0.0
      %3192 = vmatmul.mubr.f32.gmra.mxu0 %v2140
      %v3193 = vpop.f32.mrf.mxu0
      %v3194 = vadd.f32 %v1043, %v3193
      %v3195 = vpop.f32.mrf.mxu0
      %v3196 = vadd.f32 %v1044, %v3195
      %3197 = vmatprep.mubr.f32.mxu0 0.0
      %3198 = vmatmul.mubr.f32.gmra.mxu0 %v2143
      %v3199 = vpop.f32.mrf.mxu0
      %v3200 = vadd.f32 %v1045, %v3199
      %v3201 = vpop.f32.mrf.mxu0
      %v3202 = vadd.f32 %v1046, %v3201
      %3203 = vmatprep.mubr.f32.mxu0 0.0
      %3204 = vmatmul.mubr.f32.gmra.mxu0 %v2146
      %v3205 = vpop.f32.mrf.mxu0
      %v3206 = vadd.f32 %v1047, %v3205
      %v3207 = vpop.f32.mrf.mxu0
      %v3208 = vadd.f32 %v1048, %v3207
      %3209 = vmatprep.mubr.f32.mxu0 0.0
      %3210 = vmatmul.mubr.f32.gmra.mxu0 %v2149
      %v3211 = vpop.f32.mrf.mxu0
      %v3212 = vadd.f32 %v1049, %v3211
      %v3213 = vpop.f32.mrf.mxu0
      %v3214 = vadd.f32 %v1050, %v3213
      %3215 = vmatprep.mubr.f32.mxu0 0.0
      %3216 = vmatmul.mubr.f32.gmra.mxu0 %v2152
      %v3217 = vpop.f32.mrf.mxu0
      %v3218 = vadd.f32 %v1051, %v3217
      %v3219 = vpop.f32.mrf.mxu0
      %v3220 = vadd.f32 %v1052, %v3219
      %3221 = vmatprep.mubr.f32.mxu0 0.0
      %3222 = vmatmul.mubr.f32.gmra.mxu0 %v2155
      %v3223 = vpop.f32.mrf.mxu0
      %v3224 = vadd.f32 %v1053, %v3223
      %v3225 = vpop.f32.mrf.mxu0
      %v3226 = vadd.f32 %v1054, %v3225
      %3227 = vmatprep.mubr.f32.mxu0 0.0
      %3228 = vmatmul.mubr.f32.gmra.mxu0 %v2158
      %v3229 = vpop.f32.mrf.mxu0
      %v3230 = vadd.f32 %v1055, %v3229
      %v3231 = vpop.f32.mrf.mxu0
      %v3232 = vadd.f32 %v1056, %v3231
      %3233 = vmatprep.mubr.f32.mxu0 0.0
      %3234 = vmatmul.mubr.f32.gmra.mxu0 %v2161
      %v3235 = vpop.f32.mrf.mxu0
      %v3236 = vadd.f32 %v1057, %v3235
      %v3237 = vpop.f32.mrf.mxu0
      %v3238 = vadd.f32 %v1058, %v3237
      %3239 = vmatprep.mubr.f32.mxu0 0.0
      %3240 = vmatmul.mubr.f32.gmra.mxu0 %v2164
      %v3241 = vpop.f32.mrf.mxu0
      %v3242 = vadd.f32 %v1059, %v3241
      %v3243 = vpop.f32.mrf.mxu0
      %v3244 = vadd.f32 %v1060, %v3243
      %3245 = vmatprep.mubr.f32.mxu0 0.0
      %3246 = vmatmul.mubr.f32.gmra.mxu0 %v2167
      %v3247 = vpop.f32.mrf.mxu0
      %v3248 = vadd.f32 %v1061, %v3247
      %v3249 = vpop.f32.mrf.mxu0
      %v3250 = vadd.f32 %v1062, %v3249
      %3251 = vmatprep.mubr.f32.mxu0 0.0
      %3252 = vmatmul.mubr.f32.gmra.mxu0 %v2170
      %v3253 = vpop.f32.mrf.mxu0
      %v3254 = vadd.f32 %v1063, %v3253
      %v3255 = vpop.f32.mrf.mxu0
      %v3256 = vadd.f32 %v1064, %v3255
      %3257 = vmatprep.mubr.f32.mxu0 0.0
      %3258 = vmatmul.mubr.f32.gmra.mxu0 %v2173
      %v3259 = vpop.f32.mrf.mxu0
      %v3260 = vadd.f32 %v1065, %v3259
      %v3261 = vpop.f32.mrf.mxu0
      %v3262 = vadd.f32 %v1066, %v3261
      %3263 = vmatprep.mubr.f32.mxu0 0.0
      %3264 = vmatmul.mubr.f32.gmra.mxu0 %v2176
      %v3265 = vpop.f32.mrf.mxu0
      %v3266 = vadd.f32 %v1067, %v3265
      %v3267 = vpop.f32.mrf.mxu0
      %v3268 = vadd.f32 %v1068, %v3267
      %3269 = vmatprep.mubr.f32.mxu0 0.0
      %3270 = vmatmul.mubr.f32.gmra.mxu0 %v2179
      %v3271 = vpop.f32.mrf.mxu0
      %v3272 = vadd.f32 %v1069, %v3271
      %v3273 = vpop.f32.mrf.mxu0
      %v3274 = vadd.f32 %v1070, %v3273
      %3275 = vmatprep.mubr.f32.mxu0 0.0
      %3276 = vmatmul.mubr.f32.gmra.mxu0 %v2182
      %v3277 = vpop.f32.mrf.mxu0
      %v3278 = vadd.f32 %v1071, %v3277
      %v3279 = vpop.f32.mrf.mxu0
      %v3280 = vadd.f32 %v1072, %v3279
      %3281 = vmatprep.mubr.f32.mxu0 0.0
      %3282 = vmatmul.mubr.f32.gmra.mxu0 %v2185
      %v3283 = vpop.f32.mrf.mxu0
      %v3284 = vadd.f32 %v1073, %v3283
      %v3285 = vpop.f32.mrf.mxu0
      %v3286 = vadd.f32 %v1074, %v3285
      %3287 = vmatprep.mubr.f32.mxu0 0.0
      %3288 = vmatmul.mubr.f32.gmra.mxu0 %v2188
      %v3289 = vpop.f32.mrf.mxu0
      %v3290 = vadd.f32 %v1075, %v3289
      %v3291 = vpop.f32.mrf.mxu0
      %v3292 = vadd.f32 %v1076, %v3291
      %3293 = vmatprep.mubr.f32.mxu0 0.0
      %3294 = vmatmul.mubr.f32.gmra.mxu0 %v2191
      %v3295 = vpop.f32.mrf.mxu0
      %v3296 = vadd.f32 %v1077, %v3295
      %v3297 = vpop.f32.mrf.mxu0
      %v3298 = vadd.f32 %v1078, %v3297
      %3299 = vmatprep.mubr.f32.mxu0 0.0
      %3300 = vmatmul.mubr.f32.gmra.mxu0 %v2194
      %v3301 = vpop.f32.mrf.mxu0
      %v3302 = vadd.f32 %v1079, %v3301
      %v3303 = vpop.f32.mrf.mxu0
      %v3304 = vadd.f32 %v1080, %v3303
      %3305 = vmatprep.mubr.f32.mxu0 0.0
      %3306 = vmatmul.mubr.f32.gmra.mxu0 %v2197
      %v3307 = vpop.f32.mrf.mxu0
      %v3308 = vadd.f32 %v1081, %v3307
      %v3309 = vpop.f32.mrf.mxu0
      %v3310 = vadd.f32 %v1082, %v3309
      %3311 = vmatprep.mubr.f32.mxu0 0.0
      %3312 = vmatmul.mubr.f32.gmra.mxu0 %v2200
      %v3313 = vpop.f32.mrf.mxu0
      %v3314 = vadd.f32 %v1083, %v3313
      %v3315 = vpop.f32.mrf.mxu0
      %v3316 = vadd.f32 %v1084, %v3315
      %3317 = vmatprep.mubr.f32.mxu0 0.0
      %3318 = vmatmul.mubr.f32.gmra.mxu0 %v2203
      %v3319 = vpop.f32.mrf.mxu0
      %v3320 = vadd.f32 %v1085, %v3319
      %v3321 = vpop.f32.mrf.mxu0
      %v3322 = vadd.f32 %v1086, %v3321
      %3323 = vmatprep.mubr.f32.mxu0 0.0
      %3324 = vmatmul.mubr.f32.gmra.mxu0 %v2206
      %v3325 = vpop.f32.mrf.mxu0
      %v3326 = vadd.f32 %v1087, %v3325
      %v3327 = vpop.f32.mrf.mxu0
      %v3328 = vadd.f32 %v1088, %v3327
      %3329 = vmatprep.mubr.f32.mxu0 0.0
      %3330 = vmatmul.mubr.f32.gmra.mxu0 %v2209
      %v3331 = vpop.f32.mrf.mxu0
      %v3332 = vadd.f32 %v1089, %v3331
      %v3333 = vpop.f32.mrf.mxu0
      %v3334 = vadd.f32 %v1090, %v3333
      %3335 = vmatprep.mubr.f32.mxu0 0.0
      %3336 = vmatmul.mubr.f32.gmra.mxu0 %v2212
      %v3337 = vpop.f32.mrf.mxu0
      %v3338 = vadd.f32 %v1091, %v3337
      %v3339 = vpop.f32.mrf.mxu0
      %v3340 = vadd.f32 %v1092, %v3339
      %3341 = vmatprep.mubr.f32.mxu0 0.0
      %3342 = vmatmul.mubr.f32.gmra.mxu0 %v2215
      %v3343 = vpop.f32.mrf.mxu0
      %v3344 = vadd.f32 %v1093, %v3343
      %v3345 = vpop.f32.mrf.mxu0
      %v3346 = vadd.f32 %v1094, %v3345
      %3347 = vmatprep.mubr.f32.mxu0 0.0
      %3348 = vmatmul.mubr.f32.gmra.mxu0 %v2218
      %v3349 = vpop.f32.mrf.mxu0
      %v3350 = vadd.f32 %v1095, %v3349
      %v3351 = vpop.f32.mrf.mxu0
      %v3352 = vadd.f32 %v1096, %v3351
      %3353 = vmatprep.mubr.f32.mxu0 0.0
      %3354 = vmatmul.mubr.f32.gmra.mxu0 %v2221
      %v3355 = vpop.f32.mrf.mxu0
      %v3356 = vadd.f32 %v1097, %v3355
      %v3357 = vpop.f32.mrf.mxu0
      %v3358 = vadd.f32 %v1098, %v3357
      %3359 = vmatprep.mubr.f32.mxu0 0.0
      %3360 = vmatmul.mubr.f32.gmra.mxu0 %v2224
      %v3361 = vpop.f32.mrf.mxu0
      %v3362 = vadd.f32 %v1099, %v3361
      %v3363 = vpop.f32.mrf.mxu0
      %v3364 = vadd.f32 %v1100, %v3363
      %3365 = vmatprep.mubr.f32.mxu0 0.0
      %3366 = vmatmul.mubr.f32.gmra.mxu0 %v2227
      %v3367 = vpop.f32.mrf.mxu0
      %v3368 = vadd.f32 %v1101, %v3367
      %v3369 = vpop.f32.mrf.mxu0
      %v3370 = vadd.f32 %v1102, %v3369
      %3371 = vmatprep.mubr.f32.mxu0 0.0
      %3372 = vmatmul.mubr.f32.gmra.mxu0 %v2230
      %v3373 = vpop.f32.mrf.mxu0
      %v3374 = vadd.f32 %v1103, %v3373
      %v3375 = vpop.f32.mrf.mxu0
      %v3376 = vadd.f32 %v1104, %v3375
      %3377 = vmatprep.mubr.f32.mxu0 0.0
      %3378 = vmatmul.mubr.f32.gmra.mxu0 %v2233
      %v3379 = vpop.f32.mrf.mxu0
      %v3380 = vadd.f32 %v1105, %v3379
      %v3381 = vpop.f32.mrf.mxu0
      %v3382 = vadd.f32 %v1106, %v3381
      %3383 = vmatprep.mubr.f32.mxu0 0.0
      %3384 = vmatmul.mubr.f32.gmra.mxu0 %v2236
      %v3385 = vpop.f32.mrf.mxu0
      %v3386 = vadd.f32 %v1107, %v3385
      %v3387 = vpop.f32.mrf.mxu0
      %v3388 = vadd.f32 %v1108, %v3387
      %3389 = vmatprep.mubr.f32.mxu0 0.0
      %3390 = vmatmul.mubr.f32.gmra.mxu0 %v2239
      %v3391 = vpop.f32.mrf.mxu0
      %v3392 = vadd.f32 %v1109, %v3391
      %v3393 = vpop.f32.mrf.mxu0
      %v3394 = vadd.f32 %v1110, %v3393
      %3395 = vmatprep.mubr.f32.mxu0 0.0
      %3396 = vmatmul.mubr.f32.gmra.mxu0 %v2242
      %v3397 = vpop.f32.mrf.mxu0
      %v3398 = vadd.f32 %v1111, %v3397
      %v3399 = vpop.f32.mrf.mxu0
      %v3400 = vadd.f32 %v1112, %v3399
      %3401 = vmatprep.mubr.f32.mxu0 0.0
      %3402 = vmatmul.mubr.f32.gmra.mxu0 %v2245
      %v3403 = vpop.f32.mrf.mxu0
      %v3404 = vadd.f32 %v1113, %v3403
      %v3405 = vpop.f32.mrf.mxu0
      %v3406 = vadd.f32 %v1114, %v3405
      %3407 = vmatprep.mubr.f32.mxu0 0.0
      %3408 = vmatmul.mubr.f32.gmra.mxu0 %v2248
      %v3409 = vpop.f32.mrf.mxu0
      %v3410 = vadd.f32 %v1115, %v3409
      %v3411 = vpop.f32.mrf.mxu0
      %v3412 = vadd.f32 %v1116, %v3411
      %3413 = vmatprep.mubr.f32.mxu0 0.0
      %3414 = vmatmul.mubr.f32.gmra.mxu0 %v2251
      %v3415 = vpop.f32.mrf.mxu0
      %v3416 = vadd.f32 %v1117, %v3415
      %v3417 = vpop.f32.mrf.mxu0
      %v3418 = vadd.f32 %v1118, %v3417
      %3419 = vmatprep.mubr.f32.mxu0 0.0
      %3420 = vmatmul.mubr.f32.gmra.mxu0 %v2254
      %v3421 = vpop.f32.mrf.mxu0
      %v3422 = vadd.f32 %v1119, %v3421
      %v3423 = vpop.f32.mrf.mxu0
      %v3424 = vadd.f32 %v1120, %v3423
      %3425 = vmatprep.mubr.f32.mxu0 0.0
      %3426 = vmatmul.mubr.f32.gmra.mxu0 %v2257
      %v3427 = vpop.f32.mrf.mxu0
      %v3428 = vadd.f32 %v1121, %v3427
      %v3429 = vpop.f32.mrf.mxu0
      %v3430 = vadd.f32 %v1122, %v3429
      %3431 = vmatprep.mubr.f32.mxu0 0.0
      %3432 = vmatmul.mubr.f32.gmra.mxu0 %v2260
      %v3433 = vpop.f32.mrf.mxu0
      %v3434 = vadd.f32 %v1123, %v3433
      %v3435 = vpop.f32.mrf.mxu0
      %v3436 = vadd.f32 %v1124, %v3435
      %3437 = vmatprep.mubr.f32.mxu0 0.0
      %3438 = vmatmul.mubr.f32.gmra.mxu0 %v2263
      %v3439 = vpop.f32.mrf.mxu0
      %v3440 = vadd.f32 %v1125, %v3439
      %v3441 = vpop.f32.mrf.mxu0
      %v3442 = vadd.f32 %v1126, %v3441
      %3443 = vmatprep.mubr.f32.mxu0 0.0
      %3444 = vmatmul.mubr.f32.gmra.mxu0 %v2266
      %v3445 = vpop.f32.mrf.mxu0
      %v3446 = vadd.f32 %v1127, %v3445
      %v3447 = vpop.f32.mrf.mxu0
      %v3448 = vadd.f32 %v1128, %v3447
      %3449 = vmatprep.mubr.f32.mxu0 0.0
      %3450 = vmatmul.mubr.f32.gmra.mxu0 %v2269
      %v3451 = vpop.f32.mrf.mxu0
      %v3452 = vadd.f32 %v1129, %v3451
      %v3453 = vpop.f32.mrf.mxu0
      %v3454 = vadd.f32 %v1130, %v3453
      %3455 = vmatprep.mubr.f32.mxu0 0.0
      %3456 = vmatmul.mubr.f32.gmra.mxu0 %v2272
      %v3457 = vpop.f32.mrf.mxu0
      %v3458 = vadd.f32 %v1131, %v3457
      %v3459 = vpop.f32.mrf.mxu0
      %v3460 = vadd.f32 %v1132, %v3459
      %3461 = vmatprep.mubr.f32.mxu0 0.0
      %3462 = vmatmul.mubr.f32.gmra.mxu0 %v2275
      %v3463 = vpop.f32.mrf.mxu0
      %v3464 = vadd.f32 %v1133, %v3463
      %v3465 = vpop.f32.mrf.mxu0
      %v3466 = vadd.f32 %v1134, %v3465
      %3467 = vmatprep.mubr.f32.mxu0 0.0
      %3468 = vmatmul.mubr.f32.gmra.mxu0 %v2278
      %v3469 = vpop.f32.mrf.mxu0
      %v3470 = vadd.f32 %v1135, %v3469
      %v3471 = vpop.f32.mrf.mxu0
      %v3472 = vadd.f32 %v1136, %v3471
      %3473 = vmatprep.mubr.f32.mxu0 0.0
      %3474 = vmatmul.mubr.f32.gmra.mxu0 %v2281
      %v3475 = vpop.f32.mrf.mxu0
      %v3476 = vadd.f32 %v1137, %v3475
      %v3477 = vpop.f32.mrf.mxu0
      %v3478 = vadd.f32 %v1138, %v3477
      %3479 = vmatprep.mubr.f32.mxu0 0.0
      %3480 = vmatmul.mubr.f32.gmra.mxu0 %v2284
      %v3481 = vpop.f32.mrf.mxu0
      %v3482 = vadd.f32 %v1139, %v3481
      %v3483 = vpop.f32.mrf.mxu0
      %v3484 = vadd.f32 %v1140, %v3483
      %3485 = vmatprep.mubr.f32.mxu0 0.0
      %3486 = vmatmul.mubr.f32.gmra.mxu0 %v2287
      %v3487 = vpop.f32.mrf.mxu0
      %v3488 = vadd.f32 %v1141, %v3487
      %v3489 = vpop.f32.mrf.mxu0
      %v3490 = vadd.f32 %v1142, %v3489
      %3491 = vmatprep.mubr.f32.mxu0 0.0
      %3492 = vmatmul.mubr.f32.gmra.mxu0 %v2290
      %v3493 = vpop.f32.mrf.mxu0
      %v3494 = vadd.f32 %v1143, %v3493
      %v3495 = vpop.f32.mrf.mxu0
      %v3496 = vadd.f32 %v1144, %v3495
      %3497 = vmatprep.mubr.f32.mxu0 0.0
      %3498 = vmatmul.mubr.f32.gmra.mxu0 %v2293
      %v3499 = vpop.f32.mrf.mxu0
      %v3500 = vadd.f32 %v1145, %v3499
      %v3501 = vpop.f32.mrf.mxu0
      %v3502 = vadd.f32 %v1146, %v3501
      %3503 = vmatprep.mubr.f32.mxu0 0.0
      %3504 = vmatmul.mubr.f32.gmra.mxu0 %v2296
      %v3505 = vpop.f32.mrf.mxu0
      %v3506 = vadd.f32 %v1147, %v3505
      %v3507 = vpop.f32.mrf.mxu0
      %v3508 = vadd.f32 %v1148, %v3507
      %3509 = vmatprep.mubr.f32.mxu0 0.0
      %3510 = vmatmul.mubr.f32.gmra.mxu0 %v2299
      %v3511 = vpop.f32.mrf.mxu0
      %v3512 = vadd.f32 %v1149, %v3511
      %v3513 = vpop.f32.mrf.mxu0
      %v3514 = vadd.f32 %v1150, %v3513
      %3515 = vmatprep.mubr.f32.mxu0 0.0
      %3516 = vmatmul.mubr.f32.gmra.mxu0 %v2302
      %v3517 = vpop.f32.mrf.mxu0
      %v3518 = vadd.f32 %v1151, %v3517
      %v3519 = vpop.f32.mrf.mxu0
      %v3520 = vadd.f32 %v1152, %v3519
      %3521 = vmatprep.mubr.f32.mxu0 0.0
      %3522 = vmatmul.mubr.f32.gmra.mxu0 %v2305
      %v3523 = vpop.f32.mrf.mxu0
      %v3524 = vadd.f32 %v1153, %v3523
      %v3525 = vpop.f32.mrf.mxu0
      %v3526 = vadd.f32 %v1154, %v3525
      %3527 = vmatprep.mubr.f32.mxu0 0.0
      %3528 = vmatmul.mubr.f32.gmra.mxu0 %v2308
      %v3529 = vpop.f32.mrf.mxu0
      %v3530 = vadd.f32 %v1155, %v3529
      %v3531 = vpop.f32.mrf.mxu0
      %v3532 = vadd.f32 %v1156, %v3531
      %3533 = vmatprep.mubr.f32.mxu0 0.0
      %3534 = vmatmul.mubr.f32.gmra.mxu0 %v2311
      %v3535 = vpop.f32.mrf.mxu0
      %v3536 = vadd.f32 %v1157, %v3535
      %v3537 = vpop.f32.mrf.mxu0
      %v3538 = vadd.f32 %v1158, %v3537
      %3539 = vmatprep.mubr.f32.mxu0 0.0
      %3540 = vmatmul.mubr.f32.gmra.mxu0 %v2314
      %v3541 = vpop.f32.mrf.mxu0
      %v3542 = vadd.f32 %v1159, %v3541
      %v3543 = vpop.f32.mrf.mxu0
      %v3544 = vadd.f32 %v1160, %v3543
      %3545 = vmatprep.mubr.f32.mxu0 0.0
      %3546 = vmatmul.mubr.f32.gmra.mxu0 %v2317
      %v3547 = vpop.f32.mrf.mxu0
      %v3548 = vadd.f32 %v1161, %v3547
      %v3549 = vpop.f32.mrf.mxu0
      %v3550 = vadd.f32 %v1162, %v3549
      %3551 = vmatprep.mubr.f32.mxu0 0.0
      %3552 = vmatmul.mubr.f32.gmra.mxu0 %v2320
      %v3553 = vpop.f32.mrf.mxu0
      %v3554 = vadd.f32 %v1163, %v3553
      %v3555 = vpop.f32.mrf.mxu0
      %v3556 = vadd.f32 %v1164, %v3555
      %3557 = vmatprep.mubr.f32.mxu0 0.0
      %3558 = vmatmul.mubr.f32.gmra.mxu0 %v2323
      %v3559 = vpop.f32.mrf.mxu0
      %v3560 = vadd.f32 %v1165, %v3559
      %v3561 = vpop.f32.mrf.mxu0
      %v3562 = vadd.f32 %v1166, %v3561
      %3563 = vmatprep.mubr.f32.mxu0 0.0
      %3564 = vmatmul.mubr.f32.gmra.mxu0 %v2326
      %v3565 = vpop.f32.mrf.mxu0
      %v3566 = vadd.f32 %v1167, %v3565
      %v3567 = vpop.f32.mrf.mxu0
      %v3568 = vadd.f32 %v1168, %v3567
      %3569 = vmatprep.mubr.f32.mxu0 0.0
      %3570 = vmatmul.mubr.f32.gmra.mxu0 %v2329
      %v3571 = vpop.f32.mrf.mxu0
      %v3572 = vadd.f32 %v1169, %v3571
      %v3573 = vpop.f32.mrf.mxu0
      %v3574 = vadd.f32 %v1170, %v3573
      %3575 = vmatprep.mubr.f32.mxu0 0.0
      %3576 = vmatmul.mubr.f32.gmra.mxu0 %v2332
      %v3577 = vpop.f32.mrf.mxu0
      %v3578 = vadd.f32 %v1171, %v3577
      %v3579 = vpop.f32.mrf.mxu0
      %v3580 = vadd.f32 %v1172, %v3579
      %3581 = vmatprep.mubr.f32.mxu0 0.0
      %3582 = vmatmul.mubr.f32.gmra.mxu0 %v2335
      %v3583 = vpop.f32.mrf.mxu0
      %v3584 = vadd.f32 %v1173, %v3583
      %v3585 = vpop.f32.mrf.mxu0
      %v3586 = vadd.f32 %v1174, %v3585
      %3587 = vmatprep.mubr.f32.mxu0 0.0
      %3588 = vmatmul.mubr.f32.gmra.mxu0 %v2338
      %v3589 = vpop.f32.mrf.mxu0
      %v3590 = vadd.f32 %v1175, %v3589
      %v3591 = vpop.f32.mrf.mxu0
      %v3592 = vadd.f32 %v1176, %v3591
      %3593 = vmatprep.mubr.f32.mxu0 0.0
      %3594 = vmatmul.mubr.f32.gmra.mxu0 %v2341
      %v3595 = vpop.f32.mrf.mxu0
      %v3596 = vadd.f32 %v1177, %v3595
      %v3597 = vpop.f32.mrf.mxu0
      %v3598 = vadd.f32 %v1178, %v3597
      %3599 = vmatprep.mubr.f32.mxu0 0.0
      %3600 = vmatmul.mubr.f32.gmra.mxu0 %v2344
      %v3601 = vpop.f32.mrf.mxu0
      %v3602 = vadd.f32 %v1179, %v3601
      %v3603 = vpop.f32.mrf.mxu0
      %v3604 = vadd.f32 %v1180, %v3603
      %3605 = vmatprep.mubr.f32.mxu0 0.0
      %3606 = vmatmul.mubr.f32.gmra.mxu0 %v2347
      %v3607 = vpop.f32.mrf.mxu0
      %v3608 = vadd.f32 %v1181, %v3607
      %v3609 = vpop.f32.mrf.mxu0
      %v3610 = vadd.f32 %v1182, %v3609
      %3611 = vmatprep.mubr.f32.mxu0 0.0
      %3612 = vmatmul.mubr.f32.gmra.mxu0 %v2350
      %v3613 = vpop.f32.mrf.mxu0
      %v3614 = vadd.f32 %v1183, %v3613
      %v3615 = vpop.f32.mrf.mxu0
      %v3616 = vadd.f32 %v1184, %v3615
      %3617 = vmatprep.mubr.f32.mxu0 0.0
      %3618 = vmatmul.mubr.f32.gmra.mxu0 %v2353
      %v3619 = vpop.f32.mrf.mxu0
      %v3620 = vadd.f32 %v1185, %v3619
      %v3621 = vpop.f32.mrf.mxu0
      %v3622 = vadd.f32 %v1186, %v3621
      %3623 = vmatprep.mubr.f32.mxu0 0.0
      %3624 = vmatmul.mubr.f32.gmra.mxu0 %v2356
      %v3625 = vpop.f32.mrf.mxu0
      %v3626 = vadd.f32 %v1187, %v3625
      %v3627 = vpop.f32.mrf.mxu0
      %v3628 = vadd.f32 %v1188, %v3627
      %3629 = vmatprep.mubr.f32.mxu0 0.0
      %3630 = vmatmul.mubr.f32.gmra.mxu0 %v2359
      %v3631 = vpop.f32.mrf.mxu0
      %v3632 = vadd.f32 %v1189, %v3631
      %v3633 = vpop.f32.mrf.mxu0
      %v3634 = vadd.f32 %v1190, %v3633
      %3635 = vmatprep.mubr.f32.mxu0 0.0
      %3636 = vmatmul.mubr.f32.gmra.mxu0 %v2362
      %v3637 = vpop.f32.mrf.mxu0
      %v3638 = vadd.f32 %v1191, %v3637
      %v3639 = vpop.f32.mrf.mxu0
      %v3640 = vadd.f32 %v1192, %v3639
      %3641 = vmatprep.mubr.f32.mxu0 0.0
      %3642 = vmatmul.mubr.f32.gmra.mxu0 %v2365
      %v3643 = vpop.f32.mrf.mxu0
      %v3644 = vadd.f32 %v1193, %v3643
      %v3645 = vpop.f32.mrf.mxu0
      %v3646 = vadd.f32 %v1194, %v3645
      %3647 = vmatprep.mubr.f32.mxu0 0.0
      %3648 = vmatmul.mubr.f32.gmra.mxu0 %v2368
      %v3649 = vpop.f32.mrf.mxu0
      %v3650 = vadd.f32 %v1195, %v3649
      %v3651 = vpop.f32.mrf.mxu0
      %v3652 = vadd.f32 %v1196, %v3651
      %3653 = vmatprep.mubr.f32.mxu0 0.0
      %3654 = vmatmul.mubr.f32.gmra.mxu0 %v2371
      %v3655 = vpop.f32.mrf.mxu0
      %v3656 = vadd.f32 %v1197, %v3655
      %v3657 = vpop.f32.mrf.mxu0
      %v3658 = vadd.f32 %v1198, %v3657
      %3659 = vmatprep.mubr.f32.mxu0 0.0
      %3660 = vmatmul.mubr.f32.gmra.mxu0 %v2374
      %v3661 = vpop.f32.mrf.mxu0
      %v3662 = vadd.f32 %v1199, %v3661
      %v3663 = vpop.f32.mrf.mxu0
      %v3664 = vadd.f32 %v1200, %v3663
      %3665 = vmatprep.mubr.f32.mxu0 0.0
      %3666 = vmatmul.mubr.f32.gmra.mxu0 %v2377
      %v3667 = vpop.f32.mrf.mxu0
      %v3668 = vadd.f32 %v1201, %v3667
      %v3669 = vpop.f32.mrf.mxu0
      %v3670 = vadd.f32 %v1202, %v3669
      %3671 = vmatprep.mubr.f32.mxu0 0.0
      %3672 = vmatmul.mubr.f32.gmra.mxu0 %v2380
      %v3673 = vpop.f32.mrf.mxu0
      %v3674 = vadd.f32 %v1203, %v3673
      %v3675 = vpop.f32.mrf.mxu0
      %v3676 = vadd.f32 %v1204, %v3675
      %3677 = vmatprep.mubr.f32.mxu0 0.0
      %3678 = vmatmul.mubr.f32.gmra.mxu0 %v2383
      %v3679 = vpop.f32.mrf.mxu0
      %v3680 = vadd.f32 %v1205, %v3679
      %v3681 = vpop.f32.mrf.mxu0
      %v3682 = vadd.f32 %v1206, %v3681
      %3683 = vmatprep.mubr.f32.mxu0 0.0
      %3684 = vmatmul.mubr.f32.gmra.mxu0 %v2386
      %v3685 = vpop.f32.mrf.mxu0
      %v3686 = vadd.f32 %v1207, %v3685
      %v3687 = vpop.f32.mrf.mxu0
      %v3688 = vadd.f32 %v1208, %v3687
      %3689 = vmatprep.mubr.f32.mxu0 0.0
      %3690 = vmatmul.mubr.f32.gmra.mxu0 %v2389
      %v3691 = vpop.f32.mrf.mxu0
      %v3692 = vadd.f32 %v1209, %v3691
      %v3693 = vpop.f32.mrf.mxu0
      %v3694 = vadd.f32 %v1210, %v3693
      %3695 = vmatprep.mubr.f32.mxu0 0.0
      %3696 = vmatmul.mubr.f32.gmra.mxu0 %v2392
      %v3697 = vpop.f32.mrf.mxu0
      %v3698 = vadd.f32 %v1211, %v3697
      %v3699 = vpop.f32.mrf.mxu0
      %v3700 = vadd.f32 %v1212, %v3699
      %3701 = vmatprep.mubr.f32.mxu0 0.0
      %3702 = vmatmul.mubr.f32.gmra.mxu0 %v2395
      %v3703 = vpop.f32.mrf.mxu0
      %v3704 = vadd.f32 %v1213, %v3703
      %v3705 = vpop.f32.mrf.mxu0
      %v3706 = vadd.f32 %v1214, %v3705
      %3707 = vmatprep.mubr.f32.mxu0 0.0
      %3708 = vmatmul.mubr.f32.gmra.mxu0 %v2398
      %v3709 = vpop.f32.mrf.mxu0
      %v3710 = vadd.f32 %v1215, %v3709
      %v3711 = vpop.f32.mrf.mxu0
      %v3712 = vadd.f32 %v1216, %v3711
      %3713 = vmatprep.mubr.f32.mxu0 0.0
      %3714 = vmatmul.mubr.f32.gmra.mxu0 %v2401
      %v3715 = vpop.f32.mrf.mxu0
      %v3716 = vadd.f32 %v1217, %v3715
      %v3717 = vpop.f32.mrf.mxu0
      %v3718 = vadd.f32 %v1218, %v3717
      %3719 = vmatprep.mubr.f32.mxu0 0.0
      %3720 = vmatmul.mubr.f32.gmra.mxu0 %v2404
      %v3721 = vpop.f32.mrf.mxu0
      %v3722 = vadd.f32 %v1219, %v3721
      %v3723 = vpop.f32.mrf.mxu0
      %v3724 = vadd.f32 %v1220, %v3723
      %3725 = vmatprep.mubr.f32.mxu0 0.0
      %3726 = vmatmul.mubr.f32.gmra.mxu0 %v2407
      %v3727 = vpop.f32.mrf.mxu0
      %v3728 = vadd.f32 %v1221, %v3727
      %v3729 = vpop.f32.mrf.mxu0
      %v3730 = vadd.f32 %v1222, %v3729
      %3731 = vmatprep.mubr.f32.mxu0 0.0
      %3732 = vmatmul.mubr.f32.gmra.mxu0 %v2410
      %v3733 = vpop.f32.mrf.mxu0
      %v3734 = vadd.f32 %v1223, %v3733
      %v3735 = vpop.f32.mrf.mxu0
      %v3736 = vadd.f32 %v1224, %v3735
      %3737 = vmatprep.mubr.f32.mxu0 0.0
      %3738 = vmatmul.mubr.f32.gmra.mxu0 %v2413
      %v3739 = vpop.f32.mrf.mxu0
      %v3740 = vadd.f32 %v1225, %v3739
      %v3741 = vpop.f32.mrf.mxu0
      %v3742 = vadd.f32 %v1226, %v3741
      %3743 = vmatprep.mubr.f32.mxu0 0.0
      %3744 = vmatmul.mubr.f32.gmra.mxu0 %v2416
      %v3745 = vpop.f32.mrf.mxu0
      %v3746 = vadd.f32 %v1227, %v3745
      %v3747 = vpop.f32.mrf.mxu0
      %v3748 = vadd.f32 %v1228, %v3747
      %3749 = vmatprep.mubr.f32.mxu0 0.0
      %3750 = vmatmul.mubr.f32.gmra.mxu0 %v2419
      %v3751 = vpop.f32.mrf.mxu0
      %v3752 = vadd.f32 %v1229, %v3751
      %v3753 = vpop.f32.mrf.mxu0
      %v3754 = vadd.f32 %v1230, %v3753
      %3755 = vmatprep.mubr.f32.mxu0 0.0
      %3756 = vmatmul.mubr.f32.gmra.mxu0 %v2422
      %v3757 = vpop.f32.mrf.mxu0
      %v3758 = vadd.f32 %v1231, %v3757
      %v3759 = vpop.f32.mrf.mxu0
      %v3760 = vadd.f32 %v1232, %v3759
      %3761 = vmatprep.mubr.f32.mxu0 0.0
      %3762 = vmatmul.mubr.f32.gmra.mxu0 %v2425
      %v3763 = vpop.f32.mrf.mxu0
      %v3764 = vadd.f32 %v1233, %v3763
      %v3765 = vpop.f32.mrf.mxu0
      %v3766 = vadd.f32 %v1234, %v3765
      %3767 = vmatprep.mubr.f32.mxu0 0.0
      %3768 = vmatmul.mubr.f32.gmra.mxu0 %v2428
      %v3769 = vpop.f32.mrf.mxu0
      %v3770 = vadd.f32 %v1235, %v3769
      %v3771 = vpop.f32.mrf.mxu0
      %v3772 = vadd.f32 %v1236, %v3771
      %3773 = vmatprep.mubr.f32.mxu0 0.0
      %3774 = vmatmul.mubr.f32.gmra.mxu0 %v2431
      %v3775 = vpop.f32.mrf.mxu0
      %v3776 = vadd.f32 %v1237, %v3775
      %v3777 = vpop.f32.mrf.mxu0
      %v3778 = vadd.f32 %v1238, %v3777
      %3779 = vmatprep.mubr.f32.mxu0 0.0
      %3780 = vmatmul.mubr.f32.gmra.mxu0 %v2434
      %v3781 = vpop.f32.mrf.mxu0
      %v3782 = vadd.f32 %v1239, %v3781
      %v3783 = vpop.f32.mrf.mxu0
      %v3784 = vadd.f32 %v1240, %v3783
      %3785 = vmatprep.mubr.f32.mxu0 0.0
      %3786 = vmatmul.mubr.f32.gmra.mxu0 %v2437
      %v3787 = vpop.f32.mrf.mxu0
      %v3788 = vadd.f32 %v1241, %v3787
      %v3789 = vpop.f32.mrf.mxu0
      %v3790 = vadd.f32 %v1242, %v3789
      %3791 = vmatprep.mubr.f32.mxu0 0.0
      %3792 = vmatmul.mubr.f32.gmra.mxu0 %v2440
      %v3793 = vpop.f32.mrf.mxu0
      %v3794 = vadd.f32 %v1243, %v3793
      %v3795 = vpop.f32.mrf.mxu0
      %v3796 = vadd.f32 %v1244, %v3795
      %3797 = vmatprep.mubr.f32.mxu0 0.0
      %3798 = vmatmul.mubr.f32.gmra.mxu0 %v2443
      %v3799 = vpop.f32.mrf.mxu0
      %v3800 = vadd.f32 %v1245, %v3799
      %v3801 = vpop.f32.mrf.mxu0
      %v3802 = vadd.f32 %v1246, %v3801
      %3803 = vmatprep.mubr.f32.mxu0 0.0
      %3804 = vmatmul.mubr.f32.gmra.mxu0 %v2446
      %v3805 = vpop.f32.mrf.mxu0
      %v3806 = vadd.f32 %v1247, %v3805
      %v3807 = vpop.f32.mrf.mxu0
      %v3808 = vadd.f32 %v1248, %v3807
      %3809 = vmatprep.mubr.f32.mxu0 0.0
      %3810 = vmatmul.mubr.f32.gmra.mxu0 %v2449
      %v3811 = vpop.f32.mrf.mxu0
      %v3812 = vadd.f32 %v1249, %v3811
      %v3813 = vpop.f32.mrf.mxu0
      %v3814 = vadd.f32 %v1250, %v3813
      %3815 = vmatprep.mubr.f32.mxu0 0.0
      %3816 = vmatmul.mubr.f32.gmra.mxu0 %v2452
      %v3817 = vpop.f32.mrf.mxu0
      %v3818 = vadd.f32 %v1251, %v3817
      %v3819 = vpop.f32.mrf.mxu0
      %v3820 = vadd.f32 %v1252, %v3819
      %3821 = vmatprep.mubr.f32.mxu0 0.0
      %3822 = vmatmul.mubr.f32.gmra.mxu0 %v2455
      %v3823 = vpop.f32.mrf.mxu0
      %v3824 = vadd.f32 %v1253, %v3823
      %v3825 = vpop.f32.mrf.mxu0
      %v3826 = vadd.f32 %v1254, %v3825
      %3827 = vmatprep.mubr.f32.mxu0 0.0
      %3828 = vmatmul.mubr.f32.gmra.mxu0 %v2458
      %v3829 = vpop.f32.mrf.mxu0
      %v3830 = vadd.f32 %v1255, %v3829
      %v3831 = vpop.f32.mrf.mxu0
      %v3832 = vadd.f32 %v1256, %v3831
      %3833 = vmatprep.mubr.f32.mxu0 0.0
      %3834 = vmatmul.mubr.f32.gmra.mxu0 %v2461
      %v3835 = vpop.f32.mrf.mxu0
      %v3836 = vadd.f32 %v1257, %v3835
      %v3837 = vpop.f32.mrf.mxu0
      %v3838 = vadd.f32 %v1258, %v3837
      %3839 = vmatprep.mubr.f32.mxu0 0.0
      %3840 = vmatmul.mubr.f32.gmra.mxu0 %v2464
      %v3841 = vpop.f32.mrf.mxu0
      %v3842 = vadd.f32 %v1259, %v3841
      %v3843 = vpop.f32.mrf.mxu0
      %v3844 = vadd.f32 %v1260, %v3843
      %3845 = vmatprep.mubr.f32.mxu0 0.0
      %3846 = vmatmul.mubr.f32.gmra.mxu0 %v2467
      %v3847 = vpop.f32.mrf.mxu0
      %v3848 = vadd.f32 %v1261, %v3847
      %v3849 = vpop.f32.mrf.mxu0
      %v3850 = vadd.f32 %v1262, %v3849
      %3851 = vmatprep.mubr.f32.mxu0 0.0
      %3852 = vmatmul.mubr.f32.gmra.mxu0 %v2470
      %v3853 = vpop.f32.mrf.mxu0
      %v3854 = vadd.f32 %v1263, %v3853
      %v3855 = vpop.f32.mrf.mxu0
      %v3856 = vadd.f32 %v1264, %v3855
      %3857 = vmatprep.mubr.f32.mxu0 0.0
      %3858 = vmatmul.mubr.f32.gmra.mxu0 %v2473
      %v3859 = vpop.f32.mrf.mxu0
      %v3860 = vadd.f32 %v1265, %v3859
      %v3861 = vpop.f32.mrf.mxu0
      %v3862 = vadd.f32 %v1266, %v3861
      %3863 = vmatprep.mubr.f32.mxu0 0.0
      %3864 = vmatmul.mubr.f32.gmra.mxu0 %v2476
      %v3865 = vpop.f32.mrf.mxu0
      %v3866 = vadd.f32 %v1267, %v3865
      %v3867 = vpop.f32.mrf.mxu0
      %v3868 = vadd.f32 %v1268, %v3867
      %3869 = vmatprep.mubr.f32.mxu0 0.0
      %3870 = vmatmul.mubr.f32.gmra.mxu0 %v2479
      %v3871 = vpop.f32.mrf.mxu0
      %v3872 = vadd.f32 %v1269, %v3871
      %v3873 = vpop.f32.mrf.mxu0
      %v3874 = vadd.f32 %v1270, %v3873
      %3875 = vmatprep.mubr.f32.mxu0 0.0
      %3876 = vmatmul.mubr.f32.gmra.mxu0 %v2482
      %v3877 = vpop.f32.mrf.mxu0
      %v3878 = vadd.f32 %v1271, %v3877
      %v3879 = vpop.f32.mrf.mxu0
      %v3880 = vadd.f32 %v1272, %v3879
      %3881 = vmatprep.mubr.f32.mxu0 0.0
      %3882 = vmatmul.mubr.f32.gmra.mxu0 %v2485
      %v3883 = vpop.f32.mrf.mxu0
      %v3884 = vadd.f32 %v1273, %v3883
      %v3885 = vpop.f32.mrf.mxu0
      %v3886 = vadd.f32 %v1274, %v3885
      %3887 = vmatprep.mubr.f32.mxu0 0.0
      %3888 = vmatmul.mubr.f32.gmra.mxu0 %v2488
      %v3889 = vpop.f32.mrf.mxu0
      %v3890 = vadd.f32 %v1275, %v3889
      %v3891 = vpop.f32.mrf.mxu0
      %v3892 = vadd.f32 %v1276, %v3891
      %3893 = vmatprep.mubr.f32.mxu0 0.0
      %3894 = vmatmul.mubr.f32.gmra.mxu0 %v2491
      %v3895 = vpop.f32.mrf.mxu0
      %v3896 = vadd.f32 %v1277, %v3895
      %v3897 = vpop.f32.mrf.mxu0
      %v3898 = vadd.f32 %v1278, %v3897
      %3899 = vmatprep.mubr.f32.mxu0 0.0
      %3900 = vmatmul.mubr.f32.gmra.mxu0 %v2494
      %v3901 = vpop.f32.mrf.mxu0
      %v3902 = vadd.f32 %v1279, %v3901
      %v3903 = vpop.f32.mrf.mxu0
      %v3904 = vadd.f32 %v1280, %v3903
      %3905 = vmatprep.mubr.f32.mxu0 0.0
      %3906 = vmatmul.mubr.f32.gmra.mxu0 %v2497
      %v3907 = vpop.f32.mrf.mxu0
      %v3908 = vadd.f32 %v1281, %v3907
      %v3909 = vpop.f32.mrf.mxu0
      %v3910 = vadd.f32 %v1282, %v3909
      %3911 = vmatprep.mubr.f32.mxu0 0.0
      %3912 = vmatmul.mubr.f32.gmra.mxu0 %v2500
      %v3913 = vpop.f32.mrf.mxu0
      %v3914 = vadd.f32 %v1283, %v3913
      %v3915 = vpop.f32.mrf.mxu0
      %v3916 = vadd.f32 %v1284, %v3915
      %3917 = vmatprep.mubr.f32.mxu0 0.0
      %3918 = vmatmul.mubr.f32.gmra.mxu0 %v2503
      %v3919 = vpop.f32.mrf.mxu0
      %v3920 = vadd.f32 %v1285, %v3919
      %v3921 = vpop.f32.mrf.mxu0
      %v3922 = vadd.f32 %v1286, %v3921
      %3923 = vmatprep.mubr.f32.mxu0 0.0
      %3924 = vmatmul.mubr.f32.gmra.mxu0 %v2506
      %v3925 = vpop.f32.mrf.mxu0
      %v3926 = vadd.f32 %v1287, %v3925
      %v3927 = vpop.f32.mrf.mxu0
      %v3928 = vadd.f32 %v1288, %v3927
      %3929 = vmatprep.mubr.f32.mxu0 0.0
      %3930 = vmatmul.mubr.f32.gmra.mxu0 %v2509
      %v3931 = vpop.f32.mrf.mxu0
      %v3932 = vadd.f32 %v1289, %v3931
      %v3933 = vpop.f32.mrf.mxu0
      %v3934 = vadd.f32 %v1290, %v3933
      %3935 = vmatprep.mubr.f32.mxu0 0.0
      %3936 = vmatmul.mubr.f32.gmra.mxu0 %v2512
      %v3937 = vpop.f32.mrf.mxu0
      %v3938 = vadd.f32 %v1291, %v3937
      %v3939 = vpop.f32.mrf.mxu0
      %v3940 = vadd.f32 %v1292, %v3939
      %3941 = vmatprep.mubr.f32.mxu0 0.0
      %3942 = vmatmul.mubr.f32.gmra.mxu0 %v2515
      %v3943 = vpop.f32.mrf.mxu0
      %v3944 = vadd.f32 %v1293, %v3943
      %v3945 = vpop.f32.mrf.mxu0
      %v3946 = vadd.f32 %v1294, %v3945
      %3947 = vmatprep.mubr.f32.mxu0 0.0
      %3948 = vmatmul.mubr.f32.gmra.mxu0 %v2518
      %v3949 = vpop.f32.mrf.mxu0
      %v3950 = vadd.f32 %v1295, %v3949
      %v3951 = vpop.f32.mrf.mxu0
      %v3952 = vadd.f32 %v1296, %v3951
      %3953 = vmatprep.mubr.f32.mxu0 0.0
      %3954 = vmatmul.mubr.f32.gmra.mxu0 %v2521
      %v3955 = vpop.f32.mrf.mxu0
      %v3956 = vadd.f32 %v1297, %v3955
      %v3957 = vpop.f32.mrf.mxu0
      %v3958 = vadd.f32 %v1298, %v3957
      %3959 = vmatprep.mubr.f32.mxu0 0.0
      %3960 = vmatmul.mubr.f32.gmra.mxu0 %v2524
      %v3961 = vpop.f32.mrf.mxu0
      %v3962 = vadd.f32 %v1299, %v3961
      %v3963 = vpop.f32.mrf.mxu0
      %v3964 = vadd.f32 %v1300, %v3963
      %3965 = vmatprep.mubr.f32.mxu0 0.0
      %3966 = vmatmul.mubr.f32.gmra.mxu0 %v2527
      %v3967 = vpop.f32.mrf.mxu0
      %v3968 = vadd.f32 %v1301, %v3967
      %v3969 = vpop.f32.mrf.mxu0
      %v3970 = vadd.f32 %v1302, %v3969
      %3971 = vmatprep.mubr.f32.mxu0 0.0
      %3972 = vmatmul.mubr.f32.gmra.mxu0 %v2530
      %v3973 = vpop.f32.mrf.mxu0
      %v3974 = vadd.f32 %v1303, %v3973
      %v3975 = vpop.f32.mrf.mxu0
      %v3976 = vadd.f32 %v1304, %v3975
      %3977 = vmatprep.mubr.f32.mxu0 0.0
      %3978 = vmatmul.mubr.f32.gmra.mxu0 %v2533
      %v3979 = vpop.f32.mrf.mxu0
      %v3980 = vadd.f32 %v1305, %v3979
      %v3981 = vpop.f32.mrf.mxu0
      %v3982 = vadd.f32 %v1306, %v3981
      %3983 = vmatprep.mubr.f32.mxu0 0.0
      %3984 = vmatmul.mubr.f32.gmra.mxu0 %v2536
      %v3985 = vpop.f32.mrf.mxu0
      %v3986 = vadd.f32 %v1307, %v3985
      %v3987 = vpop.f32.mrf.mxu0
      %v3988 = vadd.f32 %v1308, %v3987
      %3989 = vmatprep.mubr.f32.mxu0 0.0
      %3990 = vmatmul.mubr.f32.gmra.mxu0 %v2539
      %v3991 = vpop.f32.mrf.mxu0
      %v3992 = vadd.f32 %v1309, %v3991
      %v3993 = vpop.f32.mrf.mxu0
      %v3994 = vadd.f32 %v1310, %v3993
      %3995 = vmatprep.mubr.f32.mxu0 0.0
      %3996 = vmatmul.mubr.f32.gmra.mxu0 %v2542
      %v3997 = vpop.f32.mrf.mxu0
      %v3998 = vadd.f32 %v1311, %v3997
      %v3999 = vpop.f32.mrf.mxu0
      %v4000 = vadd.f32 %v1312, %v3999
      %4001 = vmatprep.mubr.f32.mxu0 0.0
      %4002 = vmatmul.mubr.f32.gmra.mxu0 %v2545
      %v4003 = vpop.f32.mrf.mxu0
      %v4004 = vadd.f32 %v1313, %v4003
      %v4005 = vpop.f32.mrf.mxu0
      %v4006 = vadd.f32 %v1314, %v4005
      %4007 = vmatprep.mubr.f32.mxu0 0.0
      %4008 = vmatmul.mubr.f32.gmra.mxu0 %v2548
      %v4009 = vpop.f32.mrf.mxu0
      %v4010 = vadd.f32 %v1315, %v4009
      %v4011 = vpop.f32.mrf.mxu0
      %v4012 = vadd.f32 %v1316, %v4011
      %4013 = vmatprep.mubr.f32.mxu0 0.0
      %4014 = vmatmul.mubr.f32.gmra.mxu0 %v2551
      %v4015 = vpop.f32.mrf.mxu0
      %v4016 = vadd.f32 %v1317, %v4015
      %v4017 = vpop.f32.mrf.mxu0
      %v4018 = vadd.f32 %v1318, %v4017
      %4019 = vmatprep.mubr.f32.mxu0 0.0
      %4020 = vmatmul.mubr.f32.gmra.mxu0 %v2554
      %v4021 = vpop.f32.mrf.mxu0
      %v4022 = vadd.f32 %v1319, %v4021
      %v4023 = vpop.f32.mrf.mxu0
      %v4024 = vadd.f32 %v1320, %v4023
      %4025 = vmatprep.mubr.f32.mxu0 0.0
      %4026 = vmatmul.mubr.f32.gmra.mxu0 %v2557
      %v4027 = vpop.f32.mrf.mxu0
      %v4028 = vadd.f32 %v1321, %v4027
      %v4029 = vpop.f32.mrf.mxu0
      %v4030 = vadd.f32 %v1322, %v4029
      %4031 = vmatprep.mubr.f32.mxu0 0.0
      %4032 = vmatmul.mubr.f32.gmra.mxu0 %v2560
      %v4033 = vpop.f32.mrf.mxu0
      %v4034 = vadd.f32 %v1323, %v4033
      %v4035 = vpop.f32.mrf.mxu0
      %v4036 = vadd.f32 %v1324, %v4035
      %4037 = vmatprep.mubr.f32.mxu0 0.0
      %4038 = vmatmul.mubr.f32.gmra.mxu0 %v2563
      %v4039 = vpop.f32.mrf.mxu0
      %v4040 = vadd.f32 %v1325, %v4039
      %v4041 = vpop.f32.mrf.mxu0
      %v4042 = vadd.f32 %v1326, %v4041
      %4043 = vmatprep.mubr.f32.mxu0 0.0
      %4044 = vmatmul.mubr.f32.gmra.mxu0 %v2566
      %v4045 = vpop.f32.mrf.mxu0
      %v4046 = vadd.f32 %v1327, %v4045
      %v4047 = vpop.f32.mrf.mxu0
      %v4048 = vadd.f32 %v1328, %v4047
      %4049 = vmatprep.mubr.f32.mxu0 0.0
      %4050 = vmatmul.mubr.f32.gmra.mxu0 %v2569
      %v4051 = vpop.f32.mrf.mxu0
      %v4052 = vadd.f32 %v1329, %v4051
      %v4053 = vpop.f32.mrf.mxu0
      %v4054 = vadd.f32 %v1330, %v4053
      %4055 = vmatprep.mubr.f32.mxu0 0.0
      %4056 = vmatmul.mubr.f32.gmra.mxu0 %v2572
      %v4057 = vpop.f32.mrf.mxu0
      %v4058 = vadd.f32 %v1331, %v4057
      %v4059 = vpop.f32.mrf.mxu0
      %v4060 = vadd.f32 %v1332, %v4059
      %4061 = vmatprep.mubr.f32.mxu0 0.0
      %4062 = vmatmul.mubr.f32.gmra.mxu0 %v2575
      %v4063 = vpop.f32.mrf.mxu0
      %v4064 = vadd.f32 %v1333, %v4063
      %v4065 = vpop.f32.mrf.mxu0
      %v4066 = vadd.f32 %v1334, %v4065
      %4067 = vmatprep.mubr.f32.mxu0 0.0
      %4068 = vmatmul.mubr.f32.gmra.mxu0 %v2578
      %v4069 = vpop.f32.mrf.mxu0
      %v4070 = vadd.f32 %v1335, %v4069
      %v4071 = vpop.f32.mrf.mxu0
      %v4072 = vadd.f32 %v1336, %v4071
      %4073 = vmatprep.mubr.f32.mxu0 0.0
      %4074 = vmatmul.mubr.f32.gmra.mxu0 %v2581
      %v4075 = vpop.f32.mrf.mxu0
      %v4076 = vadd.f32 %v1337, %v4075
      %v4077 = vpop.f32.mrf.mxu0
      %v4078 = vadd.f32 %v1338, %v4077
      %4079 = vmatprep.mubr.f32.mxu0 0.0
      %4080 = vmatmul.mubr.f32.gmra.mxu0 %v2584
      %v4081 = vpop.f32.mrf.mxu0
      %v4082 = vadd.f32 %v1339, %v4081
      %v4083 = vpop.f32.mrf.mxu0
      %v4084 = vadd.f32 %v1340, %v4083
      %4085 = vmatprep.mubr.f32.mxu0 0.0
      %4086 = vmatmul.mubr.f32.gmra.mxu0 %v2587
      %v4087 = vpop.f32.mrf.mxu0
      %v4088 = vadd.f32 %v1341, %v4087
      %v4089 = vpop.f32.mrf.mxu0
      %v4090 = vadd.f32 %v1342, %v4089
      %4091 = vmatprep.mubr.f32.mxu0 0.0
      %4092 = vmatmul.mubr.f32.gmra.mxu0 %v2590
      %v4093 = vpop.f32.mrf.mxu0
      %v4094 = vadd.f32 %v1343, %v4093
      %v4095 = vpop.f32.mrf.mxu0
      %v4096 = vadd.f32 %v1344, %v4095
      %4097 = vmatprep.mubr.f32.mxu0 0.0
      %4098 = vmatmul.mubr.f32.gmra.mxu0 %v2593
      %v4099 = vpop.f32.mrf.mxu0
      %v4100 = vadd.f32 %v1345, %v4099
      %v4101 = vpop.f32.mrf.mxu0
      %v4102 = vadd.f32 %v1346, %v4101
      %4103 = vmatprep.mubr.f32.mxu0 0.0
      %4104 = vmatmul.mubr.f32.gmra.mxu0 %v2596
      %v4105 = vpop.f32.mrf.mxu0
      %v4106 = vadd.f32 %v1347, %v4105
      %v4107 = vpop.f32.mrf.mxu0
      %v4108 = vadd.f32 %v1348, %v4107
      %4109 = vmatprep.mubr.f32.mxu0 0.0
      %4110 = vmatmul.mubr.f32.gmra.mxu0 %v2599
      %v4111 = vpop.f32.mrf.mxu0
      %v4112 = vadd.f32 %v1349, %v4111
      %v4113 = vpop.f32.mrf.mxu0
      %v4114 = vadd.f32 %v1350, %v4113
      %4115 = vmatprep.mubr.f32.mxu0 0.0
      %4116 = vmatmul.mubr.f32.gmra.mxu0 %v2602
      %v4117 = vpop.f32.mrf.mxu0
      %v4118 = vadd.f32 %v1351, %v4117
      %v4119 = vpop.f32.mrf.mxu0
      %v4120 = vadd.f32 %v1352, %v4119
      %4121 = vmatprep.mubr.f32.mxu0 0.0
      %4122 = vmatmul.mubr.f32.gmra.mxu0 %v2605
      %v4123 = vpop.f32.mrf.mxu0
      %v4124 = vadd.f32 %v1353, %v4123
      %v4125 = vpop.f32.mrf.mxu0
      %v4126 = vadd.f32 %v1354, %v4125
      %4127 = vmatprep.mubr.f32.mxu0 0.0
      %4128 = vmatmul.mubr.f32.gmra.mxu0 %v2608
      %v4129 = vpop.f32.mrf.mxu0
      %v4130 = vadd.f32 %v1355, %v4129
      %v4131 = vpop.f32.mrf.mxu0
      %v4132 = vadd.f32 %v1356, %v4131
      %4133 = vmatprep.mubr.f32.mxu0 0.0
      %4134 = vmatmul.mubr.f32.gmra.mxu0 %v2611
      %v4135 = vpop.f32.mrf.mxu0
      %v4136 = vadd.f32 %v1357, %v4135
      %v4137 = vpop.f32.mrf.mxu0
      %v4138 = vadd.f32 %v1358, %v4137
      %4139 = vmatprep.mubr.f32.mxu0 0.0
      %4140 = vmatmul.mubr.f32.gmra.mxu0 %v2614
      %v4141 = vpop.f32.mrf.mxu0
      %v4142 = vadd.f32 %v1359, %v4141
      %v4143 = vpop.f32.mrf.mxu0
      %v4144 = vadd.f32 %v1360, %v4143
      %4145 = vmatprep.mubr.f32.mxu0 0.0
      %4146 = vmatmul.mubr.f32.gmra.mxu0 %v2617
      %v4147 = vpop.f32.mrf.mxu0
      %v4148 = vadd.f32 %v1361, %v4147
      %v4149 = vpop.f32.mrf.mxu0
      %v4150 = vadd.f32 %v1362, %v4149
      %4151 = vmatprep.mubr.f32.mxu0 0.0
      %4152 = vmatmul.mubr.f32.gmra.mxu0 %v2620
      %v4153 = vpop.f32.mrf.mxu0
      %v4154 = vadd.f32 %v1363, %v4153
      %v4155 = vpop.f32.mrf.mxu0
      %v4156 = vadd.f32 %v1364, %v4155
      %4157 = vmatprep.mubr.f32.mxu0 0.0
      %4158 = vmatmul.mubr.f32.gmra.mxu0 %v2623
      %v4159 = vpop.f32.mrf.mxu0
      %v4160 = vadd.f32 %v1365, %v4159
      %v4161 = vpop.f32.mrf.mxu0
      %v4162 = vadd.f32 %v1366, %v4161
      %4163 = vmatprep.mubr.f32.mxu0 0.0
      %4164 = vmatmul.mubr.f32.gmra.mxu0 %v2626
      %v4165 = vpop.f32.mrf.mxu0
      %v4166 = vadd.f32 %v1367, %v4165
      %v4167 = vpop.f32.mrf.mxu0
      %v4168 = vadd.f32 %v1368, %v4167
      %4169 = vmatprep.mubr.f32.mxu0 0.0
      %4170 = vmatmul.mubr.f32.gmra.mxu0 %v2629
      %v4171 = vpop.f32.mrf.mxu0
      %v4172 = vadd.f32 %v1369, %v4171
      %v4173 = vpop.f32.mrf.mxu0
      %v4174 = vadd.f32 %v1370, %v4173
      %4175 = vmatprep.mubr.f32.mxu0 0.0
      %4176 = vmatmul.mubr.f32.gmra.mxu0 %v2632
      %v4177 = vpop.f32.mrf.mxu0
      %v4178 = vadd.f32 %v1371, %v4177
      %v4179 = vpop.f32.mrf.mxu0
      %v4180 = vadd.f32 %v1372, %v4179
      %4181 = vmatprep.mubr.f32.mxu0 0.0
      %4182 = vmatmul.mubr.f32.gmra.mxu0 %v2635
      %v4183 = vpop.f32.mrf.mxu0
      %v4184 = vadd.f32 %v1373, %v4183
      %v4185 = vpop.f32.mrf.mxu0
      %v4186 = vadd.f32 %v1374, %v4185
      %4187 = vmatprep.mubr.f32.mxu0 0.0
      %4188 = vmatmul.mubr.f32.gmra.mxu0 %v2638
      %v4189 = vpop.f32.mrf.mxu0
      %v4190 = vadd.f32 %v1375, %v4189
      %v4191 = vpop.f32.mrf.mxu0
      %v4192 = vadd.f32 %v1376, %v4191
      %4193 = vmatprep.mubr.f32.mxu0 0.0
      %4194 = vmatmul.mubr.f32.gmra.mxu0 %v2641
      %v4195 = vpop.f32.mrf.mxu0
      %v4196 = vadd.f32 %v1377, %v4195
      %v4197 = vpop.f32.mrf.mxu0
      %v4198 = vadd.f32 %v1378, %v4197
      %4199 = vmatprep.mubr.f32.mxu0 0.0
      %4200 = vmatmul.mubr.f32.gmra.mxu0 %v2644
      %v4201 = vpop.f32.mrf.mxu0
      %v4202 = vadd.f32 %v1379, %v4201
      %v4203 = vpop.f32.mrf.mxu0
      %v4204 = vadd.f32 %v1380, %v4203
      %4205 = vmatprep.mubr.f32.mxu0 0.0
      %4206 = vmatmul.mubr.f32.gmra.mxu0 %v2647
      %v4207 = vpop.f32.mrf.mxu0
      %v4208 = vadd.f32 %v1381, %v4207
      %v4209 = vpop.f32.mrf.mxu0
      %v4210 = vadd.f32 %v1382, %v4209
      %4211 = vmatprep.mubr.f32.mxu0 0.0
      %4212 = vmatmul.mubr.f32.gmra.mxu0 %v2650
      %v4213 = vpop.f32.mrf.mxu0
      %v4214 = vadd.f32 %v1383, %v4213
      %v4215 = vpop.f32.mrf.mxu0
      %v4216 = vadd.f32 %v1384, %v4215
      %4217 = vmatprep.mubr.f32.mxu0 0.0
      %4218 = vmatmul.mubr.f32.gmra.mxu0 %v2653
      %v4219 = vpop.f32.mrf.mxu0
      %v4220 = vadd.f32 %v1385, %v4219
      %v4221 = vpop.f32.mrf.mxu0
      %v4222 = vadd.f32 %v1386, %v4221
      %4223 = vmatprep.mubr.f32.mxu0 0.0
      %4224 = vmatmul.mubr.f32.gmra.mxu0 %v2656
      %v4225 = vpop.f32.mrf.mxu0
      %v4226 = vadd.f32 %v1387, %v4225
      %v4227 = vpop.f32.mrf.mxu0
      %v4228 = vadd.f32 %v1388, %v4227
      %4229 = vmatprep.mubr.f32.mxu0 0.0
      %4230 = vmatmul.mubr.f32.gmra.mxu0 %v2659
      %v4231 = vpop.f32.mrf.mxu0
      %v4232 = vadd.f32 %v1389, %v4231
      %v4233 = vpop.f32.mrf.mxu0
      %v4234 = vadd.f32 %v1390, %v4233
      %4235 = vmatprep.mubr.f32.mxu0 0.0
      %4236 = vmatmul.mubr.f32.gmra.mxu0 %v2662
      %v4237 = vpop.f32.mrf.mxu0
      %v4238 = vadd.f32 %v1391, %v4237
      %v4239 = vpop.f32.mrf.mxu0
      %v4240 = vadd.f32 %v1392, %v4239
      %4241 = vmatprep.mubr.f32.mxu0 0.0
      %4242 = vmatmul.mubr.f32.gmra.mxu0 %v2665
      %v4243 = vpop.f32.mrf.mxu0
      %v4244 = vadd.f32 %v1393, %v4243
      %v4245 = vpop.f32.mrf.mxu0
      %v4246 = vadd.f32 %v1394, %v4245
      %4247 = vmatprep.mubr.f32.mxu0 0.0
      %4248 = vmatmul.mubr.f32.gmra.mxu0 %v2668
      %v4249 = vpop.f32.mrf.mxu0
      %v4250 = vadd.f32 %v1395, %v4249
      %v4251 = vpop.f32.mrf.mxu0
      %v4252 = vadd.f32 %v1396, %v4251
      %4253 = vmatprep.mubr.f32.mxu0 0.0
      %4254 = vmatmul.mubr.f32.gmra.mxu0 %v2671
      %v4255 = vpop.f32.mrf.mxu0
      %v4256 = vadd.f32 %v1397, %v4255
      %v4257 = vpop.f32.mrf.mxu0
      %v4258 = vadd.f32 %v1398, %v4257
      %4259 = vmatprep.mubr.f32.mxu0 0.0
      %4260 = vmatmul.mubr.f32.gmra.mxu0 %v2674
      %v4261 = vpop.f32.mrf.mxu0
      %v4262 = vadd.f32 %v1399, %v4261
      %v4263 = vpop.f32.mrf.mxu0
      %v4264 = vadd.f32 %v1400, %v4263
      %4265 = vmatprep.mubr.f32.mxu0 0.0
      %4266 = vmatmul.mubr.f32.gmra.mxu0 %v2677
      %v4267 = vpop.f32.mrf.mxu0
      %v4268 = vadd.f32 %v1401, %v4267
      %v4269 = vpop.f32.mrf.mxu0
      %v4270 = vadd.f32 %v1402, %v4269
      %4271 = vmatprep.mubr.f32.mxu0 0.0
      %4272 = vmatmul.mubr.f32.gmra.mxu0 %v2680
      %v4273 = vpop.f32.mrf.mxu0
      %v4274 = vadd.f32 %v1403, %v4273
      %v4275 = vpop.f32.mrf.mxu0
      %v4276 = vadd.f32 %v1404, %v4275
      %4277 = vmatprep.mubr.f32.mxu0 0.0
      %4278 = vmatmul.mubr.f32.gmra.mxu0 %v2683
      %v4279 = vpop.f32.mrf.mxu0
      %v4280 = vadd.f32 %v1405, %v4279
      %v4281 = vpop.f32.mrf.mxu0
      %v4282 = vadd.f32 %v1406, %v4281
      %4283 = vmatprep.mubr.f32.mxu0 0.0
      %4284 = vmatmul.mubr.f32.gmra.mxu0 %v2686
      %v4285 = vpop.f32.mrf.mxu0
      %v4286 = vadd.f32 %v1407, %v4285
      %v4287 = vpop.f32.mrf.mxu0
      %v4288 = vadd.f32 %v1408, %v4287
      %4289 = vmatprep.mubr.f32.mxu0 0.0
      %4290 = vmatmul.mubr.f32.gmra.mxu0 %v2689
      %v4291 = vpop.f32.mrf.mxu0
      %v4292 = vadd.f32 %v1409, %v4291
      %v4293 = vpop.f32.mrf.mxu0
      %v4294 = vadd.f32 %v1410, %v4293
      %4295 = vmatprep.mubr.f32.mxu0 0.0
      %4296 = vmatmul.mubr.f32.gmra.mxu0 %v2692
      %v4297 = vpop.f32.mrf.mxu0
      %v4298 = vadd.f32 %v1411, %v4297
      %v4299 = vpop.f32.mrf.mxu0
      %v4300 = vadd.f32 %v1412, %v4299
      %4301 = vdwg.mxu0
      %4302 = vst [vmem:[%s279] sm:$0xff] %v2768
      %4303 = vst [vmem:[%s279 + $0x8] sm:$0xff] %v2770
      %4304 = vst [vmem:[%s279 + $0x10] sm:$0xff] %v2774
      %4305 = vst [vmem:[%s279 + $0x18] sm:$0xff] %v2776
      %4306 = vst [vmem:[%s279 + $0x20] sm:$0xff] %v2780
      %4307 = vst [vmem:[%s279 + $0x28] sm:$0xff] %v2782
      %4308 = vst [vmem:[%s279 + $0x30] sm:$0xff] %v2786
      %4309 = vst [vmem:[%s279 + $0x38] sm:$0xff] %v2788
      %4310 = vst [vmem:[%s279 + $0x40] sm:$0xff] %v2792
      %4311 = vst [vmem:[%s279 + $0x48] sm:$0xff] %v2794
      %4312 = vst [vmem:[%s279 + $0x50] sm:$0xff] %v2798
      %4313 = vst [vmem:[%s279 + $0x58] sm:$0xff] %v2800
      %4314 = vst [vmem:[%s279 + $0x60] sm:$0xff] %v2804
      %4315 = vst [vmem:[%s279 + $0x68] sm:$0xff] %v2806
      %4316 = vst [vmem:[%s279 + $0x70] sm:$0xff] %v2810
      %4317 = vst [vmem:[%s279 + $0x78] sm:$0xff] %v2812
      %4318 = vst [vmem:[%s279 + $0x80] sm:$0xff] %v2816
      %4319 = vst [vmem:[%s279 + $0x88] sm:$0xff] %v2818
      %4320 = vst [vmem:[%s279 + $0x90] sm:$0xff] %v2822
      %4321 = vst [vmem:[%s279 + $0x98] sm:$0xff] %v2824
      %4322 = vst [vmem:[%s279 + $0xa0] sm:$0xff] %v2828
      %4323 = vst [vmem:[%s279 + $0xa8] sm:$0xff] %v2830
      %4324 = vst [vmem:[%s279 + $0xb0] sm:$0xff] %v2834
      %4325 = vst [vmem:[%s279 + $0xb8] sm:$0xff] %v2836
      %4326 = vst [vmem:[%s279 + $0xc0] sm:$0xff] %v2840
      %4327 = vst [vmem:[%s279 + $0xc8] sm:$0xff] %v2842
      %4328 = vst [vmem:[%s279 + $0xd0] sm:$0xff] %v2846
      %4329 = vst [vmem:[%s279 + $0xd8] sm:$0xff] %v2848
      %4330 = vst [vmem:[%s279 + $0xe0] sm:$0xff] %v2852
      %4331 = vst [vmem:[%s279 + $0xe8] sm:$0xff] %v2854
      %4332 = vst [vmem:[%s279 + $0xf0] sm:$0xff] %v2858
      %4333 = vst [vmem:[%s279 + $0xf8] sm:$0xff] %v2860
      %4334 = vst [vmem:[%s279 + $0x100] sm:$0xff] %v2864
      %4335 = vst [vmem:[%s279 + $0x108] sm:$0xff] %v2866
      %4336 = vst [vmem:[%s279 + $0x110] sm:$0xff] %v2870
      %4337 = vst [vmem:[%s279 + $0x118] sm:$0xff] %v2872
      %4338 = vst [vmem:[%s279 + $0x120] sm:$0xff] %v2876
      %4339 = vst [vmem:[%s279 + $0x128] sm:$0xff] %v2878
      %4340 = vst [vmem:[%s279 + $0x130] sm:$0xff] %v2882
      %4341 = vst [vmem:[%s279 + $0x138] sm:$0xff] %v2884
      %4342 = vst [vmem:[%s279 + $0x140] sm:$0xff] %v2888
      %4343 = vst [vmem:[%s279 + $0x148] sm:$0xff] %v2890
      %4344 = vst [vmem:[%s279 + $0x150] sm:$0xff] %v2894
      %4345 = vst [vmem:[%s279 + $0x158] sm:$0xff] %v2896
      %4346 = vst [vmem:[%s279 + $0x160] sm:$0xff] %v2900
      %4347 = vst [vmem:[%s279 + $0x168] sm:$0xff] %v2902
      %4348 = vst [vmem:[%s279 + $0x170] sm:$0xff] %v2906
      %4349 = vst [vmem:[%s279 + $0x178] sm:$0xff] %v2908
      %4350 = vst [vmem:[%s279 + $0x180] sm:$0xff] %v2912
      %4351 = vst [vmem:[%s279 + $0x188] sm:$0xff] %v2914
      %4352 = vst [vmem:[%s279 + $0x190] sm:$0xff] %v2918
      %4353 = vst [vmem:[%s279 + $0x198] sm:$0xff] %v2920
      %4354 = vst [vmem:[%s279 + $0x1a0] sm:$0xff] %v2924
      %4355 = vst [vmem:[%s279 + $0x1a8] sm:$0xff] %v2926
      %4356 = vst [vmem:[%s279 + $0x1b0] sm:$0xff] %v2930
      %4357 = vst [vmem:[%s279 + $0x1b8] sm:$0xff] %v2932
      %4358 = vst [vmem:[%s279 + $0x1c0] sm:$0xff] %v2936
      %4359 = vst [vmem:[%s279 + $0x1c8] sm:$0xff] %v2938
      %4360 = vst [vmem:[%s279 + $0x1d0] sm:$0xff] %v2942
      %4361 = vst [vmem:[%s279 + $0x1d8] sm:$0xff] %v2944
      %4362 = vst [vmem:[%s279 + $0x1e0] sm:$0xff] %v2948
      %4363 = vst [vmem:[%s279 + $0x1e8] sm:$0xff] %v2950
      %4364 = vst [vmem:[%s279 + $0x1f0] sm:$0xff] %v2954
      %4365 = vst [vmem:[%s279 + $0x1f8] sm:$0xff] %v2956
      %4366 = vst [vmem:[%s279 + $0x200] sm:$0xff] %v2960
      %4367 = vst [vmem:[%s279 + $0x208] sm:$0xff] %v2962
      %4368 = vst [vmem:[%s279 + $0x210] sm:$0xff] %v2966
      %4369 = vst [vmem:[%s279 + $0x218] sm:$0xff] %v2968
      %4370 = vst [vmem:[%s279 + $0x220] sm:$0xff] %v2972
      %4371 = vst [vmem:[%s279 + $0x228] sm:$0xff] %v2974
      %4372 = vst [vmem:[%s279 + $0x230] sm:$0xff] %v2978
      %4373 = vst [vmem:[%s279 + $0x238] sm:$0xff] %v2980
      %4374 = vst [vmem:[%s279 + $0x240] sm:$0xff] %v2984
      %4375 = vst [vmem:[%s279 + $0x248] sm:$0xff] %v2986
      %4376 = vst [vmem:[%s279 + $0x250] sm:$0xff] %v2990
      %4377 = vst [vmem:[%s279 + $0x258] sm:$0xff] %v2992
      %4378 = vst [vmem:[%s279 + $0x260] sm:$0xff] %v2996
      %4379 = vst [vmem:[%s279 + $0x268] sm:$0xff] %v2998
      %4380 = vst [vmem:[%s279 + $0x270] sm:$0xff] %v3002
      %4381 = vst [vmem:[%s279 + $0x278] sm:$0xff] %v3004
      %4382 = vst [vmem:[%s279 + $0x280] sm:$0xff] %v3008
      %4383 = vst [vmem:[%s279 + $0x288] sm:$0xff] %v3010
      %4384 = vst [vmem:[%s279 + $0x290] sm:$0xff] %v3014
      %4385 = vst [vmem:[%s279 + $0x298] sm:$0xff] %v3016
      %4386 = vst [vmem:[%s279 + $0x2a0] sm:$0xff] %v3020
      %4387 = vst [vmem:[%s279 + $0x2a8] sm:$0xff] %v3022
      %4388 = vst [vmem:[%s279 + $0x2b0] sm:$0xff] %v3026
      %4389 = vst [vmem:[%s279 + $0x2b8] sm:$0xff] %v3028
      %4390 = vst [vmem:[%s279 + $0x2c0] sm:$0xff] %v3032
      %4391 = vst [vmem:[%s279 + $0x2c8] sm:$0xff] %v3034
      %4392 = vst [vmem:[%s279 + $0x2d0] sm:$0xff] %v3038
      %4393 = vst [vmem:[%s279 + $0x2d8] sm:$0xff] %v3040
      %4394 = vst [vmem:[%s279 + $0x2e0] sm:$0xff] %v3044
      %4395 = vst [vmem:[%s279 + $0x2e8] sm:$0xff] %v3046
      %4396 = vst [vmem:[%s279 + $0x2f0] sm:$0xff] %v3050
      %4397 = vst [vmem:[%s279 + $0x2f8] sm:$0xff] %v3052
      %4398 = vst [vmem:[%s279 + $0x300] sm:$0xff] %v3056
      %4399 = vst [vmem:[%s279 + $0x308] sm:$0xff] %v3058
      %4400 = vst [vmem:[%s279 + $0x310] sm:$0xff] %v3062
      %4401 = vst [vmem:[%s279 + $0x318] sm:$0xff] %v3064
      %4402 = vst [vmem:[%s279 + $0x320] sm:$0xff] %v3068
      %4403 = vst [vmem:[%s279 + $0x328] sm:$0xff] %v3070
      %4404 = vst [vmem:[%s279 + $0x330] sm:$0xff] %v3074
      %4405 = vst [vmem:[%s279 + $0x338] sm:$0xff] %v3076
      %4406 = vst [vmem:[%s279 + $0x340] sm:$0xff] %v3080
      %4407 = vst [vmem:[%s279 + $0x348] sm:$0xff] %v3082
      %4408 = vst [vmem:[%s279 + $0x350] sm:$0xff] %v3086
      %4409 = vst [vmem:[%s279 + $0x358] sm:$0xff] %v3088
      %4410 = vst [vmem:[%s279 + $0x360] sm:$0xff] %v3092
      %4411 = vst [vmem:[%s279 + $0x368] sm:$0xff] %v3094
      %4412 = vst [vmem:[%s279 + $0x370] sm:$0xff] %v3098
      %4413 = vst [vmem:[%s279 + $0x378] sm:$0xff] %v3100
      %4414 = vst [vmem:[%s279 + $0x380] sm:$0xff] %v3104
      %4415 = vst [vmem:[%s279 + $0x388] sm:$0xff] %v3106
      %4416 = vst [vmem:[%s279 + $0x390] sm:$0xff] %v3110
      %4417 = vst [vmem:[%s279 + $0x398] sm:$0xff] %v3112
      %4418 = vst [vmem:[%s279 + $0x3a0] sm:$0xff] %v3116
      %4419 = vst [vmem:[%s279 + $0x3a8] sm:$0xff] %v3118
      %4420 = vst [vmem:[%s279 + $0x3b0] sm:$0xff] %v3122
      %4421 = vst [vmem:[%s279 + $0x3b8] sm:$0xff] %v3124
      %4422 = vst [vmem:[%s279 + $0x3c0] sm:$0xff] %v3128
      %4423 = vst [vmem:[%s279 + $0x3c8] sm:$0xff] %v3130
      %4424 = vst [vmem:[%s279 + $0x3d0] sm:$0xff] %v3134
      %4425 = vst [vmem:[%s279 + $0x3d8] sm:$0xff] %v3136
      %4426 = vst [vmem:[%s279 + $0x3e0] sm:$0xff] %v3140
      %4427 = vst [vmem:[%s279 + $0x3e8] sm:$0xff] %v3142
      %4428 = vst [vmem:[%s279 + $0x3f0] sm:$0xff] %v3146
      %4429 = vst [vmem:[%s279 + $0x3f8] sm:$0xff] %v3148
      %4430 = vst [vmem:[%s279 + $0x400] sm:$0xff] %v3152
      %4431 = vst [vmem:[%s279 + $0x408] sm:$0xff] %v3154
      %4432 = vst [vmem:[%s279 + $0x410] sm:$0xff] %v3158
      %4433 = vst [vmem:[%s279 + $0x418] sm:$0xff] %v3160
      %4434 = vst [vmem:[%s279 + $0x420] sm:$0xff] %v3164
      %4435 = vst [vmem:[%s279 + $0x428] sm:$0xff] %v3166
      %4436 = vst [vmem:[%s279 + $0x430] sm:$0xff] %v3170
      %4437 = vst [vmem:[%s279 + $0x438] sm:$0xff] %v3172
      %4438 = vst [vmem:[%s279 + $0x440] sm:$0xff] %v3176
      %4439 = vst [vmem:[%s279 + $0x448] sm:$0xff] %v3178
      %4440 = vst [vmem:[%s279 + $0x450] sm:$0xff] %v3182
      %4441 = vst [vmem:[%s279 + $0x458] sm:$0xff] %v3184
      %4442 = vst [vmem:[%s279 + $0x460] sm:$0xff] %v3188
      %4443 = vst [vmem:[%s279 + $0x468] sm:$0xff] %v3190
      %4444 = vst [vmem:[%s279 + $0x470] sm:$0xff] %v3194
      %4445 = vst [vmem:[%s279 + $0x478] sm:$0xff] %v3196
      %4446 = vst [vmem:[%s279 + $0x480] sm:$0xff] %v3200
      %4447 = vst [vmem:[%s279 + $0x488] sm:$0xff] %v3202
      %4448 = vst [vmem:[%s279 + $0x490] sm:$0xff] %v3206
      %4449 = vst [vmem:[%s279 + $0x498] sm:$0xff] %v3208
      %4450 = vst [vmem:[%s279 + $0x4a0] sm:$0xff] %v3212
      %4451 = vst [vmem:[%s279 + $0x4a8] sm:$0xff] %v3214
      %4452 = vst [vmem:[%s279 + $0x4b0] sm:$0xff] %v3218
      %4453 = vst [vmem:[%s279 + $0x4b8] sm:$0xff] %v3220
      %4454 = vst [vmem:[%s279 + $0x4c0] sm:$0xff] %v3224
      %4455 = vst [vmem:[%s279 + $0x4c8] sm:$0xff] %v3226
      %4456 = vst [vmem:[%s279 + $0x4d0] sm:$0xff] %v3230
      %4457 = vst [vmem:[%s279 + $0x4d8] sm:$0xff] %v3232
      %4458 = vst [vmem:[%s279 + $0x4e0] sm:$0xff] %v3236
      %4459 = vst [vmem:[%s279 + $0x4e8] sm:$0xff] %v3238
      %4460 = vst [vmem:[%s279 + $0x4f0] sm:$0xff] %v3242
      %4461 = vst [vmem:[%s279 + $0x4f8] sm:$0xff] %v3244
      %4462 = vst [vmem:[%s279 + $0x500] sm:$0xff] %v3248
      %4463 = vst [vmem:[%s279 + $0x508] sm:$0xff] %v3250
      %4464 = vst [vmem:[%s279 + $0x510] sm:$0xff] %v3254
      %4465 = vst [vmem:[%s279 + $0x518] sm:$0xff] %v3256
      %4466 = vst [vmem:[%s279 + $0x520] sm:$0xff] %v3260
      %4467 = vst [vmem:[%s279 + $0x528] sm:$0xff] %v3262
      %4468 = vst [vmem:[%s279 + $0x530] sm:$0xff] %v3266
      %4469 = vst [vmem:[%s279 + $0x538] sm:$0xff] %v3268
      %4470 = vst [vmem:[%s279 + $0x540] sm:$0xff] %v3272
      %4471 = vst [vmem:[%s279 + $0x548] sm:$0xff] %v3274
      %4472 = vst [vmem:[%s279 + $0x550] sm:$0xff] %v3278
      %4473 = vst [vmem:[%s279 + $0x558] sm:$0xff] %v3280
      %4474 = vst [vmem:[%s279 + $0x560] sm:$0xff] %v3284
      %4475 = vst [vmem:[%s279 + $0x568] sm:$0xff] %v3286
      %4476 = vst [vmem:[%s279 + $0x570] sm:$0xff] %v3290
      %4477 = vst [vmem:[%s279 + $0x578] sm:$0xff] %v3292
      %4478 = vst [vmem:[%s279 + $0x580] sm:$0xff] %v3296
      %4479 = vst [vmem:[%s279 + $0x588] sm:$0xff] %v3298
      %4480 = vst [vmem:[%s279 + $0x590] sm:$0xff] %v3302
      %4481 = vst [vmem:[%s279 + $0x598] sm:$0xff] %v3304
      %4482 = vst [vmem:[%s279 + $0x5a0] sm:$0xff] %v3308
      %4483 = vst [vmem:[%s279 + $0x5a8] sm:$0xff] %v3310
      %4484 = vst [vmem:[%s279 + $0x5b0] sm:$0xff] %v3314
      %4485 = vst [vmem:[%s279 + $0x5b8] sm:$0xff] %v3316
      %4486 = vst [vmem:[%s279 + $0x5c0] sm:$0xff] %v3320
      %4487 = vst [vmem:[%s279 + $0x5c8] sm:$0xff] %v3322
      %4488 = vst [vmem:[%s279 + $0x5d0] sm:$0xff] %v3326
      %4489 = vst [vmem:[%s279 + $0x5d8] sm:$0xff] %v3328
      %4490 = vst [vmem:[%s279 + $0x5e0] sm:$0xff] %v3332
      %4491 = vst [vmem:[%s279 + $0x5e8] sm:$0xff] %v3334
      %4492 = vst [vmem:[%s279 + $0x5f0] sm:$0xff] %v3338
      %4493 = vst [vmem:[%s279 + $0x5f8] sm:$0xff] %v3340
      %4494 = vst [vmem:[%s279 + $0x600] sm:$0xff] %v3344
      %4495 = vst [vmem:[%s279 + $0x608] sm:$0xff] %v3346
      %4496 = vst [vmem:[%s279 + $0x610] sm:$0xff] %v3350
      %4497 = vst [vmem:[%s279 + $0x618] sm:$0xff] %v3352
      %4498 = vst [vmem:[%s279 + $0x620] sm:$0xff] %v3356
      %4499 = vst [vmem:[%s279 + $0x628] sm:$0xff] %v3358
      %4500 = vst [vmem:[%s279 + $0x630] sm:$0xff] %v3362
      %4501 = vst [vmem:[%s279 + $0x638] sm:$0xff] %v3364
      %4502 = vst [vmem:[%s279 + $0x640] sm:$0xff] %v3368
      %4503 = vst [vmem:[%s279 + $0x648] sm:$0xff] %v3370
      %4504 = vst [vmem:[%s279 + $0x650] sm:$0xff] %v3374
      %4505 = vst [vmem:[%s279 + $0x658] sm:$0xff] %v3376
      %4506 = vst [vmem:[%s279 + $0x660] sm:$0xff] %v3380
      %4507 = vst [vmem:[%s279 + $0x668] sm:$0xff] %v3382
      %4508 = vst [vmem:[%s279 + $0x670] sm:$0xff] %v3386
      %4509 = vst [vmem:[%s279 + $0x678] sm:$0xff] %v3388
      %4510 = vst [vmem:[%s279 + $0x680] sm:$0xff] %v3392
      %4511 = vst [vmem:[%s279 + $0x688] sm:$0xff] %v3394
      %4512 = vst [vmem:[%s279 + $0x690] sm:$0xff] %v3398
      %4513 = vst [vmem:[%s279 + $0x698] sm:$0xff] %v3400
      %4514 = vst [vmem:[%s279 + $0x6a0] sm:$0xff] %v3404
      %4515 = vst [vmem:[%s279 + $0x6a8] sm:$0xff] %v3406
      %4516 = vst [vmem:[%s279 + $0x6b0] sm:$0xff] %v3410
      %4517 = vst [vmem:[%s279 + $0x6b8] sm:$0xff] %v3412
      %4518 = vst [vmem:[%s279 + $0x6c0] sm:$0xff] %v3416
      %4519 = vst [vmem:[%s279 + $0x6c8] sm:$0xff] %v3418
      %4520 = vst [vmem:[%s279 + $0x6d0] sm:$0xff] %v3422
      %4521 = vst [vmem:[%s279 + $0x6d8] sm:$0xff] %v3424
      %4522 = vst [vmem:[%s279 + $0x6e0] sm:$0xff] %v3428
      %4523 = vst [vmem:[%s279 + $0x6e8] sm:$0xff] %v3430
      %4524 = vst [vmem:[%s279 + $0x6f0] sm:$0xff] %v3434
      %4525 = vst [vmem:[%s279 + $0x6f8] sm:$0xff] %v3436
      %4526 = vst [vmem:[%s279 + $0x700] sm:$0xff] %v3440
      %4527 = vst [vmem:[%s279 + $0x708] sm:$0xff] %v3442
      %4528 = vst [vmem:[%s279 + $0x710] sm:$0xff] %v3446
      %4529 = vst [vmem:[%s279 + $0x718] sm:$0xff] %v3448
      %4530 = vst [vmem:[%s279 + $0x720] sm:$0xff] %v3452
      %4531 = vst [vmem:[%s279 + $0x728] sm:$0xff] %v3454
      %4532 = vst [vmem:[%s279 + $0x730] sm:$0xff] %v3458
      %4533 = vst [vmem:[%s279 + $0x738] sm:$0xff] %v3460
      %4534 = vst [vmem:[%s279 + $0x740] sm:$0xff] %v3464
      %4535 = vst [vmem:[%s279 + $0x748] sm:$0xff] %v3466
      %4536 = vst [vmem:[%s279 + $0x750] sm:$0xff] %v3470
      %4537 = vst [vmem:[%s279 + $0x758] sm:$0xff] %v3472
      %4538 = vst [vmem:[%s279 + $0x760] sm:$0xff] %v3476
      %4539 = vst [vmem:[%s279 + $0x768] sm:$0xff] %v3478
      %4540 = vst [vmem:[%s279 + $0x770] sm:$0xff] %v3482
      %4541 = vst [vmem:[%s279 + $0x778] sm:$0xff] %v3484
      %4542 = vst [vmem:[%s279 + $0x780] sm:$0xff] %v3488
      %4543 = vst [vmem:[%s279 + $0x788] sm:$0xff] %v3490
      %4544 = vst [vmem:[%s279 + $0x790] sm:$0xff] %v3494
      %4545 = vst [vmem:[%s279 + $0x798] sm:$0xff] %v3496
      %4546 = vst [vmem:[%s279 + $0x7a0] sm:$0xff] %v3500
      %4547 = vst [vmem:[%s279 + $0x7a8] sm:$0xff] %v3502
      %4548 = vst [vmem:[%s279 + $0x7b0] sm:$0xff] %v3506
      %4549 = vst [vmem:[%s279 + $0x7b8] sm:$0xff] %v3508
      %4550 = vst [vmem:[%s279 + $0x7c0] sm:$0xff] %v3512
      %4551 = vst [vmem:[%s279 + $0x7c8] sm:$0xff] %v3514
      %4552 = vst [vmem:[%s279 + $0x7d0] sm:$0xff] %v3518
      %4553 = vst [vmem:[%s279 + $0x7d8] sm:$0xff] %v3520
      %4554 = vst [vmem:[%s279 + $0x7e0] sm:$0xff] %v3524
      %4555 = vst [vmem:[%s279 + $0x7e8] sm:$0xff] %v3526
      %4556 = vst [vmem:[%s279 + $0x7f0] sm:$0xff] %v3530
      %4557 = vst [vmem:[%s279 + $0x7f8] sm:$0xff] %v3532
      %4558 = vst [vmem:[%s279 + $0x800] sm:$0xff] %v3536
      %4559 = vst [vmem:[%s279 + $0x808] sm:$0xff] %v3538
      %4560 = vst [vmem:[%s279 + $0x810] sm:$0xff] %v3542
      %4561 = vst [vmem:[%s279 + $0x818] sm:$0xff] %v3544
      %4562 = vst [vmem:[%s279 + $0x820] sm:$0xff] %v3548
      %4563 = vst [vmem:[%s279 + $0x828] sm:$0xff] %v3550
      %4564 = vst [vmem:[%s279 + $0x830] sm:$0xff] %v3554
      %4565 = vst [vmem:[%s279 + $0x838] sm:$0xff] %v3556
      %4566 = vst [vmem:[%s279 + $0x840] sm:$0xff] %v3560
      %4567 = vst [vmem:[%s279 + $0x848] sm:$0xff] %v3562
      %4568 = vst [vmem:[%s279 + $0x850] sm:$0xff] %v3566
      %4569 = vst [vmem:[%s279 + $0x858] sm:$0xff] %v3568
      %4570 = vst [vmem:[%s279 + $0x860] sm:$0xff] %v3572
      %4571 = vst [vmem:[%s279 + $0x868] sm:$0xff] %v3574
      %4572 = vst [vmem:[%s279 + $0x870] sm:$0xff] %v3578
      %4573 = vst [vmem:[%s279 + $0x878] sm:$0xff] %v3580
      %4574 = vst [vmem:[%s279 + $0x880] sm:$0xff] %v3584
      %4575 = vst [vmem:[%s279 + $0x888] sm:$0xff] %v3586
      %4576 = vst [vmem:[%s279 + $0x890] sm:$0xff] %v3590
      %4577 = vst [vmem:[%s279 + $0x898] sm:$0xff] %v3592
      %4578 = vst [vmem:[%s279 + $0x8a0] sm:$0xff] %v3596
      %4579 = vst [vmem:[%s279 + $0x8a8] sm:$0xff] %v3598
      %4580 = vst [vmem:[%s279 + $0x8b0] sm:$0xff] %v3602
      %4581 = vst [vmem:[%s279 + $0x8b8] sm:$0xff] %v3604
      %4582 = vst [vmem:[%s279 + $0x8c0] sm:$0xff] %v3608
      %4583 = vst [vmem:[%s279 + $0x8c8] sm:$0xff] %v3610
      %4584 = vst [vmem:[%s279 + $0x8d0] sm:$0xff] %v3614
      %4585 = vst [vmem:[%s279 + $0x8d8] sm:$0xff] %v3616
      %4586 = vst [vmem:[%s279 + $0x8e0] sm:$0xff] %v3620
      %4587 = vst [vmem:[%s279 + $0x8e8] sm:$0xff] %v3622
      %4588 = vst [vmem:[%s279 + $0x8f0] sm:$0xff] %v3626
      %4589 = vst [vmem:[%s279 + $0x8f8] sm:$0xff] %v3628
      %4590 = vst [vmem:[%s279 + $0x900] sm:$0xff] %v3632
      %4591 = vst [vmem:[%s279 + $0x908] sm:$0xff] %v3634
      %4592 = vst [vmem:[%s279 + $0x910] sm:$0xff] %v3638
      %4593 = vst [vmem:[%s279 + $0x918] sm:$0xff] %v3640
      %4594 = vst [vmem:[%s279 + $0x920] sm:$0xff] %v3644
      %4595 = vst [vmem:[%s279 + $0x928] sm:$0xff] %v3646
      %4596 = vst [vmem:[%s279 + $0x930] sm:$0xff] %v3650
      %4597 = vst [vmem:[%s279 + $0x938] sm:$0xff] %v3652
      %4598 = vst [vmem:[%s279 + $0x940] sm:$0xff] %v3656
      %4599 = vst [vmem:[%s279 + $0x948] sm:$0xff] %v3658
      %4600 = vst [vmem:[%s279 + $0x950] sm:$0xff] %v3662
      %4601 = vst [vmem:[%s279 + $0x958] sm:$0xff] %v3664
      %4602 = vst [vmem:[%s279 + $0x960] sm:$0xff] %v3668
      %4603 = vst [vmem:[%s279 + $0x968] sm:$0xff] %v3670
      %4604 = vst [vmem:[%s279 + $0x970] sm:$0xff] %v3674
      %4605 = vst [vmem:[%s279 + $0x978] sm:$0xff] %v3676
      %4606 = vst [vmem:[%s279 + $0x980] sm:$0xff] %v3680
      %4607 = vst [vmem:[%s279 + $0x988] sm:$0xff] %v3682
      %4608 = vst [vmem:[%s279 + $0x990] sm:$0xff] %v3686
      %4609 = vst [vmem:[%s279 + $0x998] sm:$0xff] %v3688
      %4610 = vst [vmem:[%s279 + $0x9a0] sm:$0xff] %v3692
      %4611 = vst [vmem:[%s279 + $0x9a8] sm:$0xff] %v3694
      %4612 = vst [vmem:[%s279 + $0x9b0] sm:$0xff] %v3698
      %4613 = vst [vmem:[%s279 + $0x9b8] sm:$0xff] %v3700
      %4614 = vst [vmem:[%s279 + $0x9c0] sm:$0xff] %v3704
      %4615 = vst [vmem:[%s279 + $0x9c8] sm:$0xff] %v3706
      %4616 = vst [vmem:[%s279 + $0x9d0] sm:$0xff] %v3710
      %4617 = vst [vmem:[%s279 + $0x9d8] sm:$0xff] %v3712
      %4618 = vst [vmem:[%s279 + $0x9e0] sm:$0xff] %v3716
      %4619 = vst [vmem:[%s279 + $0x9e8] sm:$0xff] %v3718
      %4620 = vst [vmem:[%s279 + $0x9f0] sm:$0xff] %v3722
      %4621 = vst [vmem:[%s279 + $0x9f8] sm:$0xff] %v3724
      %4622 = vst [vmem:[%s279 + $0xa00] sm:$0xff] %v3728
      %4623 = vst [vmem:[%s279 + $0xa08] sm:$0xff] %v3730
      %4624 = vst [vmem:[%s279 + $0xa10] sm:$0xff] %v3734
      %4625 = vst [vmem:[%s279 + $0xa18] sm:$0xff] %v3736
      %4626 = vst [vmem:[%s279 + $0xa20] sm:$0xff] %v3740
      %4627 = vst [vmem:[%s279 + $0xa28] sm:$0xff] %v3742
      %4628 = vst [vmem:[%s279 + $0xa30] sm:$0xff] %v3746
      %4629 = vst [vmem:[%s279 + $0xa38] sm:$0xff] %v3748
      %4630 = vst [vmem:[%s279 + $0xa40] sm:$0xff] %v3752
      %4631 = vst [vmem:[%s279 + $0xa48] sm:$0xff] %v3754
      %4632 = vst [vmem:[%s279 + $0xa50] sm:$0xff] %v3758
      %4633 = vst [vmem:[%s279 + $0xa58] sm:$0xff] %v3760
      %4634 = vst [vmem:[%s279 + $0xa60] sm:$0xff] %v3764
      %4635 = vst [vmem:[%s279 + $0xa68] sm:$0xff] %v3766
      %4636 = vst [vmem:[%s279 + $0xa70] sm:$0xff] %v3770
      %4637 = vst [vmem:[%s279 + $0xa78] sm:$0xff] %v3772
      %4638 = vst [vmem:[%s279 + $0xa80] sm:$0xff] %v3776
      %4639 = vst [vmem:[%s279 + $0xa88] sm:$0xff] %v3778
      %4640 = vst [vmem:[%s279 + $0xa90] sm:$0xff] %v3782
      %4641 = vst [vmem:[%s279 + $0xa98] sm:$0xff] %v3784
      %4642 = vst [vmem:[%s279 + $0xaa0] sm:$0xff] %v3788
      %4643 = vst [vmem:[%s279 + $0xaa8] sm:$0xff] %v3790
      %4644 = vst [vmem:[%s279 + $0xab0] sm:$0xff] %v3794
      %4645 = vst [vmem:[%s279 + $0xab8] sm:$0xff] %v3796
      %4646 = vst [vmem:[%s279 + $0xac0] sm:$0xff] %v3800
      %4647 = vst [vmem:[%s279 + $0xac8] sm:$0xff] %v3802
      %4648 = vst [vmem:[%s279 + $0xad0] sm:$0xff] %v3806
      %4649 = vst [vmem:[%s279 + $0xad8] sm:$0xff] %v3808
      %4650 = vst [vmem:[%s279 + $0xae0] sm:$0xff] %v3812
      %4651 = vst [vmem:[%s279 + $0xae8] sm:$0xff] %v3814
      %4652 = vst [vmem:[%s279 + $0xaf0] sm:$0xff] %v3818
      %4653 = vst [vmem:[%s279 + $0xaf8] sm:$0xff] %v3820
      %4654 = vst [vmem:[%s279 + $0xb00] sm:$0xff] %v3824
      %4655 = vst [vmem:[%s279 + $0xb08] sm:$0xff] %v3826
      %4656 = vst [vmem:[%s279 + $0xb10] sm:$0xff] %v3830
      %4657 = vst [vmem:[%s279 + $0xb18] sm:$0xff] %v3832
      %4658 = vst [vmem:[%s279 + $0xb20] sm:$0xff] %v3836
      %4659 = vst [vmem:[%s279 + $0xb28] sm:$0xff] %v3838
      %4660 = vst [vmem:[%s279 + $0xb30] sm:$0xff] %v3842
      %4661 = vst [vmem:[%s279 + $0xb38] sm:$0xff] %v3844
      %4662 = vst [vmem:[%s279 + $0xb40] sm:$0xff] %v3848
      %4663 = vst [vmem:[%s279 + $0xb48] sm:$0xff] %v3850
      %4664 = vst [vmem:[%s279 + $0xb50] sm:$0xff] %v3854
      %4665 = vst [vmem:[%s279 + $0xb58] sm:$0xff] %v3856
      %4666 = vst [vmem:[%s279 + $0xb60] sm:$0xff] %v3860
      %4667 = vst [vmem:[%s279 + $0xb68] sm:$0xff] %v3862
      %4668 = vst [vmem:[%s279 + $0xb70] sm:$0xff] %v3866
      %4669 = vst [vmem:[%s279 + $0xb78] sm:$0xff] %v3868
      %4670 = vst [vmem:[%s279 + $0xb80] sm:$0xff] %v3872
      %4671 = vst [vmem:[%s279 + $0xb88] sm:$0xff] %v3874
      %4672 = vst [vmem:[%s279 + $0xb90] sm:$0xff] %v3878
      %4673 = vst [vmem:[%s279 + $0xb98] sm:$0xff] %v3880
      %4674 = vst [vmem:[%s279 + $0xba0] sm:$0xff] %v3884
      %4675 = vst [vmem:[%s279 + $0xba8] sm:$0xff] %v3886
      %4676 = vst [vmem:[%s279 + $0xbb0] sm:$0xff] %v3890
      %4677 = vst [vmem:[%s279 + $0xbb8] sm:$0xff] %v3892
      %4678 = vst [vmem:[%s279 + $0xbc0] sm:$0xff] %v3896
      %4679 = vst [vmem:[%s279 + $0xbc8] sm:$0xff] %v3898
      %4680 = vst [vmem:[%s279 + $0xbd0] sm:$0xff] %v3902
      %4681 = vst [vmem:[%s279 + $0xbd8] sm:$0xff] %v3904
      %4682 = vst [vmem:[%s279 + $0xbe0] sm:$0xff] %v3908
      %4683 = vst [vmem:[%s279 + $0xbe8] sm:$0xff] %v3910
      %4684 = vst [vmem:[%s279 + $0xbf0] sm:$0xff] %v3914
      %4685 = vst [vmem:[%s279 + $0xbf8] sm:$0xff] %v3916
      %4686 = vst [vmem:[%s279 + $0xc00] sm:$0xff] %v3920
      %4687 = vst [vmem:[%s279 + $0xc08] sm:$0xff] %v3922
      %4688 = vst [vmem:[%s279 + $0xc10] sm:$0xff] %v3926
      %4689 = vst [vmem:[%s279 + $0xc18] sm:$0xff] %v3928
      %4690 = vst [vmem:[%s279 + $0xc20] sm:$0xff] %v3932
      %4691 = vst [vmem:[%s279 + $0xc28] sm:$0xff] %v3934
      %4692 = vst [vmem:[%s279 + $0xc30] sm:$0xff] %v3938
      %4693 = vst [vmem:[%s279 + $0xc38] sm:$0xff] %v3940
      %4694 = vst [vmem:[%s279 + $0xc40] sm:$0xff] %v3944
      %4695 = vst [vmem:[%s279 + $0xc48] sm:$0xff] %v3946
      %4696 = vst [vmem:[%s279 + $0xc50] sm:$0xff] %v3950
      %4697 = vst [vmem:[%s279 + $0xc58] sm:$0xff] %v3952
      %4698 = vst [vmem:[%s279 + $0xc60] sm:$0xff] %v3956
      %4699 = vst [vmem:[%s279 + $0xc68] sm:$0xff] %v3958
      %4700 = vst [vmem:[%s279 + $0xc70] sm:$0xff] %v3962
      %4701 = vst [vmem:[%s279 + $0xc78] sm:$0xff] %v3964
      %4702 = vst [vmem:[%s279 + $0xc80] sm:$0xff] %v3968
      %4703 = vst [vmem:[%s279 + $0xc88] sm:$0xff] %v3970
      %4704 = vst [vmem:[%s279 + $0xc90] sm:$0xff] %v3974
      %4705 = vst [vmem:[%s279 + $0xc98] sm:$0xff] %v3976
      %4706 = vst [vmem:[%s279 + $0xca0] sm:$0xff] %v3980
      %4707 = vst [vmem:[%s279 + $0xca8] sm:$0xff] %v3982
      %4708 = vst [vmem:[%s279 + $0xcb0] sm:$0xff] %v3986
      %4709 = vst [vmem:[%s279 + $0xcb8] sm:$0xff] %v3988
      %4710 = vst [vmem:[%s279 + $0xcc0] sm:$0xff] %v3992
      %4711 = vst [vmem:[%s279 + $0xcc8] sm:$0xff] %v3994
      %4712 = vst [vmem:[%s279 + $0xcd0] sm:$0xff] %v3998
      %4713 = vst [vmem:[%s279 + $0xcd8] sm:$0xff] %v4000
      %4714 = vst [vmem:[%s279 + $0xce0] sm:$0xff] %v4004
      %4715 = vst [vmem:[%s279 + $0xce8] sm:$0xff] %v4006
      %4716 = vst [vmem:[%s279 + $0xcf0] sm:$0xff] %v4010
      %4717 = vst [vmem:[%s279 + $0xcf8] sm:$0xff] %v4012
      %4718 = vst [vmem:[%s279 + $0xd00] sm:$0xff] %v4016
      %4719 = vst [vmem:[%s279 + $0xd08] sm:$0xff] %v4018
      %4720 = vst [vmem:[%s279 + $0xd10] sm:$0xff] %v4022
      %4721 = vst [vmem:[%s279 + $0xd18] sm:$0xff] %v4024
      %4722 = vst [vmem:[%s279 + $0xd20] sm:$0xff] %v4028
      %4723 = vst [vmem:[%s279 + $0xd28] sm:$0xff] %v4030
      %4724 = vst [vmem:[%s279 + $0xd30] sm:$0xff] %v4034
      %4725 = vst [vmem:[%s279 + $0xd38] sm:$0xff] %v4036
      %4726 = vst [vmem:[%s279 + $0xd40] sm:$0xff] %v4040
      %4727 = vst [vmem:[%s279 + $0xd48] sm:$0xff] %v4042
      %4728 = vst [vmem:[%s279 + $0xd50] sm:$0xff] %v4046
      %4729 = vst [vmem:[%s279 + $0xd58] sm:$0xff] %v4048
      %4730 = vst [vmem:[%s279 + $0xd60] sm:$0xff] %v4052
      %4731 = vst [vmem:[%s279 + $0xd68] sm:$0xff] %v4054
      %4732 = vst [vmem:[%s279 + $0xd70] sm:$0xff] %v4058
      %4733 = vst [vmem:[%s279 + $0xd78] sm:$0xff] %v4060
      %4734 = vst [vmem:[%s279 + $0xd80] sm:$0xff] %v4064
      %4735 = vst [vmem:[%s279 + $0xd88] sm:$0xff] %v4066
      %4736 = vst [vmem:[%s279 + $0xd90] sm:$0xff] %v4070
      %4737 = vst [vmem:[%s279 + $0xd98] sm:$0xff] %v4072
      %4738 = vst [vmem:[%s279 + $0xda0] sm:$0xff] %v4076
      %4739 = vst [vmem:[%s279 + $0xda8] sm:$0xff] %v4078
      %4740 = vst [vmem:[%s279 + $0xdb0] sm:$0xff] %v4082
      %4741 = vst [vmem:[%s279 + $0xdb8] sm:$0xff] %v4084
      %4742 = vst [vmem:[%s279 + $0xdc0] sm:$0xff] %v4088
      %4743 = vst [vmem:[%s279 + $0xdc8] sm:$0xff] %v4090
      %4744 = vst [vmem:[%s279 + $0xdd0] sm:$0xff] %v4094
      %4745 = vst [vmem:[%s279 + $0xdd8] sm:$0xff] %v4096
      %4746 = vst [vmem:[%s279 + $0xde0] sm:$0xff] %v4100
      %4747 = vst [vmem:[%s279 + $0xde8] sm:$0xff] %v4102
      %4748 = vst [vmem:[%s279 + $0xdf0] sm:$0xff] %v4106
      %4749 = vst [vmem:[%s279 + $0xdf8] sm:$0xff] %v4108
      %4750 = vst [vmem:[%s279 + $0xe00] sm:$0xff] %v4112
      %4751 = vst [vmem:[%s279 + $0xe08] sm:$0xff] %v4114
      %4752 = vst [vmem:[%s279 + $0xe10] sm:$0xff] %v4118
      %4753 = vst [vmem:[%s279 + $0xe18] sm:$0xff] %v4120
      %4754 = vst [vmem:[%s279 + $0xe20] sm:$0xff] %v4124
      %4755 = vst [vmem:[%s279 + $0xe28] sm:$0xff] %v4126
      %4756 = vst [vmem:[%s279 + $0xe30] sm:$0xff] %v4130
      %4757 = vst [vmem:[%s279 + $0xe38] sm:$0xff] %v4132
      %4758 = vst [vmem:[%s279 + $0xe40] sm:$0xff] %v4136
      %4759 = vst [vmem:[%s279 + $0xe48] sm:$0xff] %v4138
      %4760 = vst [vmem:[%s279 + $0xe50] sm:$0xff] %v4142
      %4761 = vst [vmem:[%s279 + $0xe58] sm:$0xff] %v4144
      %4762 = vst [vmem:[%s279 + $0xe60] sm:$0xff] %v4148
      %4763 = vst [vmem:[%s279 + $0xe68] sm:$0xff] %v4150
      %4764 = vst [vmem:[%s279 + $0xe70] sm:$0xff] %v4154
      %4765 = vst [vmem:[%s279 + $0xe78] sm:$0xff] %v4156
      %4766 = vst [vmem:[%s279 + $0xe80] sm:$0xff] %v4160
      %4767 = vst [vmem:[%s279 + $0xe88] sm:$0xff] %v4162
      %4768 = vst [vmem:[%s279 + $0xe90] sm:$0xff] %v4166
      %4769 = vst [vmem:[%s279 + $0xe98] sm:$0xff] %v4168
      %4770 = vst [vmem:[%s279 + $0xea0] sm:$0xff] %v4172
      %4771 = vst [vmem:[%s279 + $0xea8] sm:$0xff] %v4174
      %4772 = vst [vmem:[%s279 + $0xeb0] sm:$0xff] %v4178
      %4773 = vst [vmem:[%s279 + $0xeb8] sm:$0xff] %v4180
      %4774 = vst [vmem:[%s279 + $0xec0] sm:$0xff] %v4184
      %4775 = vst [vmem:[%s279 + $0xec8] sm:$0xff] %v4186
      %4776 = vst [vmem:[%s279 + $0xed0] sm:$0xff] %v4190
      %4777 = vst [vmem:[%s279 + $0xed8] sm:$0xff] %v4192
      %4778 = vst [vmem:[%s279 + $0xee0] sm:$0xff] %v4196
      %4779 = vst [vmem:[%s279 + $0xee8] sm:$0xff] %v4198
      %4780 = vst [vmem:[%s279 + $0xef0] sm:$0xff] %v4202
      %4781 = vst [vmem:[%s279 + $0xef8] sm:$0xff] %v4204
      %4782 = vst [vmem:[%s279 + $0xf00] sm:$0xff] %v4208
      %4783 = vst [vmem:[%s279 + $0xf08] sm:$0xff] %v4210
      %4784 = vst [vmem:[%s279 + $0xf10] sm:$0xff] %v4214
      %4785 = vst [vmem:[%s279 + $0xf18] sm:$0xff] %v4216
      %4786 = vst [vmem:[%s279 + $0xf20] sm:$0xff] %v4220
      %4787 = vst [vmem:[%s279 + $0xf28] sm:$0xff] %v4222
      %4788 = vst [vmem:[%s279 + $0xf30] sm:$0xff] %v4226
      %4789 = vst [vmem:[%s279 + $0xf38] sm:$0xff] %v4228
      %4790 = vst [vmem:[%s279 + $0xf40] sm:$0xff] %v4232
      %4791 = vst [vmem:[%s279 + $0xf48] sm:$0xff] %v4234
      %4792 = vst [vmem:[%s279 + $0xf50] sm:$0xff] %v4238
      %4793 = vst [vmem:[%s279 + $0xf58] sm:$0xff] %v4240
      %4794 = vst [vmem:[%s279 + $0xf60] sm:$0xff] %v4244
      %4795 = vst [vmem:[%s279 + $0xf68] sm:$0xff] %v4246
      %4796 = vst [vmem:[%s279 + $0xf70] sm:$0xff] %v4250
      %4797 = vst [vmem:[%s279 + $0xf78] sm:$0xff] %v4252
      %4798 = vst [vmem:[%s279 + $0xf80] sm:$0xff] %v4256
      %4799 = vst [vmem:[%s279 + $0xf88] sm:$0xff] %v4258
      %4800 = vst [vmem:[%s279 + $0xf90] sm:$0xff] %v4262
      %4801 = vst [vmem:[%s279 + $0xf98] sm:$0xff] %v4264
      %4802 = vst [vmem:[%s279 + $0xfa0] sm:$0xff] %v4268
      %4803 = vst [vmem:[%s279 + $0xfa8] sm:$0xff] %v4270
      %4804 = vst [vmem:[%s279 + $0xfb0] sm:$0xff] %v4274
      %4805 = vst [vmem:[%s279 + $0xfb8] sm:$0xff] %v4276
      %4806 = vst [vmem:[%s279 + $0xfc0] sm:$0xff] %v4280
      %4807 = vst [vmem:[%s279 + $0xfc8] sm:$0xff] %v4282
      %4808 = vst [vmem:[%s279 + $0xfd0] sm:$0xff] %v4286
      %4809 = vst [vmem:[%s279 + $0xfd8] sm:$0xff] %v4288
      %4810 = vst [vmem:[%s279 + $0xfe0] sm:$0xff] %v4292
      %4811 = vst [vmem:[%s279 + $0xfe8] sm:$0xff] %v4294
      %4812 = vst [vmem:[%s279 + $0xff0] sm:$0xff] %v4298
      %4813 = vst [vmem:[%s279 + $0xff8] sm:$0xff] %v4300
      %s4814 = smul.u32 256, %s20
      %p4815 = scmp.lt.s32.totalorder %s19, 1
      %s4816 = scalar_select %p4815, %s19, 1
      %p4817 = scmp.lt.s32.totalorder %s4814, 255
      %s4818 = scalar_select %p4817, %s4814, 255
      %s4819 = smul.addr %s4818, 2
      %s4820 = smul.addr %s4816, 512
      %s4821 = sadd.s32 %s4819, %s4820
      %s4822 = smul.addr %s4821, 8
      %s4823 = scalar_lea.vmem %s4, %s4822
      // Predicated region
      $region37: #{reformer_forward.1} parent=35 // pred_check
        %p4824 = pneg %p148
      $region38: #{reformer_forward.1} parent=35 // pred_check_branch
        %4826 = sbr.rel (%p4824) target = $region40
      $region39: #{reformer_forward.1} parent=35 // pred_region
        %s4827 = smul.u32 256, %s20
      $region40: #{reformer_forward.1} parent=35 // pred_fallthru
        _
    $region36: #{reformer_forward.1} parent=5 // pred_fallthru
      _
    %p4828 = scmp.le.s32.totalorder 2, %s10
    // Predicated region
    $region41: #{reformer_forward.1} parent=5 // pred_check
      %p4829 = pneg %p4828
    $region42: #{reformer_forward.1} parent=5 // pred_check_branch
      %4831 = sbr.rel (%p4829) target = $region44
    $region43: #{reformer_forward.1} parent=5 // pred_region
      %s4832 = ssub.s32 %s10, 2
      // Predicated region
      $region45: #{reformer_forward.1} parent=43 // pred_check
        %p4833 = pneg %p154
      $region46: #{reformer_forward.1} parent=43 // pred_check_branch
        %4835 = sbr.rel (%p4833) target = $region48
      $region47: #{reformer_forward.1} parent=43 // pred_region
        %s4836 = smul.u32 256, %s22
        %p4837 = scmp.lt.s32.totalorder %s21, 1
        %s4838 = scalar_select %p4837, %s21, 1
        %p4839 = scmp.lt.s32.totalorder %s4836, 255
        %s4840 = scalar_select %p4839, %s4836, 255
        %s4841 = smul.addr %s4840, 2
        %s4842 = smul.addr %s4838, 512
        %s4843 = sadd.s32 %s4841, %s4842
        %s4844 = smul.addr %s4843, 8
        %s4845 = scalar_lea.vmem %s4, %s4844
      $region48: #{reformer_forward.1} parent=43 // pred_fallthru
        _
    $region44: #{reformer_forward.1} parent=5 // pred_fallthru
      _
  $region6: #{reformer_forward.1} parent=0 // loop_footer
    %s14 = sadd.s32 1, %s10
  $region7: #{reformer_forward.1} parent=0 // loop_footer_branch
    %9 = sbr.rel target = $region3
  $region8: #{reformer_forward.1} parent=0 // loop_exit
    _

</llo_original>
